<compile_context>
chip_gen: v7x
topology: tpu7x:2x2x1
jax: 0.10.0
libtpu: 0.0.40
codegen_flags: <defaults>
</compile_context>

<pallas_src>
import jax
import jax.numpy as jnp
from jax.experimental import pallas as pl
from jax.experimental.pallas import tpu as pltpu

# ---- static problem sizes (from the module definition) ----------------------
C_IN = 1
C_MID = 5          # conv1 out channels
C_OUT = 5          # conv2 out channels
H0, W0 = 20, 20    # input spatial size
K1H, K1W = 3, 3    # conv1 kernel
K2H, K2W = 5, 3    # conv2 kernel
H1, W1 = H0 - K1H + 1, W0 - K1W + 1        # 18, 18
H2, W2 = H1 - K2H + 1, W1 - K2W + 1        # 14, 16


def conv_ann_kernel(x_ref, w1_ref, b1_ref, w2p_ref, b2p_ref, out_ref):
    """Full forward pass of ConvolutionalANN.

    x_ref   : VMEM (1, 20, 20)        f32
    w1_ref  : SMEM (5*1*3*3,)         f32   (OIHW flattened)
    b1_ref  : SMEM (5,)               f32
    w2p_ref : VMEM (75, 80)           f32   (row r=(ic,kh,kw); 5 oc scalars, each
                                             replicated over its 16-lane slot)
    b2p_ref : VMEM (1, 80)            f32   (b2[oc] replicated over its 16-lane slot)
    out_ref : VMEM (14, 80)           f32   (lane-packed: lanes [oc*16, (oc+1)*16))
    """
    x = x_ref[...]  # (1, 20, 20)

    # ---- conv1 (valid, stride 1) + bias + ReLU -------------------------------
    # Interchanged loops: 5 live accumulators (bias folded into init); each
    # shifted window is built exactly once and consumed immediately.
    acc1 = [jnp.full((H1, W1), b1_ref[oc], dtype=jnp.float32)
            for oc in range(C_MID)]
    for ic in range(C_IN):
        for kh in range(K1H):
            band = x[ic, kh:kh + H1, :]                      # (18, 20)
            for kw in range(K1W):
                win = band[:, kw:kw + W1]                    # (18, 18)
                for oc in range(C_MID):
                    widx = ((oc * C_IN + ic) * K1H + kh) * K1W + kw
                    acc1[oc] = acc1[oc] + w1_ref[widx] * win
    h1 = [jnp.maximum(a, 0.0) for a in acc1]                 # 5 x (18, 18), in vregs

    # ---- conv2 (valid, stride 1) + bias, output channels packed on lanes -----
    # One (14, 80) accumulator covering all 5 oc; 75 MAC pairs total.
    acc2 = jnp.broadcast_to(b2p_ref[...], (H2, C_OUT * W2))  # (14, 80), bias init
    for ic in range(C_MID):
        for kh in range(K2H):
            band = h1[ic][kh:kh + H2, :]                     # (14, 18)
            for kw in range(K2W):
                win = band[:, kw:kw + W2]                    # (14, 16)
                win5 = jnp.concatenate([win] * C_OUT, axis=1)  # (14, 80) lane-tiled
                r = (ic * K2H + kh) * K2W + kw
                acc2 = acc2 + w2p_ref[r:r + 1, :] * win5     # one MAC for all 5 oc

    out_ref[...] = acc2                                       # single lane-dense store


def conv_ann_forward(x, w1, b1, w2, b2):
    """x: (1, 20, 20) f32; w1: (5,1,3,3); b1: (5,); w2: (5,5,5,3); b2: (5,)."""
    w1_flat = w1.reshape(-1)

    # conv2 weight packing: (O,I,KH,KW) -> rows (ic,kh,kw) x cols oc -> broadcast
    # each oc scalar across its 16-lane output slot.
    w2_rows = jnp.transpose(w2, (1, 2, 3, 0)).reshape(C_MID * K2H * K2W, C_OUT)
    w2_packed = jnp.repeat(w2_rows, W2, axis=1)               # (75, 80)
    b2_packed = jnp.repeat(b2, W2).reshape(1, C_OUT * W2)     # (1, 80)

    out2d = pl.pallas_call(
        conv_ann_kernel,
        out_shape=jax.ShapeDtypeStruct((H2, C_OUT * W2), jnp.float32),
        in_specs=[
            pl.BlockSpec(memory_space=pltpu.MemorySpace.VMEM),   # x
            pl.BlockSpec(memory_space=pltpu.MemorySpace.SMEM),   # w1 (flat)
            pl.BlockSpec(memory_space=pltpu.MemorySpace.SMEM),   # b1
            pl.BlockSpec(memory_space=pltpu.MemorySpace.VMEM),   # w2 (packed)
            pl.BlockSpec(memory_space=pltpu.MemorySpace.VMEM),   # b2 (packed)
        ],
        out_specs=pl.BlockSpec(memory_space=pltpu.MemorySpace.VMEM),
    )(x, w1_flat, b1, w2_packed, b2_packed)

    # (14, 80) lane-packed -> (5, 14, 16) CHW, done outside the kernel.
    return out2d.reshape(H2, C_OUT, W2).transpose(1, 0, 2)


def _reference_forward(x, w1, b1, w2, b2):
    """Pure-JAX reference (lax conv), for correctness checking."""
    dn = ("NCHW", "OIHW", "NCHW")
    x4 = x[None]  # (1, 1, 20, 20)
    h1 = jax.lax.conv_general_dilated(x4, w1, (1, 1), "VALID",
                                      dimension_numbers=dn)
    h1 = jnp.maximum(h1 + b1[None, :, None, None], 0.0)
    h2 = jax.lax.conv_general_dilated(h1, w2, (1, 1), "VALID",
                                      dimension_numbers=dn)
    h2 = h2 + b2[None, :, None, None]
    return h2[0]  # (5, 14, 16)


if __name__ == "__main__":
    key = jax.random.PRNGKey(0)
    kx, k1, k2, k3, k4 = jax.random.split(key, 5)

    # Deterministic synthetic parameters (shapes from the module's __init__).
    x = jax.random.uniform(kx, (C_IN, H0, W0), dtype=jnp.float32)
    w1 = jax.random.normal(k1, (C_MID, C_IN, K1H, K1W), dtype=jnp.float32) * 0.2
    b1 = jax.random.normal(k2, (C_MID,), dtype=jnp.float32) * 0.1
    w2 = jax.random.normal(k3, (C_OUT, C_MID, K2H, K2W), dtype=jnp.float32) * 0.2
    b2 = jax.random.normal(k4, (C_OUT,), dtype=jnp.float32) * 0.1

    out = conv_ann_forward(x, w1, b1, w2, b2)
    out = jax.block_until_ready(out)

    ref = _reference_forward(x, w1, b1, w2, b2)
    assert out.shape == (C_OUT, H2, W2), out.shape
    assert jnp.allclose(out, ref, atol=1e-4, rtol=1e-4), "mismatch vs reference"

    print("KERNEL_OK")
</pallas_src>

<mosaic_0001>
module attributes {stable_mosaic.version = 11 : i64} {
  func.func @conv_ann_kernel(%arg0: memref<1x20x20xf32, #tpu.memory_space<vmem>>, %arg1: memref<45xf32, #tpu.memory_space<smem>>, %arg2: memref<5xf32, #tpu.memory_space<smem>>, %arg3: memref<75x80xf32, #tpu.memory_space<vmem>>, %arg4: memref<1x80xf32, #tpu.memory_space<vmem>>, %arg5: memref<14x80xf32, #tpu.memory_space<vmem>>) attributes {dimension_semantics = [], scalar_prefetch = 0 : i64, scratch_operands = 0 : i64, tpu.core_type = #tpu.core_type<tc>} {
    %c0 = arith.constant 0 : index
    %c0_0 = arith.constant 0 : index
    %c0_1 = arith.constant 0 : index
    %0 = vector.load %arg0[%c0, %c0_0, %c0_1] : memref<1x20x20xf32, #tpu.memory_space<vmem>>, vector<1x20x20xf32>
    %c0_2 = arith.constant 0 : index
    %1 = memref.load %arg2[%c0_2] : memref<5xf32, #tpu.memory_space<smem>>
    %2 = vector.broadcast %1 : f32 to vector<18x18xf32>
    %c1 = arith.constant 1 : index
    %3 = memref.load %arg2[%c1] : memref<5xf32, #tpu.memory_space<smem>>
    %4 = vector.broadcast %3 : f32 to vector<18x18xf32>
    %c2 = arith.constant 2 : index
    %5 = memref.load %arg2[%c2] : memref<5xf32, #tpu.memory_space<smem>>
    %6 = vector.broadcast %5 : f32 to vector<18x18xf32>
    %c3 = arith.constant 3 : index
    %7 = memref.load %arg2[%c3] : memref<5xf32, #tpu.memory_space<smem>>
    %8 = vector.broadcast %7 : f32 to vector<18x18xf32>
    %c4 = arith.constant 4 : index
    %9 = memref.load %arg2[%c4] : memref<5xf32, #tpu.memory_space<smem>>
    %10 = vector.broadcast %9 : f32 to vector<18x18xf32>
    %11 = vector.extract_strided_slice %0 {offsets = [0, 0, 0], sizes = [1, 18, 20], strides = [1, 1, 1]} : vector<1x20x20xf32> to vector<1x18x20xf32>
    %12 = vector.shape_cast %11 : vector<1x18x20xf32> to vector<18x20xf32>
    %13 = vector.extract_strided_slice %12 {offsets = [0, 0], sizes = [18, 18], strides = [1, 1]} : vector<18x20xf32> to vector<18x18xf32>
    %c0_3 = arith.constant 0 : index
    %14 = memref.load %arg1[%c0_3] : memref<45xf32, #tpu.memory_space<smem>>
    %15 = vector.broadcast %14 : f32 to vector<18x18xf32>
    %16 = arith.mulf %15, %13 : vector<18x18xf32>
    %17 = arith.addf %2, %16 : vector<18x18xf32>
    %c9 = arith.constant 9 : index
    %18 = memref.load %arg1[%c9] : memref<45xf32, #tpu.memory_space<smem>>
    %19 = vector.broadcast %18 : f32 to vector<18x18xf32>
    %20 = arith.mulf %19, %13 : vector<18x18xf32>
    %21 = arith.addf %4, %20 : vector<18x18xf32>
    %c18 = arith.constant 18 : index
    %22 = memref.load %arg1[%c18] : memref<45xf32, #tpu.memory_space<smem>>
    %23 = vector.broadcast %22 : f32 to vector<18x18xf32>
    %24 = arith.mulf %23, %13 : vector<18x18xf32>
    %25 = arith.addf %6, %24 : vector<18x18xf32>
    %c27 = arith.constant 27 : index
    %26 = memref.load %arg1[%c27] : memref<45xf32, #tpu.memory_space<smem>>
    %27 = vector.broadcast %26 : f32 to vector<18x18xf32>
    %28 = arith.mulf %27, %13 : vector<18x18xf32>
    %29 = arith.addf %8, %28 : vector<18x18xf32>
    %c36 = arith.constant 36 : index
    %30 = memref.load %arg1[%c36] : memref<45xf32, #tpu.memory_space<smem>>
    %31 = vector.broadcast %30 : f32 to vector<18x18xf32>
    %32 = arith.mulf %31, %13 : vector<18x18xf32>
    %33 = arith.addf %10, %32 : vector<18x18xf32>
    %34 = vector.extract_strided_slice %12 {offsets = [0, 1], sizes = [18, 18], strides = [1, 1]} : vector<18x20xf32> to vector<18x18xf32>
    %c1_4 = arith.constant 1 : index
    %35 = memref.load %arg1[%c1_4] : memref<45xf32, #tpu.memory_space<smem>>
    %36 = vector.broadcast %35 : f32 to vector<18x18xf32>
    %37 = arith.mulf %36, %34 : vector<18x18xf32>
    %38 = arith.addf %17, %37 : vector<18x18xf32>
    %c10 = arith.constant 10 : index
    %39 = memref.load %arg1[%c10] : memref<45xf32, #tpu.memory_space<smem>>
    %40 = vector.broadcast %39 : f32 to vector<18x18xf32>
    %41 = arith.mulf %40, %34 : vector<18x18xf32>
    %42 = arith.addf %21, %41 : vector<18x18xf32>
    %c19 = arith.constant 19 : index
    %43 = memref.load %arg1[%c19] : memref<45xf32, #tpu.memory_space<smem>>
    %44 = vector.broadcast %43 : f32 to vector<18x18xf32>
    %45 = arith.mulf %44, %34 : vector<18x18xf32>
    %46 = arith.addf %25, %45 : vector<18x18xf32>
    %c28 = arith.constant 28 : index
    %47 = memref.load %arg1[%c28] : memref<45xf32, #tpu.memory_space<smem>>
    %48 = vector.broadcast %47 : f32 to vector<18x18xf32>
    %49 = arith.mulf %48, %34 : vector<18x18xf32>
    %50 = arith.addf %29, %49 : vector<18x18xf32>
    %c37 = arith.constant 37 : index
    %51 = memref.load %arg1[%c37] : memref<45xf32, #tpu.memory_space<smem>>
    %52 = vector.broadcast %51 : f32 to vector<18x18xf32>
    %53 = arith.mulf %52, %34 : vector<18x18xf32>
    %54 = arith.addf %33, %53 : vector<18x18xf32>
    %55 = vector.extract_strided_slice %12 {offsets = [0, 2], sizes = [18, 18], strides = [1, 1]} : vector<18x20xf32> to vector<18x18xf32>
    %c2_5 = arith.constant 2 : index
    %56 = memref.load %arg1[%c2_5] : memref<45xf32, #tpu.memory_space<smem>>
    %57 = vector.broadcast %56 : f32 to vector<18x18xf32>
    %58 = arith.mulf %57, %55 : vector<18x18xf32>
    %59 = arith.addf %38, %58 : vector<18x18xf32>
    %c11 = arith.constant 11 : index
    %60 = memref.load %arg1[%c11] : memref<45xf32, #tpu.memory_space<smem>>
    %61 = vector.broadcast %60 : f32 to vector<18x18xf32>
    %62 = arith.mulf %61, %55 : vector<18x18xf32>
    %63 = arith.addf %42, %62 : vector<18x18xf32>
    %c20 = arith.constant 20 : index
    %64 = memref.load %arg1[%c20] : memref<45xf32, #tpu.memory_space<smem>>
    %65 = vector.broadcast %64 : f32 to vector<18x18xf32>
    %66 = arith.mulf %65, %55 : vector<18x18xf32>
    %67 = arith.addf %46, %66 : vector<18x18xf32>
    %c29 = arith.constant 29 : index
    %68 = memref.load %arg1[%c29] : memref<45xf32, #tpu.memory_space<smem>>
    %69 = vector.broadcast %68 : f32 to vector<18x18xf32>
    %70 = arith.mulf %69, %55 : vector<18x18xf32>
    %71 = arith.addf %50, %70 : vector<18x18xf32>
    %c38 = arith.constant 38 : index
    %72 = memref.load %arg1[%c38] : memref<45xf32, #tpu.memory_space<smem>>
    %73 = vector.broadcast %72 : f32 to vector<18x18xf32>
    %74 = arith.mulf %73, %55 : vector<18x18xf32>
    %75 = arith.addf %54, %74 : vector<18x18xf32>
    %76 = vector.extract_strided_slice %0 {offsets = [0, 1, 0], sizes = [1, 18, 20], strides = [1, 1, 1]} : vector<1x20x20xf32> to vector<1x18x20xf32>
    %77 = vector.shape_cast %76 : vector<1x18x20xf32> to vector<18x20xf32>
    %78 = vector.extract_strided_slice %77 {offsets = [0, 0], sizes = [18, 18], strides = [1, 1]} : vector<18x20xf32> to vector<18x18xf32>
    %c3_6 = arith.constant 3 : index
    %79 = memref.load %arg1[%c3_6] : memref<45xf32, #tpu.memory_space<smem>>
    %80 = vector.broadcast %79 : f32 to vector<18x18xf32>
    %81 = arith.mulf %80, %78 : vector<18x18xf32>
    %82 = arith.addf %59, %81 : vector<18x18xf32>
    %c12 = arith.constant 12 : index
    %83 = memref.load %arg1[%c12] : memref<45xf32, #tpu.memory_space<smem>>
    %84 = vector.broadcast %83 : f32 to vector<18x18xf32>
    %85 = arith.mulf %84, %78 : vector<18x18xf32>
    %86 = arith.addf %63, %85 : vector<18x18xf32>
    %c21 = arith.constant 21 : index
    %87 = memref.load %arg1[%c21] : memref<45xf32, #tpu.memory_space<smem>>
    %88 = vector.broadcast %87 : f32 to vector<18x18xf32>
    %89 = arith.mulf %88, %78 : vector<18x18xf32>
    %90 = arith.addf %67, %89 : vector<18x18xf32>
    %c30 = arith.constant 30 : index
    %91 = memref.load %arg1[%c30] : memref<45xf32, #tpu.memory_space<smem>>
    %92 = vector.broadcast %91 : f32 to vector<18x18xf32>
    %93 = arith.mulf %92, %78 : vector<18x18xf32>
    %94 = arith.addf %71, %93 : vector<18x18xf32>
    %c39 = arith.constant 39 : index
    %95 = memref.load %arg1[%c39] : memref<45xf32, #tpu.memory_space<smem>>
    %96 = vector.broadcast %95 : f32 to vector<18x18xf32>
    %97 = arith.mulf %96, %78 : vector<18x18xf32>
    %98 = arith.addf %75, %97 : vector<18x18xf32>
    %99 = vector.extract_strided_slice %77 {offsets = [0, 1], sizes = [18, 18], strides = [1, 1]} : vector<18x20xf32> to vector<18x18xf32>
    %c4_7 = arith.constant 4 : index
    %100 = memref.load %arg1[%c4_7] : memref<45xf32, #tpu.memory_space<smem>>
    %101 = vector.broadcast %100 : f32 to vector<18x18xf32>
    %102 = arith.mulf %101, %99 : vector<18x18xf32>
    %103 = arith.addf %82, %102 : vector<18x18xf32>
    %c13 = arith.constant 13 : index
    %104 = memref.load %arg1[%c13] : memref<45xf32, #tpu.memory_space<smem>>
    %105 = vector.broadcast %104 : f32 to vector<18x18xf32>
    %106 = arith.mulf %105, %99 : vector<18x18xf32>
    %107 = arith.addf %86, %106 : vector<18x18xf32>
    %c22 = arith.constant 22 : index
    %108 = memref.load %arg1[%c22] : memref<45xf32, #tpu.memory_space<smem>>
    %109 = vector.broadcast %108 : f32 to vector<18x18xf32>
    %110 = arith.mulf %109, %99 : vector<18x18xf32>
    %111 = arith.addf %90, %110 : vector<18x18xf32>
    %c31 = arith.constant 31 : index
    %112 = memref.load %arg1[%c31] : memref<45xf32, #tpu.memory_space<smem>>
    %113 = vector.broadcast %112 : f32 to vector<18x18xf32>
    %114 = arith.mulf %113, %99 : vector<18x18xf32>
    %115 = arith.addf %94, %114 : vector<18x18xf32>
    %c40 = arith.constant 40 : index
    %116 = memref.load %arg1[%c40] : memref<45xf32, #tpu.memory_space<smem>>
    %117 = vector.broadcast %116 : f32 to vector<18x18xf32>
    %118 = arith.mulf %117, %99 : vector<18x18xf32>
    %119 = arith.addf %98, %118 : vector<18x18xf32>
    %120 = vector.extract_strided_slice %77 {offsets = [0, 2], sizes = [18, 18], strides = [1, 1]} : vector<18x20xf32> to vector<18x18xf32>
    %c5 = arith.constant 5 : index
    %121 = memref.load %arg1[%c5] : memref<45xf32, #tpu.memory_space<smem>>
    %122 = vector.broadcast %121 : f32 to vector<18x18xf32>
    %123 = arith.mulf %122, %120 : vector<18x18xf32>
    %124 = arith.addf %103, %123 : vector<18x18xf32>
    %c14 = arith.constant 14 : index
    %125 = memref.load %arg1[%c14] : memref<45xf32, #tpu.memory_space<smem>>
    %126 = vector.broadcast %125 : f32 to vector<18x18xf32>
    %127 = arith.mulf %126, %120 : vector<18x18xf32>
    %128 = arith.addf %107, %127 : vector<18x18xf32>
    %c23 = arith.constant 23 : index
    %129 = memref.load %arg1[%c23] : memref<45xf32, #tpu.memory_space<smem>>
    %130 = vector.broadcast %129 : f32 to vector<18x18xf32>
    %131 = arith.mulf %130, %120 : vector<18x18xf32>
    %132 = arith.addf %111, %131 : vector<18x18xf32>
    %c32 = arith.constant 32 : index
    %133 = memref.load %arg1[%c32] : memref<45xf32, #tpu.memory_space<smem>>
    %134 = vector.broadcast %133 : f32 to vector<18x18xf32>
    %135 = arith.mulf %134, %120 : vector<18x18xf32>
    %136 = arith.addf %115, %135 : vector<18x18xf32>
    %c41 = arith.constant 41 : index
    %137 = memref.load %arg1[%c41] : memref<45xf32, #tpu.memory_space<smem>>
    %138 = vector.broadcast %137 : f32 to vector<18x18xf32>
    %139 = arith.mulf %138, %120 : vector<18x18xf32>
    %140 = arith.addf %119, %139 : vector<18x18xf32>
    %141 = vector.extract_strided_slice %0 {offsets = [0, 2, 0], sizes = [1, 18, 20], strides = [1, 1, 1]} : vector<1x20x20xf32> to vector<1x18x20xf32>
    %142 = vector.shape_cast %141 : vector<1x18x20xf32> to vector<18x20xf32>
    %143 = vector.extract_strided_slice %142 {offsets = [0, 0], sizes = [18, 18], strides = [1, 1]} : vector<18x20xf32> to vector<18x18xf32>
    %c6 = arith.constant 6 : index
    %144 = memref.load %arg1[%c6] : memref<45xf32, #tpu.memory_space<smem>>
    %145 = vector.broadcast %144 : f32 to vector<18x18xf32>
    %146 = arith.mulf %145, %143 : vector<18x18xf32>
    %147 = arith.addf %124, %146 : vector<18x18xf32>
    %c15 = arith.constant 15 : index
    %148 = memref.load %arg1[%c15] : memref<45xf32, #tpu.memory_space<smem>>
    %149 = vector.broadcast %148 : f32 to vector<18x18xf32>
    %150 = arith.mulf %149, %143 : vector<18x18xf32>
    %151 = arith.addf %128, %150 : vector<18x18xf32>
    %c24 = arith.constant 24 : index
    %152 = memref.load %arg1[%c24] : memref<45xf32, #tpu.memory_space<smem>>
    %153 = vector.broadcast %152 : f32 to vector<18x18xf32>
    %154 = arith.mulf %153, %143 : vector<18x18xf32>
    %155 = arith.addf %132, %154 : vector<18x18xf32>
    %c33 = arith.constant 33 : index
    %156 = memref.load %arg1[%c33] : memref<45xf32, #tpu.memory_space<smem>>
    %157 = vector.broadcast %156 : f32 to vector<18x18xf32>
    %158 = arith.mulf %157, %143 : vector<18x18xf32>
    %159 = arith.addf %136, %158 : vector<18x18xf32>
    %c42 = arith.constant 42 : index
    %160 = memref.load %arg1[%c42] : memref<45xf32, #tpu.memory_space<smem>>
    %161 = vector.broadcast %160 : f32 to vector<18x18xf32>
    %162 = arith.mulf %161, %143 : vector<18x18xf32>
    %163 = arith.addf %140, %162 : vector<18x18xf32>
    %164 = vector.extract_strided_slice %142 {offsets = [0, 1], sizes = [18, 18], strides = [1, 1]} : vector<18x20xf32> to vector<18x18xf32>
    %c7 = arith.constant 7 : index
    %165 = memref.load %arg1[%c7] : memref<45xf32, #tpu.memory_space<smem>>
    %166 = vector.broadcast %165 : f32 to vector<18x18xf32>
    %167 = arith.mulf %166, %164 : vector<18x18xf32>
    %168 = arith.addf %147, %167 : vector<18x18xf32>
    %c16 = arith.constant 16 : index
    %169 = memref.load %arg1[%c16] : memref<45xf32, #tpu.memory_space<smem>>
    %170 = vector.broadcast %169 : f32 to vector<18x18xf32>
    %171 = arith.mulf %170, %164 : vector<18x18xf32>
    %172 = arith.addf %151, %171 : vector<18x18xf32>
    %c25 = arith.constant 25 : index
    %173 = memref.load %arg1[%c25] : memref<45xf32, #tpu.memory_space<smem>>
    %174 = vector.broadcast %173 : f32 to vector<18x18xf32>
    %175 = arith.mulf %174, %164 : vector<18x18xf32>
    %176 = arith.addf %155, %175 : vector<18x18xf32>
    %c34 = arith.constant 34 : index
    %177 = memref.load %arg1[%c34] : memref<45xf32, #tpu.memory_space<smem>>
    %178 = vector.broadcast %177 : f32 to vector<18x18xf32>
    %179 = arith.mulf %178, %164 : vector<18x18xf32>
    %180 = arith.addf %159, %179 : vector<18x18xf32>
    %c43 = arith.constant 43 : index
    %181 = memref.load %arg1[%c43] : memref<45xf32, #tpu.memory_space<smem>>
    %182 = vector.broadcast %181 : f32 to vector<18x18xf32>
    %183 = arith.mulf %182, %164 : vector<18x18xf32>
    %184 = arith.addf %163, %183 : vector<18x18xf32>
    %185 = vector.extract_strided_slice %142 {offsets = [0, 2], sizes = [18, 18], strides = [1, 1]} : vector<18x20xf32> to vector<18x18xf32>
    %c8 = arith.constant 8 : index
    %186 = memref.load %arg1[%c8] : memref<45xf32, #tpu.memory_space<smem>>
    %187 = vector.broadcast %186 : f32 to vector<18x18xf32>
    %188 = arith.mulf %187, %185 : vector<18x18xf32>
    %189 = arith.addf %168, %188 : vector<18x18xf32>
    %c17 = arith.constant 17 : index
    %190 = memref.load %arg1[%c17] : memref<45xf32, #tpu.memory_space<smem>>
    %191 = vector.broadcast %190 : f32 to vector<18x18xf32>
    %192 = arith.mulf %191, %185 : vector<18x18xf32>
    %193 = arith.addf %172, %192 : vector<18x18xf32>
    %c26 = arith.constant 26 : index
    %194 = memref.load %arg1[%c26] : memref<45xf32, #tpu.memory_space<smem>>
    %195 = vector.broadcast %194 : f32 to vector<18x18xf32>
    %196 = arith.mulf %195, %185 : vector<18x18xf32>
    %197 = arith.addf %176, %196 : vector<18x18xf32>
    %c35 = arith.constant 35 : index
    %198 = memref.load %arg1[%c35] : memref<45xf32, #tpu.memory_space<smem>>
    %199 = vector.broadcast %198 : f32 to vector<18x18xf32>
    %200 = arith.mulf %199, %185 : vector<18x18xf32>
    %201 = arith.addf %180, %200 : vector<18x18xf32>
    %c44 = arith.constant 44 : index
    %202 = memref.load %arg1[%c44] : memref<45xf32, #tpu.memory_space<smem>>
    %203 = vector.broadcast %202 : f32 to vector<18x18xf32>
    %204 = arith.mulf %203, %185 : vector<18x18xf32>
    %205 = arith.addf %184, %204 : vector<18x18xf32>
    %cst = arith.constant 0.000000e+00 : f32
    %206 = vector.broadcast %cst : f32 to vector<18x18xf32>
    %207 = arith.maximumf %189, %206 : vector<18x18xf32>
    %cst_8 = arith.constant 0.000000e+00 : f32
    %208 = vector.broadcast %cst_8 : f32 to vector<18x18xf32>
    %209 = arith.maximumf %193, %208 : vector<18x18xf32>
    %cst_9 = arith.constant 0.000000e+00 : f32
    %210 = vector.broadcast %cst_9 : f32 to vector<18x18xf32>
    %211 = arith.maximumf %197, %210 : vector<18x18xf32>
    %cst_10 = arith.constant 0.000000e+00 : f32
    %212 = vector.broadcast %cst_10 : f32 to vector<18x18xf32>
    %213 = arith.maximumf %201, %212 : vector<18x18xf32>
    %cst_11 = arith.constant 0.000000e+00 : f32
    %214 = vector.broadcast %cst_11 : f32 to vector<18x18xf32>
    %215 = arith.maximumf %205, %214 : vector<18x18xf32>
    %c0_12 = arith.constant 0 : index
    %c0_13 = arith.constant 0 : index
    %216 = vector.load %arg4[%c0_12, %c0_13] : memref<1x80xf32, #tpu.memory_space<vmem>>, vector<1x80xf32>
    %217 = vector.shape_cast %216 : vector<1x80xf32> to vector<1x80xf32>
    %218 = vector.broadcast %217 : vector<1x80xf32> to vector<14x80xf32>
    %219 = vector.extract_strided_slice %207 {offsets = [0, 0], sizes = [14, 18], strides = [1, 1]} : vector<18x18xf32> to vector<14x18xf32>
    %220 = vector.extract_strided_slice %219 {offsets = [0, 0], sizes = [14, 16], strides = [1, 1]} : vector<14x18xf32> to vector<14x16xf32>
    %221 = tpu.concatenate %220, %220, %220, %220, %220 in 1 : vector<14x16xf32>, vector<14x16xf32>, vector<14x16xf32>, vector<14x16xf32>, vector<14x16xf32> -> vector<14x80xf32>
    %c0_14 = arith.constant 0 : index
    %c0_15 = arith.constant 0 : index
    %222 = vector.load %arg3[%c0_14, %c0_15] : memref<75x80xf32, #tpu.memory_space<vmem>>, vector<1x80xf32>
    %223 = vector.broadcast %222 : vector<1x80xf32> to vector<14x80xf32>
    %224 = arith.mulf %223, %221 : vector<14x80xf32>
    %225 = arith.addf %218, %224 : vector<14x80xf32>
    %226 = vector.extract_strided_slice %219 {offsets = [0, 1], sizes = [14, 16], strides = [1, 1]} : vector<14x18xf32> to vector<14x16xf32>
    %227 = tpu.concatenate %226, %226, %226, %226, %226 in 1 : vector<14x16xf32>, vector<14x16xf32>, vector<14x16xf32>, vector<14x16xf32>, vector<14x16xf32> -> vector<14x80xf32>
    %c1_16 = arith.constant 1 : index
    %c0_17 = arith.constant 0 : index
    %228 = vector.load %arg3[%c1_16, %c0_17] : memref<75x80xf32, #tpu.memory_space<vmem>>, vector<1x80xf32>
    %229 = vector.broadcast %228 : vector<1x80xf32> to vector<14x80xf32>
    %230 = arith.mulf %229, %227 : vector<14x80xf32>
    %231 = arith.addf %225, %230 : vector<14x80xf32>
    %232 = vector.extract_strided_slice %219 {offsets = [0, 2], sizes = [14, 16], strides = [1, 1]} : vector<14x18xf32> to vector<14x16xf32>
    %233 = tpu.concatenate %232, %232, %232, %232, %232 in 1 : vector<14x16xf32>, vector<14x16xf32>, vector<14x16xf32>, vector<14x16xf32>, vector<14x16xf32> -> vector<14x80xf32>
    %c2_18 = arith.constant 2 : index
    %c0_19 = arith.constant 0 : index
    %234 = vector.load %arg3[%c2_18, %c0_19] : memref<75x80xf32, #tpu.memory_space<vmem>>, vector<1x80xf32>
    %235 = vector.broadcast %234 : vector<1x80xf32> to vector<14x80xf32>
    %236 = arith.mulf %235, %233 : vector<14x80xf32>
    %237 = arith.addf %231, %236 : vector<14x80xf32>
    %238 = vector.extract_strided_slice %207 {offsets = [1, 0], sizes = [14, 18], strides = [1, 1]} : vector<18x18xf32> to vector<14x18xf32>
    %239 = vector.extract_strided_slice %238 {offsets = [0, 0], sizes = [14, 16], strides = [1, 1]} : vector<14x18xf32> to vector<14x16xf32>
    %240 = tpu.concatenate %239, %239, %239, %239, %239 in 1 : vector<14x16xf32>, vector<14x16xf32>, vector<14x16xf32>, vector<14x16xf32>, vector<14x16xf32> -> vector<14x80xf32>
    %c3_20 = arith.constant 3 : index
    %c0_21 = arith.constant 0 : index
    %241 = vector.load %arg3[%c3_20, %c0_21] : memref<75x80xf32, #tpu.memory_space<vmem>>, vector<1x80xf32>
    %242 = vector.broadcast %241 : vector<1x80xf32> to vector<14x80xf32>
    %243 = arith.mulf %242, %240 : vector<14x80xf32>
    %244 = arith.addf %237, %243 : vector<14x80xf32>
    %245 = vector.extract_strided_slice %238 {offsets = [0, 1], sizes = [14, 16], strides = [1, 1]} : vector<14x18xf32> to vector<14x16xf32>
    %246 = tpu.concatenate %245, %245, %245, %245, %245 in 1 : vector<14x16xf32>, vector<14x16xf32>, vector<14x16xf32>, vector<14x16xf32>, vector<14x16xf32> -> vector<14x80xf32>
    %c4_22 = arith.constant 4 : index
    %c0_23 = arith.constant 0 : index
    %247 = vector.load %arg3[%c4_22, %c0_23] : memref<75x80xf32, #tpu.memory_space<vmem>>, vector<1x80xf32>
    %248 = vector.broadcast %247 : vector<1x80xf32> to vector<14x80xf32>
    %249 = arith.mulf %248, %246 : vector<14x80xf32>
    %250 = arith.addf %244, %249 : vector<14x80xf32>
    %251 = vector.extract_strided_slice %238 {offsets = [0, 2], sizes = [14, 16], strides = [1, 1]} : vector<14x18xf32> to vector<14x16xf32>
    %252 = tpu.concatenate %251, %251, %251, %251, %251 in 1 : vector<14x16xf32>, vector<14x16xf32>, vector<14x16xf32>, vector<14x16xf32>, vector<14x16xf32> -> vector<14x80xf32>
    %c5_24 = arith.constant 5 : index
    %c0_25 = arith.constant 0 : index
    %253 = vector.load %arg3[%c5_24, %c0_25] : memref<75x80xf32, #tpu.memory_space<vmem>>, vector<1x80xf32>
    %254 = vector.broadcast %253 : vector<1x80xf32> to vector<14x80xf32>
    %255 = arith.mulf %254, %252 : vector<14x80xf32>
    %256 = arith.addf %250, %255 : vector<14x80xf32>
    %257 = vector.extract_strided_slice %207 {offsets = [2, 0], sizes = [14, 18], strides = [1, 1]} : vector<18x18xf32> to vector<14x18xf32>
    %258 = vector.extract_strided_slice %257 {offsets = [0, 0], sizes = [14, 16], strides = [1, 1]} : vector<14x18xf32> to vector<14x16xf32>
    %259 = tpu.concatenate %258, %258, %258, %258, %258 in 1 : vector<14x16xf32>, vector<14x16xf32>, vector<14x16xf32>, vector<14x16xf32>, vector<14x16xf32> -> vector<14x80xf32>
    %c6_26 = arith.constant 6 : index
    %c0_27 = arith.constant 0 : index
    %260 = vector.load %arg3[%c6_26, %c0_27] : memref<75x80xf32, #tpu.memory_space<vmem>>, vector<1x80xf32>
    %261 = vector.broadcast %260 : vector<1x80xf32> to vector<14x80xf32>
    %262 = arith.mulf %261, %259 : vector<14x80xf32>
    %263 = arith.addf %256, %262 : vector<14x80xf32>
    %264 = vector.extract_strided_slice %257 {offsets = [0, 1], sizes = [14, 16], strides = [1, 1]} : vector<14x18xf32> to vector<14x16xf32>
    %265 = tpu.concatenate %264, %264, %264, %264, %264 in 1 : vector<14x16xf32>, vector<14x16xf32>, vector<14x16xf32>, vector<14x16xf32>, vector<14x16xf32> -> vector<14x80xf32>
    %c7_28 = arith.constant 7 : index
    %c0_29 = arith.constant 0 : index
    %266 = vector.load %arg3[%c7_28, %c0_29] : memref<75x80xf32, #tpu.memory_space<vmem>>, vector<1x80xf32>
    %267 = vector.broadcast %266 : vector<1x80xf32> to vector<14x80xf32>
    %268 = arith.mulf %267, %265 : vector<14x80xf32>
    %269 = arith.addf %263, %268 : vector<14x80xf32>
    %270 = vector.extract_strided_slice %257 {offsets = [0, 2], sizes = [14, 16], strides = [1, 1]} : vector<14x18xf32> to vector<14x16xf32>
    %271 = tpu.concatenate %270, %270, %270, %270, %270 in 1 : vector<14x16xf32>, vector<14x16xf32>, vector<14x16xf32>, vector<14x16xf32>, vector<14x16xf32> -> vector<14x80xf32>
    %c8_30 = arith.constant 8 : index
    %c0_31 = arith.constant 0 : index
    %272 = vector.load %arg3[%c8_30, %c0_31] : memref<75x80xf32, #tpu.memory_space<vmem>>, vector<1x80xf32>
    %273 = vector.broadcast %272 : vector<1x80xf32> to vector<14x80xf32>
    %274 = arith.mulf %273, %271 : vector<14x80xf32>
    %275 = arith.addf %269, %274 : vector<14x80xf32>
    %276 = vector.extract_strided_slice %207 {offsets = [3, 0], sizes = [14, 18], strides = [1, 1]} : vector<18x18xf32> to vector<14x18xf32>
    %277 = vector.extract_strided_slice %276 {offsets = [0, 0], sizes = [14, 16], strides = [1, 1]} : vector<14x18xf32> to vector<14x16xf32>
    %278 = tpu.concatenate %277, %277, %277, %277, %277 in 1 : vector<14x16xf32>, vector<14x16xf32>, vector<14x16xf32>, vector<14x16xf32>, vector<14x16xf32> -> vector<14x80xf32>
    %c9_32 = arith.constant 9 : index
    %c0_33 = arith.constant 0 : index
    %279 = vector.load %arg3[%c9_32, %c0_33] : memref<75x80xf32, #tpu.memory_space<vmem>>, vector<1x80xf32>
    %280 = vector.broadcast %279 : vector<1x80xf32> to vector<14x80xf32>
    %281 = arith.mulf %280, %278 : vector<14x80xf32>
    %282 = arith.addf %275, %281 : vector<14x80xf32>
    %283 = vector.extract_strided_slice %276 {offsets = [0, 1], sizes = [14, 16], strides = [1, 1]} : vector<14x18xf32> to vector<14x16xf32>
    %284 = tpu.concatenate %283, %283, %283, %283, %283 in 1 : vector<14x16xf32>, vector<14x16xf32>, vector<14x16xf32>, vector<14x16xf32>, vector<14x16xf32> -> vector<14x80xf32>
    %c10_34 = arith.constant 10 : index
    %c0_35 = arith.constant 0 : index
    %285 = vector.load %arg3[%c10_34, %c0_35] : memref<75x80xf32, #tpu.memory_space<vmem>>, vector<1x80xf32>
    %286 = vector.broadcast %285 : vector<1x80xf32> to vector<14x80xf32>
    %287 = arith.mulf %286, %284 : vector<14x80xf32>
    %288 = arith.addf %282, %287 : vector<14x80xf32>
    %289 = vector.extract_strided_slice %276 {offsets = [0, 2], sizes = [14, 16], strides = [1, 1]} : vector<14x18xf32> to vector<14x16xf32>
    %290 = tpu.concatenate %289, %289, %289, %289, %289 in 1 : vector<14x16xf32>, vector<14x16xf32>, vector<14x16xf32>, vector<14x16xf32>, vector<14x16xf32> -> vector<14x80xf32>
    %c11_36 = arith.constant 11 : index
    %c0_37 = arith.constant 0 : index
    %291 = vector.load %arg3[%c11_36, %c0_37] : memref<75x80xf32, #tpu.memory_space<vmem>>, vector<1x80xf32>
    %292 = vector.broadcast %291 : vector<1x80xf32> to vector<14x80xf32>
    %293 = arith.mulf %292, %290 : vector<14x80xf32>
    %294 = arith.addf %288, %293 : vector<14x80xf32>
    %295 = vector.extract_strided_slice %207 {offsets = [4, 0], sizes = [14, 18], strides = [1, 1]} : vector<18x18xf32> to vector<14x18xf32>
    %296 = vector.extract_strided_slice %295 {offsets = [0, 0], sizes = [14, 16], strides = [1, 1]} : vector<14x18xf32> to vector<14x16xf32>
    %297 = tpu.concatenate %296, %296, %296, %296, %296 in 1 : vector<14x16xf32>, vector<14x16xf32>, vector<14x16xf32>, vector<14x16xf32>, vector<14x16xf32> -> vector<14x80xf32>
    %c12_38 = arith.constant 12 : index
    %c0_39 = arith.constant 0 : index
    %298 = vector.load %arg3[%c12_38, %c0_39] : memref<75x80xf32, #tpu.memory_space<vmem>>, vector<1x80xf32>
    %299 = vector.broadcast %298 : vector<1x80xf32> to vector<14x80xf32>
    %300 = arith.mulf %299, %297 : vector<14x80xf32>
    %301 = arith.addf %294, %300 : vector<14x80xf32>
    %302 = vector.extract_strided_slice %295 {offsets = [0, 1], sizes = [14, 16], strides = [1, 1]} : vector<14x18xf32> to vector<14x16xf32>
    %303 = tpu.concatenate %302, %302, %302, %302, %302 in 1 : vector<14x16xf32>, vector<14x16xf32>, vector<14x16xf32>, vector<14x16xf32>, vector<14x16xf32> -> vector<14x80xf32>
    %c13_40 = arith.constant 13 : index
    %c0_41 = arith.constant 0 : index
    %304 = vector.load %arg3[%c13_40, %c0_41] : memref<75x80xf32, #tpu.memory_space<vmem>>, vector<1x80xf32>
    %305 = vector.broadcast %304 : vector<1x80xf32> to vector<14x80xf32>
    %306 = arith.mulf %305, %303 : vector<14x80xf32>
    %307 = arith.addf %301, %306 : vector<14x80xf32>
    %308 = vector.extract_strided_slice %295 {offsets = [0, 2], sizes = [14, 16], strides = [1, 1]} : vector<14x18xf32> to vector<14x16xf32>
    %309 = tpu.concatenate %308, %308, %308, %308, %308 in 1 : vector<14x16xf32>, vector<14x16xf32>, vector<14x16xf32>, vector<14x16xf32>, vector<14x16xf32> -> vector<14x80xf32>
    %c14_42 = arith.constant 14 : index
    %c0_43 = arith.constant 0 : index
    %310 = vector.load %arg3[%c14_42, %c0_43] : memref<75x80xf32, #tpu.memory_space<vmem>>, vector<1x80xf32>
    %311 = vector.broadcast %310 : vector<1x80xf32> to vector<14x80xf32>
    %312 = arith.mulf %311, %309 : vector<14x80xf32>
    %313 = arith.addf %307, %312 : vector<14x80xf32>
    %314 = vector.extract_strided_slice %209 {offsets = [0, 0], sizes = [14, 18], strides = [1, 1]} : vector<18x18xf32> to vector<14x18xf32>
    %315 = vector.extract_strided_slice %314 {offsets = [0, 0], sizes = [14, 16], strides = [1, 1]} : vector<14x18xf32> to vector<14x16xf32>
    %316 = tpu.concatenate %315, %315, %315, %315, %315 in 1 : vector<14x16xf32>, vector<14x16xf32>, vector<14x16xf32>, vector<14x16xf32>, vector<14x16xf32> -> vector<14x80xf32>
    %c15_44 = arith.constant 15 : index
    %c0_45 = arith.constant 0 : index
    %317 = vector.load %arg3[%c15_44, %c0_45] : memref<75x80xf32, #tpu.memory_space<vmem>>, vector<1x80xf32>
    %318 = vector.broadcast %317 : vector<1x80xf32> to vector<14x80xf32>
    %319 = arith.mulf %318, %316 : vector<14x80xf32>
    %320 = arith.addf %313, %319 : vector<14x80xf32>
    %321 = vector.extract_strided_slice %314 {offsets = [0, 1], sizes = [14, 16], strides = [1, 1]} : vector<14x18xf32> to vector<14x16xf32>
    %322 = tpu.concatenate %321, %321, %321, %321, %321 in 1 : vector<14x16xf32>, vector<14x16xf32>, vector<14x16xf32>, vector<14x16xf32>, vector<14x16xf32> -> vector<14x80xf32>
    %c16_46 = arith.constant 16 : index
    %c0_47 = arith.constant 0 : index
    %323 = vector.load %arg3[%c16_46, %c0_47] : memref<75x80xf32, #tpu.memory_space<vmem>>, vector<1x80xf32>
    %324 = vector.broadcast %323 : vector<1x80xf32> to vector<14x80xf32>
    %325 = arith.mulf %324, %322 : vector<14x80xf32>
    %326 = arith.addf %320, %325 : vector<14x80xf32>
    %327 = vector.extract_strided_slice %314 {offsets = [0, 2], sizes = [14, 16], strides = [1, 1]} : vector<14x18xf32> to vector<14x16xf32>
    %328 = tpu.concatenate %327, %327, %327, %327, %327 in 1 : vector<14x16xf32>, vector<14x16xf32>, vector<14x16xf32>, vector<14x16xf32>, vector<14x16xf32> -> vector<14x80xf32>
    %c17_48 = arith.constant 17 : index
    %c0_49 = arith.constant 0 : index
    %329 = vector.load %arg3[%c17_48, %c0_49] : memref<75x80xf32, #tpu.memory_space<vmem>>, vector<1x80xf32>
    %330 = vector.broadcast %329 : vector<1x80xf32> to vector<14x80xf32>
    %331 = arith.mulf %330, %328 : vector<14x80xf32>
    %332 = arith.addf %326, %331 : vector<14x80xf32>
    %333 = vector.extract_strided_slice %209 {offsets = [1, 0], sizes = [14, 18], strides = [1, 1]} : vector<18x18xf32> to vector<14x18xf32>
    %334 = vector.extract_strided_slice %333 {offsets = [0, 0], sizes = [14, 16], strides = [1, 1]} : vector<14x18xf32> to vector<14x16xf32>
    %335 = tpu.concatenate %334, %334, %334, %334, %334 in 1 : vector<14x16xf32>, vector<14x16xf32>, vector<14x16xf32>, vector<14x16xf32>, vector<14x16xf32> -> vector<14x80xf32>
    %c18_50 = arith.constant 18 : index
    %c0_51 = arith.constant 0 : index
    %336 = vector.load %arg3[%c18_50, %c0_51] : memref<75x80xf32, #tpu.memory_space<vmem>>, vector<1x80xf32>
    %337 = vector.broadcast %336 : vector<1x80xf32> to vector<14x80xf32>
    %338 = arith.mulf %337, %335 : vector<14x80xf32>
    %339 = arith.addf %332, %338 : vector<14x80xf32>
    %340 = vector.extract_strided_slice %333 {offsets = [0, 1], sizes = [14, 16], strides = [1, 1]} : vector<14x18xf32> to vector<14x16xf32>
    %341 = tpu.concatenate %340, %340, %340, %340, %340 in 1 : vector<14x16xf32>, vector<14x16xf32>, vector<14x16xf32>, vector<14x16xf32>, vector<14x16xf32> -> vector<14x80xf32>
    %c19_52 = arith.constant 19 : index
    %c0_53 = arith.constant 0 : index
    %342 = vector.load %arg3[%c19_52, %c0_53] : memref<75x80xf32, #tpu.memory_space<vmem>>, vector<1x80xf32>
    %343 = vector.broadcast %342 : vector<1x80xf32> to vector<14x80xf32>
    %344 = arith.mulf %343, %341 : vector<14x80xf32>
    %345 = arith.addf %339, %344 : vector<14x80xf32>
    %346 = vector.extract_strided_slice %333 {offsets = [0, 2], sizes = [14, 16], strides = [1, 1]} : vector<14x18xf32> to vector<14x16xf32>
    %347 = tpu.concatenate %346, %346, %346, %346, %346 in 1 : vector<14x16xf32>, vector<14x16xf32>, vector<14x16xf32>, vector<14x16xf32>, vector<14x16xf32> -> vector<14x80xf32>
    %c20_54 = arith.constant 20 : index
    %c0_55 = arith.constant 0 : index
    %348 = vector.load %arg3[%c20_54, %c0_55] : memref<75x80xf32, #tpu.memory_space<vmem>>, vector<1x80xf32>
    %349 = vector.broadcast %348 : vector<1x80xf32> to vector<14x80xf32>
    %350 = arith.mulf %349, %347 : vector<14x80xf32>
    %351 = arith.addf %345, %350 : vector<14x80xf32>
    %352 = vector.extract_strided_slice %209 {offsets = [2, 0], sizes = [14, 18], strides = [1, 1]} : vector<18x18xf32> to vector<14x18xf32>
    %353 = vector.extract_strided_slice %352 {offsets = [0, 0], sizes = [14, 16], strides = [1, 1]} : vector<14x18xf32> to vector<14x16xf32>
    %354 = tpu.concatenate %353, %353, %353, %353, %353 in 1 : vector<14x16xf32>, vector<14x16xf32>, vector<14x16xf32>, vector<14x16xf32>, vector<14x16xf32> -> vector<14x80xf32>
    %c21_56 = arith.constant 21 : index
    %c0_57 = arith.constant 0 : index
    %355 = vector.load %arg3[%c21_56, %c0_57] : memref<75x80xf32, #tpu.memory_space<vmem>>, vector<1x80xf32>
    %356 = vector.broadcast %355 : vector<1x80xf32> to vector<14x80xf32>
    %357 = arith.mulf %356, %354 : vector<14x80xf32>
    %358 = arith.addf %351, %357 : vector<14x80xf32>
    %359 = vector.extract_strided_slice %352 {offsets = [0, 1], sizes = [14, 16], strides = [1, 1]} : vector<14x18xf32> to vector<14x16xf32>
    %360 = tpu.concatenate %359, %359, %359, %359, %359 in 1 : vector<14x16xf32>, vector<14x16xf32>, vector<14x16xf32>, vector<14x16xf32>, vector<14x16xf32> -> vector<14x80xf32>
    %c22_58 = arith.constant 22 : index
    %c0_59 = arith.constant 0 : index
    %361 = vector.load %arg3[%c22_58, %c0_59] : memref<75x80xf32, #tpu.memory_space<vmem>>, vector<1x80xf32>
    %362 = vector.broadcast %361 : vector<1x80xf32> to vector<14x80xf32>
    %363 = arith.mulf %362, %360 : vector<14x80xf32>
    %364 = arith.addf %358, %363 : vector<14x80xf32>
    %365 = vector.extract_strided_slice %352 {offsets = [0, 2], sizes = [14, 16], strides = [1, 1]} : vector<14x18xf32> to vector<14x16xf32>
    %366 = tpu.concatenate %365, %365, %365, %365, %365 in 1 : vector<14x16xf32>, vector<14x16xf32>, vector<14x16xf32>, vector<14x16xf32>, vector<14x16xf32> -> vector<14x80xf32>
    %c23_60 = arith.constant 23 : index
    %c0_61 = arith.constant 0 : index
    %367 = vector.load %arg3[%c23_60, %c0_61] : memref<75x80xf32, #tpu.memory_space<vmem>>, vector<1x80xf32>
    %368 = vector.broadcast %367 : vector<1x80xf32> to vector<14x80xf32>
    %369 = arith.mulf %368, %366 : vector<14x80xf32>
    %370 = arith.addf %364, %369 : vector<14x80xf32>
    %371 = vector.extract_strided_slice %209 {offsets = [3, 0], sizes = [14, 18], strides = [1, 1]} : vector<18x18xf32> to vector<14x18xf32>
    %372 = vector.extract_strided_slice %371 {offsets = [0, 0], sizes = [14, 16], strides = [1, 1]} : vector<14x18xf32> to vector<14x16xf32>
    %373 = tpu.concatenate %372, %372, %372, %372, %372 in 1 : vector<14x16xf32>, vector<14x16xf32>, vector<14x16xf32>, vector<14x16xf32>, vector<14x16xf32> -> vector<14x80xf32>
    %c24_62 = arith.constant 24 : index
    %c0_63 = arith.constant 0 : index
    %374 = vector.load %arg3[%c24_62, %c0_63] : memref<75x80xf32, #tpu.memory_space<vmem>>, vector<1x80xf32>
    %375 = vector.broadcast %374 : vector<1x80xf32> to vector<14x80xf32>
    %376 = arith.mulf %375, %373 : vector<14x80xf32>
    %377 = arith.addf %370, %376 : vector<14x80xf32>
    %378 = vector.extract_strided_slice %371 {offsets = [0, 1], sizes = [14, 16], strides = [1, 1]} : vector<14x18xf32> to vector<14x16xf32>
    %379 = tpu.concatenate %378, %378, %378, %378, %378 in 1 : vector<14x16xf32>, vector<14x16xf32>, vector<14x16xf32>, vector<14x16xf32>, vector<14x16xf32> -> vector<14x80xf32>
    %c25_64 = arith.constant 25 : index
    %c0_65 = arith.constant 0 : index
    %380 = vector.load %arg3[%c25_64, %c0_65] : memref<75x80xf32, #tpu.memory_space<vmem>>, vector<1x80xf32>
    %381 = vector.broadcast %380 : vector<1x80xf32> to vector<14x80xf32>
    %382 = arith.mulf %381, %379 : vector<14x80xf32>
    %383 = arith.addf %377, %382 : vector<14x80xf32>
    %384 = vector.extract_strided_slice %371 {offsets = [0, 2], sizes = [14, 16], strides = [1, 1]} : vector<14x18xf32> to vector<14x16xf32>
    %385 = tpu.concatenate %384, %384, %384, %384, %384 in 1 : vector<14x16xf32>, vector<14x16xf32>, vector<14x16xf32>, vector<14x16xf32>, vector<14x16xf32> -> vector<14x80xf32>
    %c26_66 = arith.constant 26 : index
    %c0_67 = arith.constant 0 : index
    %386 = vector.load %arg3[%c26_66, %c0_67] : memref<75x80xf32, #tpu.memory_space<vmem>>, vector<1x80xf32>
    %387 = vector.broadcast %386 : vector<1x80xf32> to vector<14x80xf32>
    %388 = arith.mulf %387, %385 : vector<14x80xf32>
    %389 = arith.addf %383, %388 : vector<14x80xf32>
    %390 = vector.extract_strided_slice %209 {offsets = [4, 0], sizes = [14, 18], strides = [1, 1]} : vector<18x18xf32> to vector<14x18xf32>
    %391 = vector.extract_strided_slice %390 {offsets = [0, 0], sizes = [14, 16], strides = [1, 1]} : vector<14x18xf32> to vector<14x16xf32>
    %392 = tpu.concatenate %391, %391, %391, %391, %391 in 1 : vector<14x16xf32>, vector<14x16xf32>, vector<14x16xf32>, vector<14x16xf32>, vector<14x16xf32> -> vector<14x80xf32>
    %c27_68 = arith.constant 27 : index
    %c0_69 = arith.constant 0 : index
    %393 = vector.load %arg3[%c27_68, %c0_69] : memref<75x80xf32, #tpu.memory_space<vmem>>, vector<1x80xf32>
    %394 = vector.broadcast %393 : vector<1x80xf32> to vector<14x80xf32>
    %395 = arith.mulf %394, %392 : vector<14x80xf32>
    %396 = arith.addf %389, %395 : vector<14x80xf32>
    %397 = vector.extract_strided_slice %390 {offsets = [0, 1], sizes = [14, 16], strides = [1, 1]} : vector<14x18xf32> to vector<14x16xf32>
    %398 = tpu.concatenate %397, %397, %397, %397, %397 in 1 : vector<14x16xf32>, vector<14x16xf32>, vector<14x16xf32>, vector<14x16xf32>, vector<14x16xf32> -> vector<14x80xf32>
    %c28_70 = arith.constant 28 : index
    %c0_71 = arith.constant 0 : index
    %399 = vector.load %arg3[%c28_70, %c0_71] : memref<75x80xf32, #tpu.memory_space<vmem>>, vector<1x80xf32>
    %400 = vector.broadcast %399 : vector<1x80xf32> to vector<14x80xf32>
    %401 = arith.mulf %400, %398 : vector<14x80xf32>
    %402 = arith.addf %396, %401 : vector<14x80xf32>
    %403 = vector.extract_strided_slice %390 {offsets = [0, 2], sizes = [14, 16], strides = [1, 1]} : vector<14x18xf32> to vector<14x16xf32>
    %404 = tpu.concatenate %403, %403, %403, %403, %403 in 1 : vector<14x16xf32>, vector<14x16xf32>, vector<14x16xf32>, vector<14x16xf32>, vector<14x16xf32> -> vector<14x80xf32>
    %c29_72 = arith.constant 29 : index
    %c0_73 = arith.constant 0 : index
    %405 = vector.load %arg3[%c29_72, %c0_73] : memref<75x80xf32, #tpu.memory_space<vmem>>, vector<1x80xf32>
    %406 = vector.broadcast %405 : vector<1x80xf32> to vector<14x80xf32>
    %407 = arith.mulf %406, %404 : vector<14x80xf32>
    %408 = arith.addf %402, %407 : vector<14x80xf32>
    %409 = vector.extract_strided_slice %211 {offsets = [0, 0], sizes = [14, 18], strides = [1, 1]} : vector<18x18xf32> to vector<14x18xf32>
    %410 = vector.extract_strided_slice %409 {offsets = [0, 0], sizes = [14, 16], strides = [1, 1]} : vector<14x18xf32> to vector<14x16xf32>
    %411 = tpu.concatenate %410, %410, %410, %410, %410 in 1 : vector<14x16xf32>, vector<14x16xf32>, vector<14x16xf32>, vector<14x16xf32>, vector<14x16xf32> -> vector<14x80xf32>
    %c30_74 = arith.constant 30 : index
    %c0_75 = arith.constant 0 : index
    %412 = vector.load %arg3[%c30_74, %c0_75] : memref<75x80xf32, #tpu.memory_space<vmem>>, vector<1x80xf32>
    %413 = vector.broadcast %412 : vector<1x80xf32> to vector<14x80xf32>
    %414 = arith.mulf %413, %411 : vector<14x80xf32>
    %415 = arith.addf %408, %414 : vector<14x80xf32>
    %416 = vector.extract_strided_slice %409 {offsets = [0, 1], sizes = [14, 16], strides = [1, 1]} : vector<14x18xf32> to vector<14x16xf32>
    %417 = tpu.concatenate %416, %416, %416, %416, %416 in 1 : vector<14x16xf32>, vector<14x16xf32>, vector<14x16xf32>, vector<14x16xf32>, vector<14x16xf32> -> vector<14x80xf32>
    %c31_76 = arith.constant 31 : index
    %c0_77 = arith.constant 0 : index
    %418 = vector.load %arg3[%c31_76, %c0_77] : memref<75x80xf32, #tpu.memory_space<vmem>>, vector<1x80xf32>
    %419 = vector.broadcast %418 : vector<1x80xf32> to vector<14x80xf32>
    %420 = arith.mulf %419, %417 : vector<14x80xf32>
    %421 = arith.addf %415, %420 : vector<14x80xf32>
    %422 = vector.extract_strided_slice %409 {offsets = [0, 2], sizes = [14, 16], strides = [1, 1]} : vector<14x18xf32> to vector<14x16xf32>
    %423 = tpu.concatenate %422, %422, %422, %422, %422 in 1 : vector<14x16xf32>, vector<14x16xf32>, vector<14x16xf32>, vector<14x16xf32>, vector<14x16xf32> -> vector<14x80xf32>
    %c32_78 = arith.constant 32 : index
    %c0_79 = arith.constant 0 : index
    %424 = vector.load %arg3[%c32_78, %c0_79] : memref<75x80xf32, #tpu.memory_space<vmem>>, vector<1x80xf32>
    %425 = vector.broadcast %424 : vector<1x80xf32> to vector<14x80xf32>
    %426 = arith.mulf %425, %423 : vector<14x80xf32>
    %427 = arith.addf %421, %426 : vector<14x80xf32>
    %428 = vector.extract_strided_slice %211 {offsets = [1, 0], sizes = [14, 18], strides = [1, 1]} : vector<18x18xf32> to vector<14x18xf32>
    %429 = vector.extract_strided_slice %428 {offsets = [0, 0], sizes = [14, 16], strides = [1, 1]} : vector<14x18xf32> to vector<14x16xf32>
    %430 = tpu.concatenate %429, %429, %429, %429, %429 in 1 : vector<14x16xf32>, vector<14x16xf32>, vector<14x16xf32>, vector<14x16xf32>, vector<14x16xf32> -> vector<14x80xf32>
    %c33_80 = arith.constant 33 : index
    %c0_81 = arith.constant 0 : index
    %431 = vector.load %arg3[%c33_80, %c0_81] : memref<75x80xf32, #tpu.memory_space<vmem>>, vector<1x80xf32>
    %432 = vector.broadcast %431 : vector<1x80xf32> to vector<14x80xf32>
    %433 = arith.mulf %432, %430 : vector<14x80xf32>
    %434 = arith.addf %427, %433 : vector<14x80xf32>
    %435 = vector.extract_strided_slice %428 {offsets = [0, 1], sizes = [14, 16], strides = [1, 1]} : vector<14x18xf32> to vector<14x16xf32>
    %436 = tpu.concatenate %435, %435, %435, %435, %435 in 1 : vector<14x16xf32>, vector<14x16xf32>, vector<14x16xf32>, vector<14x16xf32>, vector<14x16xf32> -> vector<14x80xf32>
    %c34_82 = arith.constant 34 : index
    %c0_83 = arith.constant 0 : index
    %437 = vector.load %arg3[%c34_82, %c0_83] : memref<75x80xf32, #tpu.memory_space<vmem>>, vector<1x80xf32>
    %438 = vector.broadcast %437 : vector<1x80xf32> to vector<14x80xf32>
    %439 = arith.mulf %438, %436 : vector<14x80xf32>
    %440 = arith.addf %434, %439 : vector<14x80xf32>
    %441 = vector.extract_strided_slice %428 {offsets = [0, 2], sizes = [14, 16], strides = [1, 1]} : vector<14x18xf32> to vector<14x16xf32>
    %442 = tpu.concatenate %441, %441, %441, %441, %441 in 1 : vector<14x16xf32>, vector<14x16xf32>, vector<14x16xf32>, vector<14x16xf32>, vector<14x16xf32> -> vector<14x80xf32>
    %c35_84 = arith.constant 35 : index
    %c0_85 = arith.constant 0 : index
    %443 = vector.load %arg3[%c35_84, %c0_85] : memref<75x80xf32, #tpu.memory_space<vmem>>, vector<1x80xf32>
    %444 = vector.broadcast %443 : vector<1x80xf32> to vector<14x80xf32>
    %445 = arith.mulf %444, %442 : vector<14x80xf32>
    %446 = arith.addf %440, %445 : vector<14x80xf32>
    %447 = vector.extract_strided_slice %211 {offsets = [2, 0], sizes = [14, 18], strides = [1, 1]} : vector<18x18xf32> to vector<14x18xf32>
    %448 = vector.extract_strided_slice %447 {offsets = [0, 0], sizes = [14, 16], strides = [1, 1]} : vector<14x18xf32> to vector<14x16xf32>
    %449 = tpu.concatenate %448, %448, %448, %448, %448 in 1 : vector<14x16xf32>, vector<14x16xf32>, vector<14x16xf32>, vector<14x16xf32>, vector<14x16xf32> -> vector<14x80xf32>
    %c36_86 = arith.constant 36 : index
    %c0_87 = arith.constant 0 : index
    %450 = vector.load %arg3[%c36_86, %c0_87] : memref<75x80xf32, #tpu.memory_space<vmem>>, vector<1x80xf32>
    %451 = vector.broadcast %450 : vector<1x80xf32> to vector<14x80xf32>
    %452 = arith.mulf %451, %449 : vector<14x80xf32>
    %453 = arith.addf %446, %452 : vector<14x80xf32>
    %454 = vector.extract_strided_slice %447 {offsets = [0, 1], sizes = [14, 16], strides = [1, 1]} : vector<14x18xf32> to vector<14x16xf32>
    %455 = tpu.concatenate %454, %454, %454, %454, %454 in 1 : vector<14x16xf32>, vector<14x16xf32>, vector<14x16xf32>, vector<14x16xf32>, vector<14x16xf32> -> vector<14x80xf32>
    %c37_88 = arith.constant 37 : index
    %c0_89 = arith.constant 0 : index
    %456 = vector.load %arg3[%c37_88, %c0_89] : memref<75x80xf32, #tpu.memory_space<vmem>>, vector<1x80xf32>
    %457 = vector.broadcast %456 : vector<1x80xf32> to vector<14x80xf32>
    %458 = arith.mulf %457, %455 : vector<14x80xf32>
    %459 = arith.addf %453, %458 : vector<14x80xf32>
    %460 = vector.extract_strided_slice %447 {offsets = [0, 2], sizes = [14, 16], strides = [1, 1]} : vector<14x18xf32> to vector<14x16xf32>
    %461 = tpu.concatenate %460, %460, %460, %460, %460 in 1 : vector<14x16xf32>, vector<14x16xf32>, vector<14x16xf32>, vector<14x16xf32>, vector<14x16xf32> -> vector<14x80xf32>
    %c38_90 = arith.constant 38 : index
    %c0_91 = arith.constant 0 : index
    %462 = vector.load %arg3[%c38_90, %c0_91] : memref<75x80xf32, #tpu.memory_space<vmem>>, vector<1x80xf32>
    %463 = vector.broadcast %462 : vector<1x80xf32> to vector<14x80xf32>
    %464 = arith.mulf %463, %461 : vector<14x80xf32>
    %465 = arith.addf %459, %464 : vector<14x80xf32>
    %466 = vector.extract_strided_slice %211 {offsets = [3, 0], sizes = [14, 18], strides = [1, 1]} : vector<18x18xf32> to vector<14x18xf32>
    %467 = vector.extract_strided_slice %466 {offsets = [0, 0], sizes = [14, 16], strides = [1, 1]} : vector<14x18xf32> to vector<14x16xf32>
    %468 = tpu.concatenate %467, %467, %467, %467, %467 in 1 : vector<14x16xf32>, vector<14x16xf32>, vector<14x16xf32>, vector<14x16xf32>, vector<14x16xf32> -> vector<14x80xf32>
    %c39_92 = arith.constant 39 : index
    %c0_93 = arith.constant 0 : index
    %469 = vector.load %arg3[%c39_92, %c0_93] : memref<75x80xf32, #tpu.memory_space<vmem>>, vector<1x80xf32>
    %470 = vector.broadcast %469 : vector<1x80xf32> to vector<14x80xf32>
    %471 = arith.mulf %470, %468 : vector<14x80xf32>
    %472 = arith.addf %465, %471 : vector<14x80xf32>
    %473 = vector.extract_strided_slice %466 {offsets = [0, 1], sizes = [14, 16], strides = [1, 1]} : vector<14x18xf32> to vector<14x16xf32>
    %474 = tpu.concatenate %473, %473, %473, %473, %473 in 1 : vector<14x16xf32>, vector<14x16xf32>, vector<14x16xf32>, vector<14x16xf32>, vector<14x16xf32> -> vector<14x80xf32>
    %c40_94 = arith.constant 40 : index
    %c0_95 = arith.constant 0 : index
    %475 = vector.load %arg3[%c40_94, %c0_95] : memref<75x80xf32, #tpu.memory_space<vmem>>, vector<1x80xf32>
    %476 = vector.broadcast %475 : vector<1x80xf32> to vector<14x80xf32>
    %477 = arith.mulf %476, %474 : vector<14x80xf32>
    %478 = arith.addf %472, %477 : vector<14x80xf32>
    %479 = vector.extract_strided_slice %466 {offsets = [0, 2], sizes = [14, 16], strides = [1, 1]} : vector<14x18xf32> to vector<14x16xf32>
    %480 = tpu.concatenate %479, %479, %479, %479, %479 in 1 : vector<14x16xf32>, vector<14x16xf32>, vector<14x16xf32>, vector<14x16xf32>, vector<14x16xf32> -> vector<14x80xf32>
    %c41_96 = arith.constant 41 : index
    %c0_97 = arith.constant 0 : index
    %481 = vector.load %arg3[%c41_96, %c0_97] : memref<75x80xf32, #tpu.memory_space<vmem>>, vector<1x80xf32>
    %482 = vector.broadcast %481 : vector<1x80xf32> to vector<14x80xf32>
    %483 = arith.mulf %482, %480 : vector<14x80xf32>
    %484 = arith.addf %478, %483 : vector<14x80xf32>
    %485 = vector.extract_strided_slice %211 {offsets = [4, 0], sizes = [14, 18], strides = [1, 1]} : vector<18x18xf32> to vector<14x18xf32>
    %486 = vector.extract_strided_slice %485 {offsets = [0, 0], sizes = [14, 16], strides = [1, 1]} : vector<14x18xf32> to vector<14x16xf32>
    %487 = tpu.concatenate %486, %486, %486, %486, %486 in 1 : vector<14x16xf32>, vector<14x16xf32>, vector<14x16xf32>, vector<14x16xf32>, vector<14x16xf32> -> vector<14x80xf32>
    %c42_98 = arith.constant 42 : index
    %c0_99 = arith.constant 0 : index
    %488 = vector.load %arg3[%c42_98, %c0_99] : memref<75x80xf32, #tpu.memory_space<vmem>>, vector<1x80xf32>
    %489 = vector.broadcast %488 : vector<1x80xf32> to vector<14x80xf32>
    %490 = arith.mulf %489, %487 : vector<14x80xf32>
    %491 = arith.addf %484, %490 : vector<14x80xf32>
    %492 = vector.extract_strided_slice %485 {offsets = [0, 1], sizes = [14, 16], strides = [1, 1]} : vector<14x18xf32> to vector<14x16xf32>
    %493 = tpu.concatenate %492, %492, %492, %492, %492 in 1 : vector<14x16xf32>, vector<14x16xf32>, vector<14x16xf32>, vector<14x16xf32>, vector<14x16xf32> -> vector<14x80xf32>
    %c43_100 = arith.constant 43 : index
    %c0_101 = arith.constant 0 : index
    %494 = vector.load %arg3[%c43_100, %c0_101] : memref<75x80xf32, #tpu.memory_space<vmem>>, vector<1x80xf32>
    %495 = vector.broadcast %494 : vector<1x80xf32> to vector<14x80xf32>
    %496 = arith.mulf %495, %493 : vector<14x80xf32>
    %497 = arith.addf %491, %496 : vector<14x80xf32>
    %498 = vector.extract_strided_slice %485 {offsets = [0, 2], sizes = [14, 16], strides = [1, 1]} : vector<14x18xf32> to vector<14x16xf32>
    %499 = tpu.concatenate %498, %498, %498, %498, %498 in 1 : vector<14x16xf32>, vector<14x16xf32>, vector<14x16xf32>, vector<14x16xf32>, vector<14x16xf32> -> vector<14x80xf32>
    %c44_102 = arith.constant 44 : index
    %c0_103 = arith.constant 0 : index
    %500 = vector.load %arg3[%c44_102, %c0_103] : memref<75x80xf32, #tpu.memory_space<vmem>>, vector<1x80xf32>
    %501 = vector.broadcast %500 : vector<1x80xf32> to vector<14x80xf32>
    %502 = arith.mulf %501, %499 : vector<14x80xf32>
    %503 = arith.addf %497, %502 : vector<14x80xf32>
    %504 = vector.extract_strided_slice %213 {offsets = [0, 0], sizes = [14, 18], strides = [1, 1]} : vector<18x18xf32> to vector<14x18xf32>
    %505 = vector.extract_strided_slice %504 {offsets = [0, 0], sizes = [14, 16], strides = [1, 1]} : vector<14x18xf32> to vector<14x16xf32>
    %506 = tpu.concatenate %505, %505, %505, %505, %505 in 1 : vector<14x16xf32>, vector<14x16xf32>, vector<14x16xf32>, vector<14x16xf32>, vector<14x16xf32> -> vector<14x80xf32>
    %c45 = arith.constant 45 : index
    %c0_104 = arith.constant 0 : index
    %507 = vector.load %arg3[%c45, %c0_104] : memref<75x80xf32, #tpu.memory_space<vmem>>, vector<1x80xf32>
    %508 = vector.broadcast %507 : vector<1x80xf32> to vector<14x80xf32>
    %509 = arith.mulf %508, %506 : vector<14x80xf32>
    %510 = arith.addf %503, %509 : vector<14x80xf32>
    %511 = vector.extract_strided_slice %504 {offsets = [0, 1], sizes = [14, 16], strides = [1, 1]} : vector<14x18xf32> to vector<14x16xf32>
    %512 = tpu.concatenate %511, %511, %511, %511, %511 in 1 : vector<14x16xf32>, vector<14x16xf32>, vector<14x16xf32>, vector<14x16xf32>, vector<14x16xf32> -> vector<14x80xf32>
    %c46 = arith.constant 46 : index
    %c0_105 = arith.constant 0 : index
    %513 = vector.load %arg3[%c46, %c0_105] : memref<75x80xf32, #tpu.memory_space<vmem>>, vector<1x80xf32>
    %514 = vector.broadcast %513 : vector<1x80xf32> to vector<14x80xf32>
    %515 = arith.mulf %514, %512 : vector<14x80xf32>
    %516 = arith.addf %510, %515 : vector<14x80xf32>
    %517 = vector.extract_strided_slice %504 {offsets = [0, 2], sizes = [14, 16], strides = [1, 1]} : vector<14x18xf32> to vector<14x16xf32>
    %518 = tpu.concatenate %517, %517, %517, %517, %517 in 1 : vector<14x16xf32>, vector<14x16xf32>, vector<14x16xf32>, vector<14x16xf32>, vector<14x16xf32> -> vector<14x80xf32>
    %c47 = arith.constant 47 : index
    %c0_106 = arith.constant 0 : index
    %519 = vector.load %arg3[%c47, %c0_106] : memref<75x80xf32, #tpu.memory_space<vmem>>, vector<1x80xf32>
    %520 = vector.broadcast %519 : vector<1x80xf32> to vector<14x80xf32>
    %521 = arith.mulf %520, %518 : vector<14x80xf32>
    %522 = arith.addf %516, %521 : vector<14x80xf32>
    %523 = vector.extract_strided_slice %213 {offsets = [1, 0], sizes = [14, 18], strides = [1, 1]} : vector<18x18xf32> to vector<14x18xf32>
    %524 = vector.extract_strided_slice %523 {offsets = [0, 0], sizes = [14, 16], strides = [1, 1]} : vector<14x18xf32> to vector<14x16xf32>
    %525 = tpu.concatenate %524, %524, %524, %524, %524 in 1 : vector<14x16xf32>, vector<14x16xf32>, vector<14x16xf32>, vector<14x16xf32>, vector<14x16xf32> -> vector<14x80xf32>
    %c48 = arith.constant 48 : index
    %c0_107 = arith.constant 0 : index
    %526 = vector.load %arg3[%c48, %c0_107] : memref<75x80xf32, #tpu.memory_space<vmem>>, vector<1x80xf32>
    %527 = vector.broadcast %526 : vector<1x80xf32> to vector<14x80xf32>
    %528 = arith.mulf %527, %525 : vector<14x80xf32>
    %529 = arith.addf %522, %528 : vector<14x80xf32>
    %530 = vector.extract_strided_slice %523 {offsets = [0, 1], sizes = [14, 16], strides = [1, 1]} : vector<14x18xf32> to vector<14x16xf32>
    %531 = tpu.concatenate %530, %530, %530, %530, %530 in 1 : vector<14x16xf32>, vector<14x16xf32>, vector<14x16xf32>, vector<14x16xf32>, vector<14x16xf32> -> vector<14x80xf32>
    %c49 = arith.constant 49 : index
    %c0_108 = arith.constant 0 : index
    %532 = vector.load %arg3[%c49, %c0_108] : memref<75x80xf32, #tpu.memory_space<vmem>>, vector<1x80xf32>
    %533 = vector.broadcast %532 : vector<1x80xf32> to vector<14x80xf32>
    %534 = arith.mulf %533, %531 : vector<14x80xf32>
    %535 = arith.addf %529, %534 : vector<14x80xf32>
    %536 = vector.extract_strided_slice %523 {offsets = [0, 2], sizes = [14, 16], strides = [1, 1]} : vector<14x18xf32> to vector<14x16xf32>
    %537 = tpu.concatenate %536, %536, %536, %536, %536 in 1 : vector<14x16xf32>, vector<14x16xf32>, vector<14x16xf32>, vector<14x16xf32>, vector<14x16xf32> -> vector<14x80xf32>
    %c50 = arith.constant 50 : index
    %c0_109 = arith.constant 0 : index
    %538 = vector.load %arg3[%c50, %c0_109] : memref<75x80xf32, #tpu.memory_space<vmem>>, vector<1x80xf32>
    %539 = vector.broadcast %538 : vector<1x80xf32> to vector<14x80xf32>
    %540 = arith.mulf %539, %537 : vector<14x80xf32>
    %541 = arith.addf %535, %540 : vector<14x80xf32>
    %542 = vector.extract_strided_slice %213 {offsets = [2, 0], sizes = [14, 18], strides = [1, 1]} : vector<18x18xf32> to vector<14x18xf32>
    %543 = vector.extract_strided_slice %542 {offsets = [0, 0], sizes = [14, 16], strides = [1, 1]} : vector<14x18xf32> to vector<14x16xf32>
    %544 = tpu.concatenate %543, %543, %543, %543, %543 in 1 : vector<14x16xf32>, vector<14x16xf32>, vector<14x16xf32>, vector<14x16xf32>, vector<14x16xf32> -> vector<14x80xf32>
    %c51 = arith.constant 51 : index
    %c0_110 = arith.constant 0 : index
    %545 = vector.load %arg3[%c51, %c0_110] : memref<75x80xf32, #tpu.memory_space<vmem>>, vector<1x80xf32>
    %546 = vector.broadcast %545 : vector<1x80xf32> to vector<14x80xf32>
    %547 = arith.mulf %546, %544 : vector<14x80xf32>
    %548 = arith.addf %541, %547 : vector<14x80xf32>
    %549 = vector.extract_strided_slice %542 {offsets = [0, 1], sizes = [14, 16], strides = [1, 1]} : vector<14x18xf32> to vector<14x16xf32>
    %550 = tpu.concatenate %549, %549, %549, %549, %549 in 1 : vector<14x16xf32>, vector<14x16xf32>, vector<14x16xf32>, vector<14x16xf32>, vector<14x16xf32> -> vector<14x80xf32>
    %c52 = arith.constant 52 : index
    %c0_111 = arith.constant 0 : index
    %551 = vector.load %arg3[%c52, %c0_111] : memref<75x80xf32, #tpu.memory_space<vmem>>, vector<1x80xf32>
    %552 = vector.broadcast %551 : vector<1x80xf32> to vector<14x80xf32>
    %553 = arith.mulf %552, %550 : vector<14x80xf32>
    %554 = arith.addf %548, %553 : vector<14x80xf32>
    %555 = vector.extract_strided_slice %542 {offsets = [0, 2], sizes = [14, 16], strides = [1, 1]} : vector<14x18xf32> to vector<14x16xf32>
    %556 = tpu.concatenate %555, %555, %555, %555, %555 in 1 : vector<14x16xf32>, vector<14x16xf32>, vector<14x16xf32>, vector<14x16xf32>, vector<14x16xf32> -> vector<14x80xf32>
    %c53 = arith.constant 53 : index
    %c0_112 = arith.constant 0 : index
    %557 = vector.load %arg3[%c53, %c0_112] : memref<75x80xf32, #tpu.memory_space<vmem>>, vector<1x80xf32>
    %558 = vector.broadcast %557 : vector<1x80xf32> to vector<14x80xf32>
    %559 = arith.mulf %558, %556 : vector<14x80xf32>
    %560 = arith.addf %554, %559 : vector<14x80xf32>
    %561 = vector.extract_strided_slice %213 {offsets = [3, 0], sizes = [14, 18], strides = [1, 1]} : vector<18x18xf32> to vector<14x18xf32>
    %562 = vector.extract_strided_slice %561 {offsets = [0, 0], sizes = [14, 16], strides = [1, 1]} : vector<14x18xf32> to vector<14x16xf32>
    %563 = tpu.concatenate %562, %562, %562, %562, %562 in 1 : vector<14x16xf32>, vector<14x16xf32>, vector<14x16xf32>, vector<14x16xf32>, vector<14x16xf32> -> vector<14x80xf32>
    %c54 = arith.constant 54 : index
    %c0_113 = arith.constant 0 : index
    %564 = vector.load %arg3[%c54, %c0_113] : memref<75x80xf32, #tpu.memory_space<vmem>>, vector<1x80xf32>
    %565 = vector.broadcast %564 : vector<1x80xf32> to vector<14x80xf32>
    %566 = arith.mulf %565, %563 : vector<14x80xf32>
    %567 = arith.addf %560, %566 : vector<14x80xf32>
    %568 = vector.extract_strided_slice %561 {offsets = [0, 1], sizes = [14, 16], strides = [1, 1]} : vector<14x18xf32> to vector<14x16xf32>
    %569 = tpu.concatenate %568, %568, %568, %568, %568 in 1 : vector<14x16xf32>, vector<14x16xf32>, vector<14x16xf32>, vector<14x16xf32>, vector<14x16xf32> -> vector<14x80xf32>
    %c55 = arith.constant 55 : index
    %c0_114 = arith.constant 0 : index
    %570 = vector.load %arg3[%c55, %c0_114] : memref<75x80xf32, #tpu.memory_space<vmem>>, vector<1x80xf32>
    %571 = vector.broadcast %570 : vector<1x80xf32> to vector<14x80xf32>
    %572 = arith.mulf %571, %569 : vector<14x80xf32>
    %573 = arith.addf %567, %572 : vector<14x80xf32>
    %574 = vector.extract_strided_slice %561 {offsets = [0, 2], sizes = [14, 16], strides = [1, 1]} : vector<14x18xf32> to vector<14x16xf32>
    %575 = tpu.concatenate %574, %574, %574, %574, %574 in 1 : vector<14x16xf32>, vector<14x16xf32>, vector<14x16xf32>, vector<14x16xf32>, vector<14x16xf32> -> vector<14x80xf32>
    %c56 = arith.constant 56 : index
    %c0_115 = arith.constant 0 : index
    %576 = vector.load %arg3[%c56, %c0_115] : memref<75x80xf32, #tpu.memory_space<vmem>>, vector<1x80xf32>
    %577 = vector.broadcast %576 : vector<1x80xf32> to vector<14x80xf32>
    %578 = arith.mulf %577, %575 : vector<14x80xf32>
    %579 = arith.addf %573, %578 : vector<14x80xf32>
    %580 = vector.extract_strided_slice %213 {offsets = [4, 0], sizes = [14, 18], strides = [1, 1]} : vector<18x18xf32> to vector<14x18xf32>
    %581 = vector.extract_strided_slice %580 {offsets = [0, 0], sizes = [14, 16], strides = [1, 1]} : vector<14x18xf32> to vector<14x16xf32>
    %582 = tpu.concatenate %581, %581, %581, %581, %581 in 1 : vector<14x16xf32>, vector<14x16xf32>, vector<14x16xf32>, vector<14x16xf32>, vector<14x16xf32> -> vector<14x80xf32>
    %c57 = arith.constant 57 : index
    %c0_116 = arith.constant 0 : index
    %583 = vector.load %arg3[%c57, %c0_116] : memref<75x80xf32, #tpu.memory_space<vmem>>, vector<1x80xf32>
    %584 = vector.broadcast %583 : vector<1x80xf32> to vector<14x80xf32>
    %585 = arith.mulf %584, %582 : vector<14x80xf32>
    %586 = arith.addf %579, %585 : vector<14x80xf32>
    %587 = vector.extract_strided_slice %580 {offsets = [0, 1], sizes = [14, 16], strides = [1, 1]} : vector<14x18xf32> to vector<14x16xf32>
    %588 = tpu.concatenate %587, %587, %587, %587, %587 in 1 : vector<14x16xf32>, vector<14x16xf32>, vector<14x16xf32>, vector<14x16xf32>, vector<14x16xf32> -> vector<14x80xf32>
    %c58 = arith.constant 58 : index
    %c0_117 = arith.constant 0 : index
    %589 = vector.load %arg3[%c58, %c0_117] : memref<75x80xf32, #tpu.memory_space<vmem>>, vector<1x80xf32>
    %590 = vector.broadcast %589 : vector<1x80xf32> to vector<14x80xf32>
    %591 = arith.mulf %590, %588 : vector<14x80xf32>
    %592 = arith.addf %586, %591 : vector<14x80xf32>
    %593 = vector.extract_strided_slice %580 {offsets = [0, 2], sizes = [14, 16], strides = [1, 1]} : vector<14x18xf32> to vector<14x16xf32>
    %594 = tpu.concatenate %593, %593, %593, %593, %593 in 1 : vector<14x16xf32>, vector<14x16xf32>, vector<14x16xf32>, vector<14x16xf32>, vector<14x16xf32> -> vector<14x80xf32>
    %c59 = arith.constant 59 : index
    %c0_118 = arith.constant 0 : index
    %595 = vector.load %arg3[%c59, %c0_118] : memref<75x80xf32, #tpu.memory_space<vmem>>, vector<1x80xf32>
    %596 = vector.broadcast %595 : vector<1x80xf32> to vector<14x80xf32>
    %597 = arith.mulf %596, %594 : vector<14x80xf32>
    %598 = arith.addf %592, %597 : vector<14x80xf32>
    %599 = vector.extract_strided_slice %215 {offsets = [0, 0], sizes = [14, 18], strides = [1, 1]} : vector<18x18xf32> to vector<14x18xf32>
    %600 = vector.extract_strided_slice %599 {offsets = [0, 0], sizes = [14, 16], strides = [1, 1]} : vector<14x18xf32> to vector<14x16xf32>
    %601 = tpu.concatenate %600, %600, %600, %600, %600 in 1 : vector<14x16xf32>, vector<14x16xf32>, vector<14x16xf32>, vector<14x16xf32>, vector<14x16xf32> -> vector<14x80xf32>
    %c60 = arith.constant 60 : index
    %c0_119 = arith.constant 0 : index
    %602 = vector.load %arg3[%c60, %c0_119] : memref<75x80xf32, #tpu.memory_space<vmem>>, vector<1x80xf32>
    %603 = vector.broadcast %602 : vector<1x80xf32> to vector<14x80xf32>
    %604 = arith.mulf %603, %601 : vector<14x80xf32>
    %605 = arith.addf %598, %604 : vector<14x80xf32>
    %606 = vector.extract_strided_slice %599 {offsets = [0, 1], sizes = [14, 16], strides = [1, 1]} : vector<14x18xf32> to vector<14x16xf32>
    %607 = tpu.concatenate %606, %606, %606, %606, %606 in 1 : vector<14x16xf32>, vector<14x16xf32>, vector<14x16xf32>, vector<14x16xf32>, vector<14x16xf32> -> vector<14x80xf32>
    %c61 = arith.constant 61 : index
    %c0_120 = arith.constant 0 : index
    %608 = vector.load %arg3[%c61, %c0_120] : memref<75x80xf32, #tpu.memory_space<vmem>>, vector<1x80xf32>
    %609 = vector.broadcast %608 : vector<1x80xf32> to vector<14x80xf32>
    %610 = arith.mulf %609, %607 : vector<14x80xf32>
    %611 = arith.addf %605, %610 : vector<14x80xf32>
    %612 = vector.extract_strided_slice %599 {offsets = [0, 2], sizes = [14, 16], strides = [1, 1]} : vector<14x18xf32> to vector<14x16xf32>
    %613 = tpu.concatenate %612, %612, %612, %612, %612 in 1 : vector<14x16xf32>, vector<14x16xf32>, vector<14x16xf32>, vector<14x16xf32>, vector<14x16xf32> -> vector<14x80xf32>
    %c62 = arith.constant 62 : index
    %c0_121 = arith.constant 0 : index
    %614 = vector.load %arg3[%c62, %c0_121] : memref<75x80xf32, #tpu.memory_space<vmem>>, vector<1x80xf32>
    %615 = vector.broadcast %614 : vector<1x80xf32> to vector<14x80xf32>
    %616 = arith.mulf %615, %613 : vector<14x80xf32>
    %617 = arith.addf %611, %616 : vector<14x80xf32>
    %618 = vector.extract_strided_slice %215 {offsets = [1, 0], sizes = [14, 18], strides = [1, 1]} : vector<18x18xf32> to vector<14x18xf32>
    %619 = vector.extract_strided_slice %618 {offsets = [0, 0], sizes = [14, 16], strides = [1, 1]} : vector<14x18xf32> to vector<14x16xf32>
    %620 = tpu.concatenate %619, %619, %619, %619, %619 in 1 : vector<14x16xf32>, vector<14x16xf32>, vector<14x16xf32>, vector<14x16xf32>, vector<14x16xf32> -> vector<14x80xf32>
    %c63 = arith.constant 63 : index
    %c0_122 = arith.constant 0 : index
    %621 = vector.load %arg3[%c63, %c0_122] : memref<75x80xf32, #tpu.memory_space<vmem>>, vector<1x80xf32>
    %622 = vector.broadcast %621 : vector<1x80xf32> to vector<14x80xf32>
    %623 = arith.mulf %622, %620 : vector<14x80xf32>
    %624 = arith.addf %617, %623 : vector<14x80xf32>
    %625 = vector.extract_strided_slice %618 {offsets = [0, 1], sizes = [14, 16], strides = [1, 1]} : vector<14x18xf32> to vector<14x16xf32>
    %626 = tpu.concatenate %625, %625, %625, %625, %625 in 1 : vector<14x16xf32>, vector<14x16xf32>, vector<14x16xf32>, vector<14x16xf32>, vector<14x16xf32> -> vector<14x80xf32>
    %c64 = arith.constant 64 : index
    %c0_123 = arith.constant 0 : index
    %627 = vector.load %arg3[%c64, %c0_123] : memref<75x80xf32, #tpu.memory_space<vmem>>, vector<1x80xf32>
    %628 = vector.broadcast %627 : vector<1x80xf32> to vector<14x80xf32>
    %629 = arith.mulf %628, %626 : vector<14x80xf32>
    %630 = arith.addf %624, %629 : vector<14x80xf32>
    %631 = vector.extract_strided_slice %618 {offsets = [0, 2], sizes = [14, 16], strides = [1, 1]} : vector<14x18xf32> to vector<14x16xf32>
    %632 = tpu.concatenate %631, %631, %631, %631, %631 in 1 : vector<14x16xf32>, vector<14x16xf32>, vector<14x16xf32>, vector<14x16xf32>, vector<14x16xf32> -> vector<14x80xf32>
    %c65 = arith.constant 65 : index
    %c0_124 = arith.constant 0 : index
    %633 = vector.load %arg3[%c65, %c0_124] : memref<75x80xf32, #tpu.memory_space<vmem>>, vector<1x80xf32>
    %634 = vector.broadcast %633 : vector<1x80xf32> to vector<14x80xf32>
    %635 = arith.mulf %634, %632 : vector<14x80xf32>
    %636 = arith.addf %630, %635 : vector<14x80xf32>
    %637 = vector.extract_strided_slice %215 {offsets = [2, 0], sizes = [14, 18], strides = [1, 1]} : vector<18x18xf32> to vector<14x18xf32>
    %638 = vector.extract_strided_slice %637 {offsets = [0, 0], sizes = [14, 16], strides = [1, 1]} : vector<14x18xf32> to vector<14x16xf32>
    %639 = tpu.concatenate %638, %638, %638, %638, %638 in 1 : vector<14x16xf32>, vector<14x16xf32>, vector<14x16xf32>, vector<14x16xf32>, vector<14x16xf32> -> vector<14x80xf32>
    %c66 = arith.constant 66 : index
    %c0_125 = arith.constant 0 : index
    %640 = vector.load %arg3[%c66, %c0_125] : memref<75x80xf32, #tpu.memory_space<vmem>>, vector<1x80xf32>
    %641 = vector.broadcast %640 : vector<1x80xf32> to vector<14x80xf32>
    %642 = arith.mulf %641, %639 : vector<14x80xf32>
    %643 = arith.addf %636, %642 : vector<14x80xf32>
    %644 = vector.extract_strided_slice %637 {offsets = [0, 1], sizes = [14, 16], strides = [1, 1]} : vector<14x18xf32> to vector<14x16xf32>
    %645 = tpu.concatenate %644, %644, %644, %644, %644 in 1 : vector<14x16xf32>, vector<14x16xf32>, vector<14x16xf32>, vector<14x16xf32>, vector<14x16xf32> -> vector<14x80xf32>
    %c67 = arith.constant 67 : index
    %c0_126 = arith.constant 0 : index
    %646 = vector.load %arg3[%c67, %c0_126] : memref<75x80xf32, #tpu.memory_space<vmem>>, vector<1x80xf32>
    %647 = vector.broadcast %646 : vector<1x80xf32> to vector<14x80xf32>
    %648 = arith.mulf %647, %645 : vector<14x80xf32>
    %649 = arith.addf %643, %648 : vector<14x80xf32>
    %650 = vector.extract_strided_slice %637 {offsets = [0, 2], sizes = [14, 16], strides = [1, 1]} : vector<14x18xf32> to vector<14x16xf32>
    %651 = tpu.concatenate %650, %650, %650, %650, %650 in 1 : vector<14x16xf32>, vector<14x16xf32>, vector<14x16xf32>, vector<14x16xf32>, vector<14x16xf32> -> vector<14x80xf32>
    %c68 = arith.constant 68 : index
    %c0_127 = arith.constant 0 : index
    %652 = vector.load %arg3[%c68, %c0_127] : memref<75x80xf32, #tpu.memory_space<vmem>>, vector<1x80xf32>
    %653 = vector.broadcast %652 : vector<1x80xf32> to vector<14x80xf32>
    %654 = arith.mulf %653, %651 : vector<14x80xf32>
    %655 = arith.addf %649, %654 : vector<14x80xf32>
    %656 = vector.extract_strided_slice %215 {offsets = [3, 0], sizes = [14, 18], strides = [1, 1]} : vector<18x18xf32> to vector<14x18xf32>
    %657 = vector.extract_strided_slice %656 {offsets = [0, 0], sizes = [14, 16], strides = [1, 1]} : vector<14x18xf32> to vector<14x16xf32>
    %658 = tpu.concatenate %657, %657, %657, %657, %657 in 1 : vector<14x16xf32>, vector<14x16xf32>, vector<14x16xf32>, vector<14x16xf32>, vector<14x16xf32> -> vector<14x80xf32>
    %c69 = arith.constant 69 : index
    %c0_128 = arith.constant 0 : index
    %659 = vector.load %arg3[%c69, %c0_128] : memref<75x80xf32, #tpu.memory_space<vmem>>, vector<1x80xf32>
    %660 = vector.broadcast %659 : vector<1x80xf32> to vector<14x80xf32>
    %661 = arith.mulf %660, %658 : vector<14x80xf32>
    %662 = arith.addf %655, %661 : vector<14x80xf32>
    %663 = vector.extract_strided_slice %656 {offsets = [0, 1], sizes = [14, 16], strides = [1, 1]} : vector<14x18xf32> to vector<14x16xf32>
    %664 = tpu.concatenate %663, %663, %663, %663, %663 in 1 : vector<14x16xf32>, vector<14x16xf32>, vector<14x16xf32>, vector<14x16xf32>, vector<14x16xf32> -> vector<14x80xf32>
    %c70 = arith.constant 70 : index
    %c0_129 = arith.constant 0 : index
    %665 = vector.load %arg3[%c70, %c0_129] : memref<75x80xf32, #tpu.memory_space<vmem>>, vector<1x80xf32>
    %666 = vector.broadcast %665 : vector<1x80xf32> to vector<14x80xf32>
    %667 = arith.mulf %666, %664 : vector<14x80xf32>
    %668 = arith.addf %662, %667 : vector<14x80xf32>
    %669 = vector.extract_strided_slice %656 {offsets = [0, 2], sizes = [14, 16], strides = [1, 1]} : vector<14x18xf32> to vector<14x16xf32>
    %670 = tpu.concatenate %669, %669, %669, %669, %669 in 1 : vector<14x16xf32>, vector<14x16xf32>, vector<14x16xf32>, vector<14x16xf32>, vector<14x16xf32> -> vector<14x80xf32>
    %c71 = arith.constant 71 : index
    %c0_130 = arith.constant 0 : index
    %671 = vector.load %arg3[%c71, %c0_130] : memref<75x80xf32, #tpu.memory_space<vmem>>, vector<1x80xf32>
    %672 = vector.broadcast %671 : vector<1x80xf32> to vector<14x80xf32>
    %673 = arith.mulf %672, %670 : vector<14x80xf32>
    %674 = arith.addf %668, %673 : vector<14x80xf32>
    %675 = vector.extract_strided_slice %215 {offsets = [4, 0], sizes = [14, 18], strides = [1, 1]} : vector<18x18xf32> to vector<14x18xf32>
    %676 = vector.extract_strided_slice %675 {offsets = [0, 0], sizes = [14, 16], strides = [1, 1]} : vector<14x18xf32> to vector<14x16xf32>
    %677 = tpu.concatenate %676, %676, %676, %676, %676 in 1 : vector<14x16xf32>, vector<14x16xf32>, vector<14x16xf32>, vector<14x16xf32>, vector<14x16xf32> -> vector<14x80xf32>
    %c72 = arith.constant 72 : index
    %c0_131 = arith.constant 0 : index
    %678 = vector.load %arg3[%c72, %c0_131] : memref<75x80xf32, #tpu.memory_space<vmem>>, vector<1x80xf32>
    %679 = vector.broadcast %678 : vector<1x80xf32> to vector<14x80xf32>
    %680 = arith.mulf %679, %677 : vector<14x80xf32>
    %681 = arith.addf %674, %680 : vector<14x80xf32>
    %682 = vector.extract_strided_slice %675 {offsets = [0, 1], sizes = [14, 16], strides = [1, 1]} : vector<14x18xf32> to vector<14x16xf32>
    %683 = tpu.concatenate %682, %682, %682, %682, %682 in 1 : vector<14x16xf32>, vector<14x16xf32>, vector<14x16xf32>, vector<14x16xf32>, vector<14x16xf32> -> vector<14x80xf32>
    %c73 = arith.constant 73 : index
    %c0_132 = arith.constant 0 : index
    %684 = vector.load %arg3[%c73, %c0_132] : memref<75x80xf32, #tpu.memory_space<vmem>>, vector<1x80xf32>
    %685 = vector.broadcast %684 : vector<1x80xf32> to vector<14x80xf32>
    %686 = arith.mulf %685, %683 : vector<14x80xf32>
    %687 = arith.addf %681, %686 : vector<14x80xf32>
    %688 = vector.extract_strided_slice %675 {offsets = [0, 2], sizes = [14, 16], strides = [1, 1]} : vector<14x18xf32> to vector<14x16xf32>
    %689 = tpu.concatenate %688, %688, %688, %688, %688 in 1 : vector<14x16xf32>, vector<14x16xf32>, vector<14x16xf32>, vector<14x16xf32>, vector<14x16xf32> -> vector<14x80xf32>
    %c74 = arith.constant 74 : index
    %c0_133 = arith.constant 0 : index
    %690 = vector.load %arg3[%c74, %c0_133] : memref<75x80xf32, #tpu.memory_space<vmem>>, vector<1x80xf32>
    %691 = vector.broadcast %690 : vector<1x80xf32> to vector<14x80xf32>
    %692 = arith.mulf %691, %689 : vector<14x80xf32>
    %693 = arith.addf %687, %692 : vector<14x80xf32>
    %c0_134 = arith.constant 0 : index
    %c0_135 = arith.constant 0 : index
    %694 = vector.load %arg5[%c0_134, %c0_135] : memref<14x80xf32, #tpu.memory_space<vmem>>, vector<14x80xf32>
    tpu.vector_store %arg5[%c0_134, %c0_135], %693 {strides = array<i32>} : memref<14x80xf32, #tpu.memory_space<vmem>>, vector<14x80xf32>,
    return
  }
}

</mosaic_0001>

<llo_original>
// kernel: tpu_custom_call.1
$region0: #{tpu_custom_call.1}
  #allocation0 [shape = 'u32[]', space=smem, size = 0x4, offset = 0x4, fixed_abs, tag = 'smem constant byte address 0x4 - core index']
  #allocation1 [shape = 'u32[144,128]{1,0:T(1,128)}', space=vmem, size = 0x12000, scoped, tag = 'internal scratch']
  %s0 = inlined_call_operand.vmem [shape: f32[1,20,20], index: 0, kind: input, shape index: {}]
  %s1 = inlined_call_operand.vmem [shape: f32[45], index: 1, kind: input, shape index: {}]
  %s2 = inlined_call_operand.vmem [shape: f32[5], index: 2, kind: input, shape index: {}]
  %s3 = inlined_call_operand.hbm [shape: f32[75,80], index: 3, kind: input, shape index: {}]
  %s4 = inlined_call_operand.vmem [shape: f32[1,80], index: 4, kind: input, shape index: {}]
  %s5 = inlined_call_operand.hbm [shape: f32[14,80], index: 5, kind: output, shape index: {}]
  %s6 = sld [smem:[#allocation0]]
  $region42: #{tpu_custom_call.1} parent=0
    _
  %s8 = ssub.s32 1, %s6
  %s9 = scalar_select 0, %s8, %s6
  $region1: #{tpu_custom_call.1} parent=0
    #allocation2 [shape = 'u8[512]{0}', space=smem, size = 0x200, scoped, tag = 'input window, operand 1, single buffered']
    #allocation3 [shape = 's32[1]{0}', space=sflag, size = 0x4, scoped, tag = 'scoped memory for tpu_custom_call.1']
    #allocation4 [shape = 's32[1]{0}', space=sflag, size = 0x4, scoped, tag = 'scoped memory for tpu_custom_call.1']
    #allocation5 [shape = 's32[1]{0}', space=sflag, size = 0x4, scoped, tag = 'scoped memory for tpu_custom_call.1']
    #allocation6 [shape = 'u8[512]{0}', space=smem, size = 0x200, scoped, tag = 'input window, operand 2, single buffered']
    #allocation7 [shape = 's32[1]{0}', space=sflag, size = 0x4, scoped, tag = 'scoped memory for tpu_custom_call.1']
    #allocation8 [shape = 'u8[40960]{0}', space=vmem, size = 0xa000, scoped, tag = 'input window, operand 3, single buffered']
    #allocation9 [shape = 'u8[8192]{0}', space=vmem, size = 0x2000, scoped, tag = 'output window, operand 0, single buffered']
    %10 = vsyncpa [#allocation5], 0
    %11 = vsyncpa [#allocation7], 0
    %12 = vsyncpa [#allocation3], 0
    %13 = vsyncpa [#allocation4], 0
    // Predicated region
    $region2: #{tpu_custom_call.1} parent=1 // pred_check
      _
    $region3: #{tpu_custom_call.1} parent=1 // pred_check_branch
      %15 = sbr.rel (0) target = $region5
    $region4: #{tpu_custom_call.1} parent=1 // pred_region
      _
    $region5: #{tpu_custom_call.1} parent=1 // pred_fallthru
      _
    // Predicated region
    $region6: #{tpu_custom_call.1} parent=1 // pred_check
      _
    $region7: #{tpu_custom_call.1} parent=1 // pred_check_branch
      %17 = sbr.rel (0) target = $region9
    $region8: #{tpu_custom_call.1} parent=1 // pred_region
      %s19 = ssub.s32 16, 16
      %20 = vsyncadd [#allocation5], %s19
      %s22 = sshll.u32 %s1, 4
      %s23 = int_to_ptr.vmem [resolvable:$true] %s22
      %25 = dma.vmem_to_smem %s23, 16, [#allocation2], [#allocation5]
    $region9: #{tpu_custom_call.1} parent=1 // pred_fallthru
      _
    // Predicated region
    $region10: #{tpu_custom_call.1} parent=1 // pred_check
      _
    $region11: #{tpu_custom_call.1} parent=1 // pred_check_branch
      %27 = sbr.rel (0) target = $region13
    $region12: #{tpu_custom_call.1} parent=1 // pred_region
      %s29 = ssub.s32 16, 16
      %30 = vsyncadd [#allocation7], %s29
      %s32 = sshll.u32 %s2, 4
      %s33 = int_to_ptr.vmem [resolvable:$true] %s32
      %35 = dma.vmem_to_smem %s33, 16, [#allocation6], [#allocation7]
    $region13: #{tpu_custom_call.1} parent=1 // pred_fallthru
      _
    // Predicated region
    $region14: #{tpu_custom_call.1} parent=1 // pred_check
      _
    $region15: #{tpu_custom_call.1} parent=1 // pred_check_branch
      %37 = sbr.rel (0) target = $region17
    $region16: #{tpu_custom_call.1} parent=1 // pred_region
      %s39 = ssub.s32 1280, 1280
      %40 = vsyncadd [#allocation3], %s39
      %s41 = sshll.u32 [#allocation8], 4
      %s42 = int_to_ptr.vmem [resolvable:$true] %s41
      %47 = dma.hbm_to_vmem [thread:$0]  %s3, 1280, %s42, [#allocation3], 128, 128, 8
    $region17: #{tpu_custom_call.1} parent=1 // pred_fallthru
      _
    // Predicated region
    $region18: #{tpu_custom_call.1} parent=1 // pred_check
      _
    $region19: #{tpu_custom_call.1} parent=1 // pred_check_branch
      %49 = sbr.rel (0) target = $region21
    $region20: #{tpu_custom_call.1} parent=1 // pred_region
      _
    $region21: #{tpu_custom_call.1} parent=1 // pred_fallthru
      _
    // Predicated region
    $region22: #{tpu_custom_call.1} parent=1 // pred_check
      _
    $region23: #{tpu_custom_call.1} parent=1 // pred_check_branch
      %51 = sbr.rel (0) target = $region25
    $region24: #{tpu_custom_call.1} parent=1 // pred_region
      %52 = dma.done [#allocation5], 16
    $region25: #{tpu_custom_call.1} parent=1 // pred_fallthru
      _
    // Predicated region
    $region26: #{tpu_custom_call.1} parent=1 // pred_check
      _
    $region27: #{tpu_custom_call.1} parent=1 // pred_check_branch
      %54 = sbr.rel (0) target = $region29
    $region28: #{tpu_custom_call.1} parent=1 // pred_region
      %55 = dma.done [#allocation7], 16
    $region29: #{tpu_custom_call.1} parent=1 // pred_fallthru
      _
    // Predicated region
    $region30: #{tpu_custom_call.1} parent=1 // pred_check
      _
    $region31: #{tpu_custom_call.1} parent=1 // pred_check_branch
      %57 = sbr.rel (0) target = $region33
    $region32: #{tpu_custom_call.1} parent=1 // pred_region
      %58 = dma.done [#allocation3], 1280
    $region33: #{tpu_custom_call.1} parent=1 // pred_fallthru
      _
    %59 = sfence
    %v60 = vld [vmem:[%s0] sm:$0xff]
    %v61 = vld [vmem:[%s0 + $0x8] sm:$0xff]
    %v62 = vld [vmem:[%s0 + $0x10] sm:$0xf]
    %s63 = sld [smem:[#allocation6]]
    %v64 = vstv %s63
    %s65 = sld [smem:[#allocation6 + $0x1]]
    %v66 = vstv %s65
    %s67 = sld [smem:[#allocation6 + $0x2]]
    %v68 = vstv %s67
    %s69 = sld [smem:[#allocation6 + $0x3]]
    %v70 = vstv %s69
    %s71 = sld [smem:[#allocation6 + $0x4]]
    %v72 = vstv %s71
    %s73 = sld [smem:[#allocation2]]
    %v74 = vstv %s73
    %v75 = vmul.f32 %v74, %v60
    %v76 = vmul.f32 %v74, %v61
    %v77 = vmul.f32 %v74, %v62
    %v78 = vadd.f32 %v64, %v75
    %v79 = vadd.f32 %v64, %v76
    %v80 = vadd.f32 %v64, %v77
    %s81 = sld [smem:[#allocation2 + $0x9]]
    %v82 = vstv %s81
    %v83 = vmul.f32 %v82, %v60
    %v84 = vmul.f32 %v82, %v61
    %v85 = vmul.f32 %v82, %v62
    %v86 = vadd.f32 %v66, %v83
    %v87 = vadd.f32 %v66, %v84
    %v88 = vadd.f32 %v66, %v85
    %s89 = sld [smem:[#allocation2 + $0x12]]
    %v90 = vstv %s89
    %v91 = vmul.f32 %v90, %v60
    %v92 = vmul.f32 %v90, %v61
    %v93 = vmul.f32 %v90, %v62
    %v94 = vadd.f32 %v68, %v91
    %v95 = vadd.f32 %v68, %v92
    %v96 = vadd.f32 %v68, %v93
    %s97 = sld [smem:[#allocation2 + $0x1b]]
    %v98 = vstv %s97
    %v99 = vmul.f32 %v98, %v60
    %v100 = vmul.f32 %v98, %v61
    %v101 = vmul.f32 %v98, %v62
    %v102 = vadd.f32 %v70, %v99
    %v103 = vadd.f32 %v70, %v100
    %v104 = vadd.f32 %v70, %v101
    %s105 = sld [smem:[#allocation2 + $0x24]]
    %v106 = vstv %s105
    %v107 = vmul.f32 %v106, %v60
    %v108 = vmul.f32 %v106, %v61
    %v109 = vmul.f32 %v106, %v62
    %v110 = vadd.f32 %v72, %v107
    %v111 = vadd.f32 %v72, %v108
    %v112 = vadd.f32 %v72, %v109
    %s113 = sld [smem:[#allocation2 + $0x1]]
    %v114 = vstv %s113
    %v115 = vmul.f32 %v114, %v60
    %v116 = vmul.f32 %v114, %v61
    %v117 = vmul.f32 %v114, %v62
    %121 = vrot.lane.b32.xlu0 %v115, 127
    %v122 = vpop.permute.xlu0 %121
    %123 = vrot.lane.b32.xlu0 %v116, 127
    %v124 = vpop.permute.xlu0 %123
    %125 = vrot.lane.b32.xlu0 %v117, 127
    %v126 = vpop.permute.xlu0 %125
    %v130 = vadd.f32 %v78, %v122
    %v131 = vadd.f32 %v79, %v124
    %v132 = vadd.f32 %v80, %v126
    %s133 = sld [smem:[#allocation2 + $0xa]]
    %v134 = vstv %s133
    %v135 = vmul.f32 %v134, %v60
    %v136 = vmul.f32 %v134, %v61
    %v137 = vmul.f32 %v134, %v62
    %141 = vrot.lane.b32.xlu0 %v135, 127
    %v142 = vpop.permute.xlu0 %141
    %143 = vrot.lane.b32.xlu0 %v136, 127
    %v144 = vpop.permute.xlu0 %143
    %145 = vrot.lane.b32.xlu0 %v137, 127
    %v146 = vpop.permute.xlu0 %145
    %v150 = vadd.f32 %v86, %v142
    %v151 = vadd.f32 %v87, %v144
    %v152 = vadd.f32 %v88, %v146
    %s153 = sld [smem:[#allocation2 + $0x13]]
    %v154 = vstv %s153
    %v155 = vmul.f32 %v154, %v60
    %v156 = vmul.f32 %v154, %v61
    %v157 = vmul.f32 %v154, %v62
    %161 = vrot.lane.b32.xlu0 %v155, 127
    %v162 = vpop.permute.xlu0 %161
    %163 = vrot.lane.b32.xlu0 %v156, 127
    %v164 = vpop.permute.xlu0 %163
    %165 = vrot.lane.b32.xlu0 %v157, 127
    %v166 = vpop.permute.xlu0 %165
    %v170 = vadd.f32 %v94, %v162
    %v171 = vadd.f32 %v95, %v164
    %v172 = vadd.f32 %v96, %v166
    %s173 = sld [smem:[#allocation2 + $0x1c]]
    %v174 = vstv %s173
    %v175 = vmul.f32 %v174, %v60
    %v176 = vmul.f32 %v174, %v61
    %v177 = vmul.f32 %v174, %v62
    %181 = vrot.lane.b32.xlu0 %v175, 127
    %v182 = vpop.permute.xlu0 %181
    %183 = vrot.lane.b32.xlu0 %v176, 127
    %v184 = vpop.permute.xlu0 %183
    %185 = vrot.lane.b32.xlu0 %v177, 127
    %v186 = vpop.permute.xlu0 %185
    %v190 = vadd.f32 %v102, %v182
    %v191 = vadd.f32 %v103, %v184
    %v192 = vadd.f32 %v104, %v186
    %s193 = sld [smem:[#allocation2 + $0x25]]
    %v194 = vstv %s193
    %v195 = vmul.f32 %v194, %v60
    %v196 = vmul.f32 %v194, %v61
    %v197 = vmul.f32 %v194, %v62
    %201 = vrot.lane.b32.xlu0 %v195, 127
    %v202 = vpop.permute.xlu0 %201
    %203 = vrot.lane.b32.xlu0 %v196, 127
    %v204 = vpop.permute.xlu0 %203
    %205 = vrot.lane.b32.xlu0 %v197, 127
    %v206 = vpop.permute.xlu0 %205
    %v210 = vadd.f32 %v110, %v202
    %v211 = vadd.f32 %v111, %v204
    %v212 = vadd.f32 %v112, %v206
    %s213 = sld [smem:[#allocation2 + $0x2]]
    %v214 = vstv %s213
    %v215 = vmul.f32 %v214, %v60
    %v216 = vmul.f32 %v214, %v61
    %v217 = vmul.f32 %v214, %v62
    %221 = vrot.lane.b32.xlu0 %v215, 126
    %v222 = vpop.permute.xlu0 %221
    %223 = vrot.lane.b32.xlu0 %v216, 126
    %v224 = vpop.permute.xlu0 %223
    %225 = vrot.lane.b32.xlu0 %v217, 126
    %v226 = vpop.permute.xlu0 %225
    %v230 = vadd.f32 %v130, %v222
    %v231 = vadd.f32 %v131, %v224
    %v232 = vadd.f32 %v132, %v226
    %s233 = sld [smem:[#allocation2 + $0xb]]
    %v234 = vstv %s233
    %v235 = vmul.f32 %v234, %v60
    %v236 = vmul.f32 %v234, %v61
    %v237 = vmul.f32 %v234, %v62
    %241 = vrot.lane.b32.xlu0 %v235, 126
    %v242 = vpop.permute.xlu0 %241
    %243 = vrot.lane.b32.xlu0 %v236, 126
    %v244 = vpop.permute.xlu0 %243
    %245 = vrot.lane.b32.xlu0 %v237, 126
    %v246 = vpop.permute.xlu0 %245
    %v250 = vadd.f32 %v150, %v242
    %v251 = vadd.f32 %v151, %v244
    %v252 = vadd.f32 %v152, %v246
    %s253 = sld [smem:[#allocation2 + $0x14]]
    %v254 = vstv %s253
    %v255 = vmul.f32 %v254, %v60
    %v256 = vmul.f32 %v254, %v61
    %v257 = vmul.f32 %v254, %v62
    %261 = vrot.lane.b32.xlu0 %v255, 126
    %v262 = vpop.permute.xlu0 %261
    %263 = vrot.lane.b32.xlu0 %v256, 126
    %v264 = vpop.permute.xlu0 %263
    %265 = vrot.lane.b32.xlu0 %v257, 126
    %v266 = vpop.permute.xlu0 %265
    %v270 = vadd.f32 %v170, %v262
    %v271 = vadd.f32 %v171, %v264
    %v272 = vadd.f32 %v172, %v266
    %s273 = sld [smem:[#allocation2 + $0x1d]]
    %v274 = vstv %s273
    %v275 = vmul.f32 %v274, %v60
    %v276 = vmul.f32 %v274, %v61
    %v277 = vmul.f32 %v274, %v62
    %281 = vrot.lane.b32.xlu0 %v275, 126
    %v282 = vpop.permute.xlu0 %281
    %283 = vrot.lane.b32.xlu0 %v276, 126
    %v284 = vpop.permute.xlu0 %283
    %285 = vrot.lane.b32.xlu0 %v277, 126
    %v286 = vpop.permute.xlu0 %285
    %v290 = vadd.f32 %v190, %v282
    %v291 = vadd.f32 %v191, %v284
    %v292 = vadd.f32 %v192, %v286
    %s293 = sld [smem:[#allocation2 + $0x26]]
    %v294 = vstv %s293
    %v295 = vmul.f32 %v294, %v60
    %v296 = vmul.f32 %v294, %v61
    %v297 = vmul.f32 %v294, %v62
    %301 = vrot.lane.b32.xlu0 %v295, 126
    %v302 = vpop.permute.xlu0 %301
    %303 = vrot.lane.b32.xlu0 %v296, 126
    %v304 = vpop.permute.xlu0 %303
    %305 = vrot.lane.b32.xlu0 %v297, 126
    %v306 = vpop.permute.xlu0 %305
    %v310 = vadd.f32 %v210, %v302
    %v311 = vadd.f32 %v211, %v304
    %v312 = vadd.f32 %v212, %v306
    %s313 = sld [smem:[#allocation2 + $0x3]]
    %v314 = vstv %s313
    %v315 = vmul.f32 %v314, %v60
    %v316 = vmul.f32 %v314, %v61
    %v317 = vmul.f32 %v314, %v62
    %vm321 = vcmask 1046528
    %v322 = vrot.slane %v315, 1
    %v323 = vrot.slane %v316, 1
    %v324 = vsel %vm321, %v322, %v323
    %v325 = vrot.slane %v317, 1
    %v326 = vsel %vm321, %v323, %v325
    %v330 = vadd.f32 %v230, %v324
    %v331 = vadd.f32 %v231, %v326
    %v332 = vadd.f32 %v232, %v325
    %s333 = sld [smem:[#allocation2 + $0xc]]
    %v334 = vstv %s333
    %v335 = vmul.f32 %v334, %v60
    %v336 = vmul.f32 %v334, %v61
    %v337 = vmul.f32 %v334, %v62
    %v341 = vrot.slane %v335, 1
    %v342 = vrot.slane %v336, 1
    %v343 = vsel %vm321, %v341, %v342
    %v344 = vrot.slane %v337, 1
    %v345 = vsel %vm321, %v342, %v344
    %v349 = vadd.f32 %v250, %v343
    %v350 = vadd.f32 %v251, %v345
    %v351 = vadd.f32 %v252, %v344
    %s352 = sld [smem:[#allocation2 + $0x15]]
    %v353 = vstv %s352
    %v354 = vmul.f32 %v353, %v60
    %v355 = vmul.f32 %v353, %v61
    %v356 = vmul.f32 %v353, %v62
    %v360 = vrot.slane %v354, 1
    %v361 = vrot.slane %v355, 1
    %v362 = vsel %vm321, %v360, %v361
    %v363 = vrot.slane %v356, 1
    %v364 = vsel %vm321, %v361, %v363
    %v368 = vadd.f32 %v270, %v362
    %v369 = vadd.f32 %v271, %v364
    %v370 = vadd.f32 %v272, %v363
    %s371 = sld [smem:[#allocation2 + $0x1e]]
    %v372 = vstv %s371
    %v373 = vmul.f32 %v372, %v60
    %v374 = vmul.f32 %v372, %v61
    %v375 = vmul.f32 %v372, %v62
    %v379 = vrot.slane %v373, 1
    %v380 = vrot.slane %v374, 1
    %v381 = vsel %vm321, %v379, %v380
    %v382 = vrot.slane %v375, 1
    %v383 = vsel %vm321, %v380, %v382
    %v387 = vadd.f32 %v290, %v381
    %v388 = vadd.f32 %v291, %v383
    %v389 = vadd.f32 %v292, %v382
    %s390 = sld [smem:[#allocation2 + $0x27]]
    %v391 = vstv %s390
    %v392 = vmul.f32 %v391, %v60
    %v393 = vmul.f32 %v391, %v61
    %v394 = vmul.f32 %v391, %v62
    %v398 = vrot.slane %v392, 1
    %v399 = vrot.slane %v393, 1
    %v400 = vsel %vm321, %v398, %v399
    %v401 = vrot.slane %v394, 1
    %v402 = vsel %vm321, %v399, %v401
    %v406 = vadd.f32 %v310, %v400
    %v407 = vadd.f32 %v311, %v402
    %v408 = vadd.f32 %v312, %v401
    %s409 = sld [smem:[#allocation2 + $0x4]]
    %v410 = vstv %s409
    %v411 = vmul.f32 %v410, %v60
    %v412 = vmul.f32 %v410, %v61
    %v413 = vmul.f32 %v410, %v62
    %v417 = vrot.slane %v411, 1
    %v418 = vrot.slane %v412, 1
    %v419 = vsel %vm321, %v417, %v418
    %v420 = vrot.slane %v413, 1
    %v421 = vsel %vm321, %v418, %v420
    %422 = vrot.lane.b32.xlu0 %v419, 127
    %v423 = vpop.permute.xlu0 %422
    %424 = vrot.lane.b32.xlu0 %v421, 127
    %v425 = vpop.permute.xlu0 %424
    %426 = vrot.lane.b32.xlu0 %v420, 127
    %v427 = vpop.permute.xlu0 %426
    %v431 = vadd.f32 %v330, %v423
    %v432 = vadd.f32 %v331, %v425
    %v433 = vadd.f32 %v332, %v427
    %s434 = sld [smem:[#allocation2 + $0xd]]
    %v435 = vstv %s434
    %v436 = vmul.f32 %v435, %v60
    %v437 = vmul.f32 %v435, %v61
    %v438 = vmul.f32 %v435, %v62
    %v442 = vrot.slane %v436, 1
    %v443 = vrot.slane %v437, 1
    %v444 = vsel %vm321, %v442, %v443
    %v445 = vrot.slane %v438, 1
    %v446 = vsel %vm321, %v443, %v445
    %447 = vrot.lane.b32.xlu0 %v444, 127
    %v448 = vpop.permute.xlu0 %447
    %449 = vrot.lane.b32.xlu0 %v446, 127
    %v450 = vpop.permute.xlu0 %449
    %451 = vrot.lane.b32.xlu0 %v445, 127
    %v452 = vpop.permute.xlu0 %451
    %v456 = vadd.f32 %v349, %v448
    %v457 = vadd.f32 %v350, %v450
    %v458 = vadd.f32 %v351, %v452
    %s459 = sld [smem:[#allocation2 + $0x16]]
    %v460 = vstv %s459
    %v461 = vmul.f32 %v460, %v60
    %v462 = vmul.f32 %v460, %v61
    %v463 = vmul.f32 %v460, %v62
    %v467 = vrot.slane %v461, 1
    %v468 = vrot.slane %v462, 1
    %v469 = vsel %vm321, %v467, %v468
    %v470 = vrot.slane %v463, 1
    %v471 = vsel %vm321, %v468, %v470
    %472 = vrot.lane.b32.xlu0 %v469, 127
    %v473 = vpop.permute.xlu0 %472
    %474 = vrot.lane.b32.xlu0 %v471, 127
    %v475 = vpop.permute.xlu0 %474
    %476 = vrot.lane.b32.xlu0 %v470, 127
    %v477 = vpop.permute.xlu0 %476
    %v481 = vadd.f32 %v368, %v473
    %v482 = vadd.f32 %v369, %v475
    %v483 = vadd.f32 %v370, %v477
    %s484 = sld [smem:[#allocation2 + $0x1f]]
    %v485 = vstv %s484
    %v486 = vmul.f32 %v485, %v60
    %v487 = vmul.f32 %v485, %v61
    %v488 = vmul.f32 %v485, %v62
    %v492 = vrot.slane %v486, 1
    %v493 = vrot.slane %v487, 1
    %v494 = vsel %vm321, %v492, %v493
    %v495 = vrot.slane %v488, 1
    %v496 = vsel %vm321, %v493, %v495
    %497 = vrot.lane.b32.xlu0 %v494, 127
    %v498 = vpop.permute.xlu0 %497
    %499 = vrot.lane.b32.xlu0 %v496, 127
    %v500 = vpop.permute.xlu0 %499
    %501 = vrot.lane.b32.xlu0 %v495, 127
    %v502 = vpop.permute.xlu0 %501
    %v506 = vadd.f32 %v387, %v498
    %v507 = vadd.f32 %v388, %v500
    %v508 = vadd.f32 %v389, %v502
    %s509 = sld [smem:[#allocation2 + $0x28]]
    %v510 = vstv %s509
    %v511 = vmul.f32 %v510, %v60
    %v512 = vmul.f32 %v510, %v61
    %v513 = vmul.f32 %v510, %v62
    %v517 = vrot.slane %v511, 1
    %v518 = vrot.slane %v512, 1
    %v519 = vsel %vm321, %v517, %v518
    %v520 = vrot.slane %v513, 1
    %v521 = vsel %vm321, %v518, %v520
    %522 = vrot.lane.b32.xlu0 %v519, 127
    %v523 = vpop.permute.xlu0 %522
    %524 = vrot.lane.b32.xlu0 %v521, 127
    %v525 = vpop.permute.xlu0 %524
    %526 = vrot.lane.b32.xlu0 %v520, 127
    %v527 = vpop.permute.xlu0 %526
    %v531 = vadd.f32 %v406, %v523
    %v532 = vadd.f32 %v407, %v525
    %v533 = vadd.f32 %v408, %v527
    %s534 = sld [smem:[#allocation2 + $0x5]]
    %v535 = vstv %s534
    %v536 = vmul.f32 %v535, %v60
    %v537 = vmul.f32 %v535, %v61
    %v538 = vmul.f32 %v535, %v62
    %v542 = vrot.slane %v536, 1
    %v543 = vrot.slane %v537, 1
    %v544 = vsel %vm321, %v542, %v543
    %v545 = vrot.slane %v538, 1
    %v546 = vsel %vm321, %v543, %v545
    %547 = vrot.lane.b32.xlu0 %v544, 126
    %v548 = vpop.permute.xlu0 %547
    %549 = vrot.lane.b32.xlu0 %v546, 126
    %v550 = vpop.permute.xlu0 %549
    %551 = vrot.lane.b32.xlu0 %v545, 126
    %v552 = vpop.permute.xlu0 %551
    %v556 = vadd.f32 %v431, %v548
    %v557 = vadd.f32 %v432, %v550
    %v558 = vadd.f32 %v433, %v552
    %s559 = sld [smem:[#allocation2 + $0xe]]
    %v560 = vstv %s559
    %v561 = vmul.f32 %v560, %v60
    %v562 = vmul.f32 %v560, %v61
    %v563 = vmul.f32 %v560, %v62
    %v567 = vrot.slane %v561, 1
    %v568 = vrot.slane %v562, 1
    %v569 = vsel %vm321, %v567, %v568
    %v570 = vrot.slane %v563, 1
    %v571 = vsel %vm321, %v568, %v570
    %572 = vrot.lane.b32.xlu0 %v569, 126
    %v573 = vpop.permute.xlu0 %572
    %574 = vrot.lane.b32.xlu0 %v571, 126
    %v575 = vpop.permute.xlu0 %574
    %576 = vrot.lane.b32.xlu0 %v570, 126
    %v577 = vpop.permute.xlu0 %576
    %v581 = vadd.f32 %v456, %v573
    %v582 = vadd.f32 %v457, %v575
    %v583 = vadd.f32 %v458, %v577
    %s584 = sld [smem:[#allocation2 + $0x17]]
    %v585 = vstv %s584
    %v586 = vmul.f32 %v585, %v60
    %v587 = vmul.f32 %v585, %v61
    %v588 = vmul.f32 %v585, %v62
    %v592 = vrot.slane %v586, 1
    %v593 = vrot.slane %v587, 1
    %v594 = vsel %vm321, %v592, %v593
    %v595 = vrot.slane %v588, 1
    %v596 = vsel %vm321, %v593, %v595
    %597 = vrot.lane.b32.xlu0 %v594, 126
    %v598 = vpop.permute.xlu0 %597
    %599 = vrot.lane.b32.xlu0 %v596, 126
    %v600 = vpop.permute.xlu0 %599
    %601 = vrot.lane.b32.xlu0 %v595, 126
    %v602 = vpop.permute.xlu0 %601
    %v606 = vadd.f32 %v481, %v598
    %v607 = vadd.f32 %v482, %v600
    %v608 = vadd.f32 %v483, %v602
    %s609 = sld [smem:[#allocation2 + $0x20]]
    %v610 = vstv %s609
    %v611 = vmul.f32 %v610, %v60
    %v612 = vmul.f32 %v610, %v61
    %v613 = vmul.f32 %v610, %v62
    %v617 = vrot.slane %v611, 1
    %v618 = vrot.slane %v612, 1
    %v619 = vsel %vm321, %v617, %v618
    %v620 = vrot.slane %v613, 1
    %v621 = vsel %vm321, %v618, %v620
    %622 = vrot.lane.b32.xlu0 %v619, 126
    %v623 = vpop.permute.xlu0 %622
    %624 = vrot.lane.b32.xlu0 %v621, 126
    %v625 = vpop.permute.xlu0 %624
    %626 = vrot.lane.b32.xlu0 %v620, 126
    %v627 = vpop.permute.xlu0 %626
    %v631 = vadd.f32 %v506, %v623
    %v632 = vadd.f32 %v507, %v625
    %v633 = vadd.f32 %v508, %v627
    %s634 = sld [smem:[#allocation2 + $0x29]]
    %v635 = vstv %s634
    %v636 = vmul.f32 %v635, %v60
    %v637 = vmul.f32 %v635, %v61
    %v638 = vmul.f32 %v635, %v62
    %v642 = vrot.slane %v636, 1
    %v643 = vrot.slane %v637, 1
    %v644 = vsel %vm321, %v642, %v643
    %v645 = vrot.slane %v638, 1
    %v646 = vsel %vm321, %v643, %v645
    %647 = vrot.lane.b32.xlu0 %v644, 126
    %v648 = vpop.permute.xlu0 %647
    %649 = vrot.lane.b32.xlu0 %v646, 126
    %v650 = vpop.permute.xlu0 %649
    %651 = vrot.lane.b32.xlu0 %v645, 126
    %v652 = vpop.permute.xlu0 %651
    %v656 = vadd.f32 %v531, %v648
    %v657 = vadd.f32 %v532, %v650
    %v658 = vadd.f32 %v533, %v652
    %s659 = sld [smem:[#allocation2 + $0x6]]
    %v660 = vstv %s659
    %v661 = vmul.f32 %v660, %v60
    %v662 = vmul.f32 %v660, %v61
    %v663 = vmul.f32 %v660, %v62
    %vm667 = vcmask 1045504
    %v668 = vrot.slane %v661, 2
    %v669 = vrot.slane %v662, 2
    %v670 = vsel %vm667, %v668, %v669
    %v671 = vrot.slane %v663, 2
    %v672 = vsel %vm667, %v669, %v671
    %v676 = vadd.f32 %v556, %v670
    %v677 = vadd.f32 %v557, %v672
    %v678 = vadd.f32 %v558, %v671
    %s679 = sld [smem:[#allocation2 + $0xf]]
    %v680 = vstv %s679
    %v681 = vmul.f32 %v680, %v60
    %v682 = vmul.f32 %v680, %v61
    %v683 = vmul.f32 %v680, %v62
    %v687 = vrot.slane %v681, 2
    %v688 = vrot.slane %v682, 2
    %v689 = vsel %vm667, %v687, %v688
    %v690 = vrot.slane %v683, 2
    %v691 = vsel %vm667, %v688, %v690
    %v695 = vadd.f32 %v581, %v689
    %v696 = vadd.f32 %v582, %v691
    %v697 = vadd.f32 %v583, %v690
    %s698 = sld [smem:[#allocation2 + $0x18]]
    %v699 = vstv %s698
    %v700 = vmul.f32 %v699, %v60
    %v701 = vmul.f32 %v699, %v61
    %v702 = vmul.f32 %v699, %v62
    %v706 = vrot.slane %v700, 2
    %v707 = vrot.slane %v701, 2
    %v708 = vsel %vm667, %v706, %v707
    %v709 = vrot.slane %v702, 2
    %v710 = vsel %vm667, %v707, %v709
    %v714 = vadd.f32 %v606, %v708
    %v715 = vadd.f32 %v607, %v710
    %v716 = vadd.f32 %v608, %v709
    %s717 = sld [smem:[#allocation2 + $0x21]]
    %v718 = vstv %s717
    %v719 = vmul.f32 %v718, %v60
    %v720 = vmul.f32 %v718, %v61
    %v721 = vmul.f32 %v718, %v62
    %v725 = vrot.slane %v719, 2
    %v726 = vrot.slane %v720, 2
    %v727 = vsel %vm667, %v725, %v726
    %v728 = vrot.slane %v721, 2
    %v729 = vsel %vm667, %v726, %v728
    %v733 = vadd.f32 %v631, %v727
    %v734 = vadd.f32 %v632, %v729
    %v735 = vadd.f32 %v633, %v728
    %s736 = sld [smem:[#allocation2 + $0x2a]]
    %v737 = vstv %s736
    %v738 = vmul.f32 %v737, %v60
    %v739 = vmul.f32 %v737, %v61
    %v740 = vmul.f32 %v737, %v62
    %v744 = vrot.slane %v738, 2
    %v745 = vrot.slane %v739, 2
    %v746 = vsel %vm667, %v744, %v745
    %v747 = vrot.slane %v740, 2
    %v748 = vsel %vm667, %v745, %v747
    %v752 = vadd.f32 %v656, %v746
    %v753 = vadd.f32 %v657, %v748
    %v754 = vadd.f32 %v658, %v747
    %s755 = sld [smem:[#allocation2 + $0x7]]
    %v756 = vstv %s755
    %v757 = vmul.f32 %v756, %v60
    %v758 = vmul.f32 %v756, %v61
    %v759 = vmul.f32 %v756, %v62
    %v763 = vrot.slane %v757, 2
    %v764 = vrot.slane %v758, 2
    %v765 = vsel %vm667, %v763, %v764
    %v766 = vrot.slane %v759, 2
    %v767 = vsel %vm667, %v764, %v766
    %768 = vrot.lane.b32.xlu0 %v765, 127
    %v769 = vpop.permute.xlu0 %768
    %770 = vrot.lane.b32.xlu0 %v767, 127
    %v771 = vpop.permute.xlu0 %770
    %772 = vrot.lane.b32.xlu0 %v766, 127
    %v773 = vpop.permute.xlu0 %772
    %v777 = vadd.f32 %v676, %v769
    %v778 = vadd.f32 %v677, %v771
    %v779 = vadd.f32 %v678, %v773
    %s780 = sld [smem:[#allocation2 + $0x10]]
    %v781 = vstv %s780
    %v782 = vmul.f32 %v781, %v60
    %v783 = vmul.f32 %v781, %v61
    %v784 = vmul.f32 %v781, %v62
    %v788 = vrot.slane %v782, 2
    %v789 = vrot.slane %v783, 2
    %v790 = vsel %vm667, %v788, %v789
    %v791 = vrot.slane %v784, 2
    %v792 = vsel %vm667, %v789, %v791
    %793 = vrot.lane.b32.xlu0 %v790, 127
    %v794 = vpop.permute.xlu0 %793
    %795 = vrot.lane.b32.xlu0 %v792, 127
    %v796 = vpop.permute.xlu0 %795
    %797 = vrot.lane.b32.xlu0 %v791, 127
    %v798 = vpop.permute.xlu0 %797
    %v802 = vadd.f32 %v695, %v794
    %v803 = vadd.f32 %v696, %v796
    %v804 = vadd.f32 %v697, %v798
    %s805 = sld [smem:[#allocation2 + $0x19]]
    %v806 = vstv %s805
    %v807 = vmul.f32 %v806, %v60
    %v808 = vmul.f32 %v806, %v61
    %v809 = vmul.f32 %v806, %v62
    %v813 = vrot.slane %v807, 2
    %v814 = vrot.slane %v808, 2
    %v815 = vsel %vm667, %v813, %v814
    %v816 = vrot.slane %v809, 2
    %v817 = vsel %vm667, %v814, %v816
    %818 = vrot.lane.b32.xlu0 %v815, 127
    %v819 = vpop.permute.xlu0 %818
    %820 = vrot.lane.b32.xlu0 %v817, 127
    %v821 = vpop.permute.xlu0 %820
    %822 = vrot.lane.b32.xlu0 %v816, 127
    %v823 = vpop.permute.xlu0 %822
    %v827 = vadd.f32 %v714, %v819
    %v828 = vadd.f32 %v715, %v821
    %v829 = vadd.f32 %v716, %v823
    %s830 = sld [smem:[#allocation2 + $0x22]]
    %v831 = vstv %s830
    %v832 = vmul.f32 %v831, %v60
    %v833 = vmul.f32 %v831, %v61
    %v834 = vmul.f32 %v831, %v62
    %v838 = vrot.slane %v832, 2
    %v839 = vrot.slane %v833, 2
    %v840 = vsel %vm667, %v838, %v839
    %v841 = vrot.slane %v834, 2
    %v842 = vsel %vm667, %v839, %v841
    %843 = vrot.lane.b32.xlu0 %v840, 127
    %v844 = vpop.permute.xlu0 %843
    %845 = vrot.lane.b32.xlu0 %v842, 127
    %v846 = vpop.permute.xlu0 %845
    %847 = vrot.lane.b32.xlu0 %v841, 127
    %v848 = vpop.permute.xlu0 %847
    %v852 = vadd.f32 %v733, %v844
    %v853 = vadd.f32 %v734, %v846
    %v854 = vadd.f32 %v735, %v848
    %s855 = sld [smem:[#allocation2 + $0x2b]]
    %v856 = vstv %s855
    %v857 = vmul.f32 %v856, %v60
    %v858 = vmul.f32 %v856, %v61
    %v859 = vmul.f32 %v856, %v62
    %v863 = vrot.slane %v857, 2
    %v864 = vrot.slane %v858, 2
    %v865 = vsel %vm667, %v863, %v864
    %v866 = vrot.slane %v859, 2
    %v867 = vsel %vm667, %v864, %v866
    %868 = vrot.lane.b32.xlu0 %v865, 127
    %v869 = vpop.permute.xlu0 %868
    %870 = vrot.lane.b32.xlu0 %v867, 127
    %v871 = vpop.permute.xlu0 %870
    %872 = vrot.lane.b32.xlu0 %v866, 127
    %v873 = vpop.permute.xlu0 %872
    %v877 = vadd.f32 %v752, %v869
    %v878 = vadd.f32 %v753, %v871
    %v879 = vadd.f32 %v754, %v873
    %s880 = sld [smem:[#allocation2 + $0x8]]
    %v881 = vstv %s880
    %v882 = vmul.f32 %v881, %v60
    %v883 = vmul.f32 %v881, %v61
    %v884 = vmul.f32 %v881, %v62
    %v888 = vrot.slane %v882, 2
    %v889 = vrot.slane %v883, 2
    %v890 = vsel %vm667, %v888, %v889
    %v891 = vrot.slane %v884, 2
    %v892 = vsel %vm667, %v889, %v891
    %893 = vrot.lane.b32.xlu0 %v890, 126
    %v894 = vpop.permute.xlu0 %893
    %895 = vrot.lane.b32.xlu0 %v892, 126
    %v896 = vpop.permute.xlu0 %895
    %897 = vrot.lane.b32.xlu0 %v891, 126
    %v898 = vpop.permute.xlu0 %897
    %v902 = vadd.f32 %v777, %v894
    %v903 = vadd.f32 %v778, %v896
    %v904 = vadd.f32 %v779, %v898
    %s905 = sld [smem:[#allocation2 + $0x11]]
    %v906 = vstv %s905
    %v907 = vmul.f32 %v906, %v60
    %v908 = vmul.f32 %v906, %v61
    %v909 = vmul.f32 %v906, %v62
    %v913 = vrot.slane %v907, 2
    %v914 = vrot.slane %v908, 2
    %v915 = vsel %vm667, %v913, %v914
    %v916 = vrot.slane %v909, 2
    %v917 = vsel %vm667, %v914, %v916
    %918 = vrot.lane.b32.xlu0 %v915, 126
    %v919 = vpop.permute.xlu0 %918
    %920 = vrot.lane.b32.xlu0 %v917, 126
    %v921 = vpop.permute.xlu0 %920
    %922 = vrot.lane.b32.xlu0 %v916, 126
    %v923 = vpop.permute.xlu0 %922
    %v927 = vadd.f32 %v802, %v919
    %v928 = vadd.f32 %v803, %v921
    %v929 = vadd.f32 %v804, %v923
    %s930 = sld [smem:[#allocation2 + $0x1a]]
    %v931 = vstv %s930
    %v932 = vmul.f32 %v931, %v60
    %v933 = vmul.f32 %v931, %v61
    %v934 = vmul.f32 %v931, %v62
    %v938 = vrot.slane %v932, 2
    %v939 = vrot.slane %v933, 2
    %v940 = vsel %vm667, %v938, %v939
    %v941 = vrot.slane %v934, 2
    %v942 = vsel %vm667, %v939, %v941
    %943 = vrot.lane.b32.xlu0 %v940, 126
    %v944 = vpop.permute.xlu0 %943
    %945 = vrot.lane.b32.xlu0 %v942, 126
    %v946 = vpop.permute.xlu0 %945
    %947 = vrot.lane.b32.xlu0 %v941, 126
    %v948 = vpop.permute.xlu0 %947
    %v952 = vadd.f32 %v827, %v944
    %v953 = vadd.f32 %v828, %v946
    %v954 = vadd.f32 %v829, %v948
    %s955 = sld [smem:[#allocation2 + $0x23]]
    %v956 = vstv %s955
    %v957 = vmul.f32 %v956, %v60
    %v958 = vmul.f32 %v956, %v61
    %v959 = vmul.f32 %v956, %v62
    %v963 = vrot.slane %v957, 2
    %v964 = vrot.slane %v958, 2
    %v965 = vsel %vm667, %v963, %v964
    %v966 = vrot.slane %v959, 2
    %v967 = vsel %vm667, %v964, %v966
    %968 = vrot.lane.b32.xlu0 %v965, 126
    %v969 = vpop.permute.xlu0 %968
    %970 = vrot.lane.b32.xlu0 %v967, 126
    %v971 = vpop.permute.xlu0 %970
    %972 = vrot.lane.b32.xlu0 %v966, 126
    %v973 = vpop.permute.xlu0 %972
    %v977 = vadd.f32 %v852, %v969
    %v978 = vadd.f32 %v853, %v971
    %v979 = vadd.f32 %v854, %v973
    %s980 = sld [smem:[#allocation2 + $0x2c]]
    %v981 = vstv %s980
    %v982 = vmul.f32 %v981, %v60
    %v983 = vmul.f32 %v981, %v61
    %v984 = vmul.f32 %v981, %v62
    %v988 = vrot.slane %v982, 2
    %v989 = vrot.slane %v983, 2
    %v990 = vsel %vm667, %v988, %v989
    %v991 = vrot.slane %v984, 2
    %v992 = vsel %vm667, %v989, %v991
    %993 = vrot.lane.b32.xlu0 %v990, 126
    %v994 = vpop.permute.xlu0 %993
    %995 = vrot.lane.b32.xlu0 %v992, 126
    %v996 = vpop.permute.xlu0 %995
    %997 = vrot.lane.b32.xlu0 %v991, 126
    %v998 = vpop.permute.xlu0 %997
    %v1002 = vadd.f32 %v877, %v994
    %v1003 = vadd.f32 %v878, %v996
    %v1004 = vadd.f32 %v879, %v998
    %v1005 = vmax.f32 %v902, 0.0
    %v1006 = vmax.f32 %v903, 0.0
    %v1007 = vmax.f32 %v904, 0.0
    %v1008 = vmax.f32 %v927, 0.0
    %v1009 = vmax.f32 %v928, 0.0
    %v1010 = vmax.f32 %v929, 0.0
    %v1011 = vmax.f32 %v952, 0.0
    %v1012 = vmax.f32 %v953, 0.0
    %v1013 = vmax.f32 %v954, 0.0
    %v1014 = vmax.f32 %v977, 0.0
    %v1015 = vmax.f32 %v978, 0.0
    %v1016 = vmax.f32 %v979, 0.0
    %v1017 = vmax.f32 %v1002, 0.0
    %v1018 = vmax.f32 %v1003, 0.0
    %v1019 = vmax.f32 %v1004, 0.0
    %v1020 = vld [vmem:[%s4] sm:$0x1]
    %v1022 = vlaneseq
    %v1023 = vshrl.u32 %v1022, 7
    %v1024 = vsub.s32 0, %v1023
    %v1025 = vrot.slane %v1020, %v1024
    %1029 = vrot.lane.b32.xlu0 %v1005, 16
    %v1030 = vpop.permute.xlu0 %1029
    %1031 = vrot.lane.b32.xlu0 %v1006, 16
    %v1032 = vpop.permute.xlu0 %1031
    %1035 = vrot.lane.b32.xlu0 %v1005, 32
    %v1036 = vpop.permute.xlu0 %1035
    %1037 = vrot.lane.b32.xlu0 %v1006, 32
    %v1038 = vpop.permute.xlu0 %1037
    %1041 = vrot.lane.b32.xlu0 %v1005, 48
    %v1042 = vpop.permute.xlu0 %1041
    %1043 = vrot.lane.b32.xlu0 %v1006, 48
    %v1044 = vpop.permute.xlu0 %1043
    %1047 = vrot.lane.b32.xlu0 %v1005, 64
    %v1048 = vpop.permute.xlu0 %1047
    %1049 = vrot.lane.b32.xlu0 %v1006, 64
    %v1050 = vpop.permute.xlu0 %1049
    %vm1053 = vcmask 130048
    %v1054 = vsel %vm1053, %v1005, %v1030
    %v1055 = vsel %vm1053, %v1006, %v1032
    %vm1056 = vcmask 261120
    %v1057 = vsel %vm1056, %v1054, %v1036
    %v1058 = vsel %vm1056, %v1055, %v1038
    %vm1059 = vcmask 392192
    %v1060 = vsel %vm1059, %v1057, %v1042
    %v1061 = vsel %vm1059, %v1058, %v1044
    %vm1062 = vcmask 523264
    %v1063 = vsel %vm1062, %v1060, %v1048
    %v1064 = vsel %vm1062, %v1061, %v1050
    %v1065 = vld [vmem:[#allocation8] sm:$0x1]
    %v1066 = vlaneseq
    %v1067 = vshrl.u32 %v1066, 7
    %v1068 = vsub.s32 0, %v1067
    %v1069 = vrot.slane %v1065, %v1068
    %v1070 = vmul.f32 %v1069, %v1063
    %v1071 = vmul.f32 %v1069, %v1064
    %v1072 = vadd.f32 %v1025, %v1070
    %v1073 = vadd.f32 %v1025, %v1071
    %1074 = vrot.lane.b32.xlu0 %v1005, 127
    %v1075 = vpop.permute.xlu0 %1074
    %1076 = vrot.lane.b32.xlu0 %v1006, 127
    %v1077 = vpop.permute.xlu0 %1076
    %1080 = vrot.lane.b32.xlu0 %v1005, 15
    %v1081 = vpop.permute.xlu0 %1080
    %1082 = vrot.lane.b32.xlu0 %v1006, 15
    %v1083 = vpop.permute.xlu0 %1082
    %1086 = vrot.lane.b32.xlu0 %v1005, 31
    %v1087 = vpop.permute.xlu0 %1086
    %1088 = vrot.lane.b32.xlu0 %v1006, 31
    %v1089 = vpop.permute.xlu0 %1088
    %1092 = vrot.lane.b32.xlu0 %v1005, 47
    %v1093 = vpop.permute.xlu0 %1092
    %1094 = vrot.lane.b32.xlu0 %v1006, 47
    %v1095 = vpop.permute.xlu0 %1094
    %1098 = vrot.lane.b32.xlu0 %v1005, 63
    %v1099 = vpop.permute.xlu0 %1098
    %1100 = vrot.lane.b32.xlu0 %v1006, 63
    %v1101 = vpop.permute.xlu0 %1100
    %v1104 = vsel %vm1053, %v1075, %v1081
    %v1105 = vsel %vm1053, %v1077, %v1083
    %v1106 = vsel %vm1056, %v1104, %v1087
    %v1107 = vsel %vm1056, %v1105, %v1089
    %v1108 = vsel %vm1059, %v1106, %v1093
    %v1109 = vsel %vm1059, %v1107, %v1095
    %v1110 = vsel %vm1062, %v1108, %v1099
    %v1111 = vsel %vm1062, %v1109, %v1101
    %v1112 = vld [vmem:[#allocation8 + $0x1] sm:$0x1]
    %v1113 = vlaneseq
    %v1114 = vshrl.u32 %v1113, 7
    %v1115 = vsub.s32 0, %v1114
    %v1116 = vrot.slane %v1112, %v1115
    %v1117 = vmul.f32 %v1116, %v1110
    %v1118 = vmul.f32 %v1116, %v1111
    %v1119 = vadd.f32 %v1072, %v1117
    %v1120 = vadd.f32 %v1073, %v1118
    %1121 = vrot.lane.b32.xlu0 %v1005, 126
    %v1122 = vpop.permute.xlu0 %1121
    %1123 = vrot.lane.b32.xlu0 %v1006, 126
    %v1124 = vpop.permute.xlu0 %1123
    %1127 = vrot.lane.b32.xlu0 %v1005, 14
    %v1128 = vpop.permute.xlu0 %1127
    %1129 = vrot.lane.b32.xlu0 %v1006, 14
    %v1130 = vpop.permute.xlu0 %1129
    %1133 = vrot.lane.b32.xlu0 %v1005, 30
    %v1134 = vpop.permute.xlu0 %1133
    %1135 = vrot.lane.b32.xlu0 %v1006, 30
    %v1136 = vpop.permute.xlu0 %1135
    %1139 = vrot.lane.b32.xlu0 %v1005, 46
    %v1140 = vpop.permute.xlu0 %1139
    %1141 = vrot.lane.b32.xlu0 %v1006, 46
    %v1142 = vpop.permute.xlu0 %1141
    %1145 = vrot.lane.b32.xlu0 %v1005, 62
    %v1146 = vpop.permute.xlu0 %1145
    %1147 = vrot.lane.b32.xlu0 %v1006, 62
    %v1148 = vpop.permute.xlu0 %1147
    %v1151 = vsel %vm1053, %v1122, %v1128
    %v1152 = vsel %vm1053, %v1124, %v1130
    %v1153 = vsel %vm1056, %v1151, %v1134
    %v1154 = vsel %vm1056, %v1152, %v1136
    %v1155 = vsel %vm1059, %v1153, %v1140
    %v1156 = vsel %vm1059, %v1154, %v1142
    %v1157 = vsel %vm1062, %v1155, %v1146
    %v1158 = vsel %vm1062, %v1156, %v1148
    %v1159 = vld [vmem:[#allocation8 + $0x2] sm:$0x1]
    %v1160 = vlaneseq
    %v1161 = vshrl.u32 %v1160, 7
    %v1162 = vsub.s32 0, %v1161
    %v1163 = vrot.slane %v1159, %v1162
    %v1164 = vmul.f32 %v1163, %v1157
    %v1165 = vmul.f32 %v1163, %v1158
    %v1166 = vadd.f32 %v1119, %v1164
    %v1167 = vadd.f32 %v1120, %v1165
    %v1168 = vld [vmem:[#allocation8 + $0x3] sm:$0x1]
    %v1169 = vlaneseq
    %v1170 = vshrl.u32 %v1169, 7
    %v1171 = vsub.s32 0, %v1170
    %v1172 = vrot.slane %v1168, %v1171
    %v1173 = vmul.f32 %v1172, %v1063
    %v1174 = vmul.f32 %v1172, %v1064
    %v1177 = vrot.slane %v1173, 1
    %v1178 = vrot.slane %v1174, 1
    %v1179 = vsel %vm321, %v1177, %v1178
    %v1182 = vadd.f32 %v1166, %v1179
    %v1183 = vadd.f32 %v1167, %v1178
    %v1184 = vld [vmem:[#allocation8 + $0x4] sm:$0x1]
    %v1185 = vlaneseq
    %v1186 = vshrl.u32 %v1185, 7
    %v1187 = vsub.s32 0, %v1186
    %v1188 = vrot.slane %v1184, %v1187
    %v1189 = vmul.f32 %v1188, %v1110
    %v1190 = vmul.f32 %v1188, %v1111
    %v1193 = vrot.slane %v1189, 1
    %v1194 = vrot.slane %v1190, 1
    %v1195 = vsel %vm321, %v1193, %v1194
    %v1198 = vadd.f32 %v1182, %v1195
    %v1199 = vadd.f32 %v1183, %v1194
    %v1200 = vld [vmem:[#allocation8 + $0x5] sm:$0x1]
    %v1201 = vlaneseq
    %v1202 = vshrl.u32 %v1201, 7
    %v1203 = vsub.s32 0, %v1202
    %v1204 = vrot.slane %v1200, %v1203
    %v1205 = vmul.f32 %v1204, %v1157
    %v1206 = vmul.f32 %v1204, %v1158
    %v1209 = vrot.slane %v1205, 1
    %v1210 = vrot.slane %v1206, 1
    %v1211 = vsel %vm321, %v1209, %v1210
    %v1214 = vadd.f32 %v1198, %v1211
    %v1215 = vadd.f32 %v1199, %v1210
    %v1216 = vld [vmem:[#allocation8 + $0x6] sm:$0x1]
    %v1217 = vlaneseq
    %v1218 = vshrl.u32 %v1217, 7
    %v1219 = vsub.s32 0, %v1218
    %v1220 = vrot.slane %v1216, %v1219
    %v1221 = vmul.f32 %v1220, %v1063
    %v1222 = vmul.f32 %v1220, %v1064
    %v1225 = vrot.slane %v1221, 2
    %v1226 = vrot.slane %v1222, 2
    %v1227 = vsel %vm667, %v1225, %v1226
    %v1230 = vadd.f32 %v1214, %v1227
    %v1231 = vadd.f32 %v1215, %v1226
    %v1232 = vld [vmem:[#allocation8 + $0x7] sm:$0x1]
    %v1233 = vlaneseq
    %v1234 = vshrl.u32 %v1233, 7
    %v1235 = vsub.s32 0, %v1234
    %v1236 = vrot.slane %v1232, %v1235
    %v1237 = vmul.f32 %v1236, %v1110
    %v1238 = vmul.f32 %v1236, %v1111
    %v1241 = vrot.slane %v1237, 2
    %v1242 = vrot.slane %v1238, 2
    %v1243 = vsel %vm667, %v1241, %v1242
    %v1246 = vadd.f32 %v1230, %v1243
    %v1247 = vadd.f32 %v1231, %v1242
    %v1248 = vld [vmem:[#allocation8 + $0x8] sm:$0x1]
    %v1249 = vlaneseq
    %v1250 = vshrl.u32 %v1249, 7
    %v1251 = vsub.s32 0, %v1250
    %v1252 = vrot.slane %v1248, %v1251
    %v1253 = vmul.f32 %v1252, %v1157
    %v1254 = vmul.f32 %v1252, %v1158
    %v1257 = vrot.slane %v1253, 2
    %v1258 = vrot.slane %v1254, 2
    %v1259 = vsel %vm667, %v1257, %v1258
    %v1262 = vadd.f32 %v1246, %v1259
    %v1263 = vadd.f32 %v1247, %v1258
    %1265 = vrot.lane.b32.xlu0 %v1007, 16
    %v1266 = vpop.permute.xlu0 %1265
    %1268 = vrot.lane.b32.xlu0 %v1007, 32
    %v1269 = vpop.permute.xlu0 %1268
    %1271 = vrot.lane.b32.xlu0 %v1007, 48
    %v1272 = vpop.permute.xlu0 %1271
    %1274 = vrot.lane.b32.xlu0 %v1007, 64
    %v1275 = vpop.permute.xlu0 %1274
    %v1277 = vsel %vm1053, %v1007, %v1266
    %v1278 = vsel %vm1056, %v1277, %v1269
    %v1279 = vsel %vm1059, %v1278, %v1272
    %v1280 = vsel %vm1062, %v1279, %v1275
    %v1281 = vld [vmem:[#allocation8 + $0x9] sm:$0x1]
    %v1282 = vlaneseq
    %v1283 = vshrl.u32 %v1282, 7
    %v1284 = vsub.s32 0, %v1283
    %v1285 = vrot.slane %v1281, %v1284
    %v1286 = vmul.f32 %v1285, %v1063
    %v1287 = vmul.f32 %v1285, %v1064
    %v1288 = vmul.f32 %v1285, %v1280
    %vm1292 = vcmask 1044480
    %v1293 = vrot.slane %v1286, 3
    %v1294 = vrot.slane %v1287, 3
    %v1295 = vsel %vm1292, %v1293, %v1294
    %v1296 = vrot.slane %v1288, 3
    %v1297 = vsel %vm1292, %v1294, %v1296
    %v1300 = vadd.f32 %v1262, %v1295
    %v1301 = vadd.f32 %v1263, %v1297
    %1302 = vrot.lane.b32.xlu0 %v1007, 127
    %v1303 = vpop.permute.xlu0 %1302
    %1305 = vrot.lane.b32.xlu0 %v1007, 15
    %v1306 = vpop.permute.xlu0 %1305
    %1308 = vrot.lane.b32.xlu0 %v1007, 31
    %v1309 = vpop.permute.xlu0 %1308
    %1311 = vrot.lane.b32.xlu0 %v1007, 47
    %v1312 = vpop.permute.xlu0 %1311
    %1314 = vrot.lane.b32.xlu0 %v1007, 63
    %v1315 = vpop.permute.xlu0 %1314
    %v1317 = vsel %vm1053, %v1303, %v1306
    %v1318 = vsel %vm1056, %v1317, %v1309
    %v1319 = vsel %vm1059, %v1318, %v1312
    %v1320 = vsel %vm1062, %v1319, %v1315
    %v1321 = vld [vmem:[#allocation8 + $0xa] sm:$0x1]
    %v1322 = vlaneseq
    %v1323 = vshrl.u32 %v1322, 7
    %v1324 = vsub.s32 0, %v1323
    %v1325 = vrot.slane %v1321, %v1324
    %v1326 = vmul.f32 %v1325, %v1110
    %v1327 = vmul.f32 %v1325, %v1111
    %v1328 = vmul.f32 %v1325, %v1320
    %v1332 = vrot.slane %v1326, 3
    %v1333 = vrot.slane %v1327, 3
    %v1334 = vsel %vm1292, %v1332, %v1333
    %v1335 = vrot.slane %v1328, 3
    %v1336 = vsel %vm1292, %v1333, %v1335
    %v1339 = vadd.f32 %v1300, %v1334
    %v1340 = vadd.f32 %v1301, %v1336
    %1341 = vrot.lane.b32.xlu0 %v1007, 126
    %v1342 = vpop.permute.xlu0 %1341
    %1344 = vrot.lane.b32.xlu0 %v1007, 14
    %v1345 = vpop.permute.xlu0 %1344
    %1347 = vrot.lane.b32.xlu0 %v1007, 30
    %v1348 = vpop.permute.xlu0 %1347
    %1350 = vrot.lane.b32.xlu0 %v1007, 46
    %v1351 = vpop.permute.xlu0 %1350
    %1353 = vrot.lane.b32.xlu0 %v1007, 62
    %v1354 = vpop.permute.xlu0 %1353
    %v1356 = vsel %vm1053, %v1342, %v1345
    %v1357 = vsel %vm1056, %v1356, %v1348
    %v1358 = vsel %vm1059, %v1357, %v1351
    %v1359 = vsel %vm1062, %v1358, %v1354
    %v1360 = vld [vmem:[#allocation8 + $0xb] sm:$0x1]
    %v1361 = vlaneseq
    %v1362 = vshrl.u32 %v1361, 7
    %v1363 = vsub.s32 0, %v1362
    %v1364 = vrot.slane %v1360, %v1363
    %v1365 = vmul.f32 %v1364, %v1157
    %v1366 = vmul.f32 %v1364, %v1158
    %v1367 = vmul.f32 %v1364, %v1359
    %v1371 = vrot.slane %v1365, 3
    %v1372 = vrot.slane %v1366, 3
    %v1373 = vsel %vm1292, %v1371, %v1372
    %v1374 = vrot.slane %v1367, 3
    %v1375 = vsel %vm1292, %v1372, %v1374
    %v1378 = vadd.f32 %v1339, %v1373
    %v1379 = vadd.f32 %v1340, %v1375
    %v1380 = vld [vmem:[#allocation8 + $0xc] sm:$0x1]
    %v1381 = vlaneseq
    %v1382 = vshrl.u32 %v1381, 7
    %v1383 = vsub.s32 0, %v1382
    %v1384 = vrot.slane %v1380, %v1383
    %v1385 = vmul.f32 %v1384, %v1063
    %v1386 = vmul.f32 %v1384, %v1064
    %v1387 = vmul.f32 %v1384, %v1280
    %vm1391 = vcmask 1043456
    %v1392 = vrot.slane %v1385, 4
    %v1393 = vrot.slane %v1386, 4
    %v1394 = vsel %vm1391, %v1392, %v1393
    %v1395 = vrot.slane %v1387, 4
    %v1396 = vsel %vm1391, %v1393, %v1395
    %v1399 = vadd.f32 %v1378, %v1394
    %v1400 = vadd.f32 %v1379, %v1396
    %v1401 = vld [vmem:[#allocation8 + $0xd] sm:$0x1]
    %v1402 = vlaneseq
    %v1403 = vshrl.u32 %v1402, 7
    %v1404 = vsub.s32 0, %v1403
    %v1405 = vrot.slane %v1401, %v1404
    %v1406 = vmul.f32 %v1405, %v1110
    %v1407 = vmul.f32 %v1405, %v1111
    %v1408 = vmul.f32 %v1405, %v1320
    %v1412 = vrot.slane %v1406, 4
    %v1413 = vrot.slane %v1407, 4
    %v1414 = vsel %vm1391, %v1412, %v1413
    %v1415 = vrot.slane %v1408, 4
    %v1416 = vsel %vm1391, %v1413, %v1415
    %v1419 = vadd.f32 %v1399, %v1414
    %v1420 = vadd.f32 %v1400, %v1416
    %v1421 = vld [vmem:[#allocation8 + $0xe] sm:$0x1]
    %v1422 = vlaneseq
    %v1423 = vshrl.u32 %v1422, 7
    %v1424 = vsub.s32 0, %v1423
    %v1425 = vrot.slane %v1421, %v1424
    %v1426 = vmul.f32 %v1425, %v1157
    %v1427 = vmul.f32 %v1425, %v1158
    %v1428 = vmul.f32 %v1425, %v1359
    %v1432 = vrot.slane %v1426, 4
    %v1433 = vrot.slane %v1427, 4
    %v1434 = vsel %vm1391, %v1432, %v1433
    %v1435 = vrot.slane %v1428, 4
    %v1436 = vsel %vm1391, %v1433, %v1435
    %v1439 = vadd.f32 %v1419, %v1434
    %v1440 = vadd.f32 %v1420, %v1436
    %1443 = vrot.lane.b32.xlu0 %v1008, 16
    %v1444 = vpop.permute.xlu0 %1443
    %1445 = vrot.lane.b32.xlu0 %v1009, 16
    %v1446 = vpop.permute.xlu0 %1445
    %1449 = vrot.lane.b32.xlu0 %v1008, 32
    %v1450 = vpop.permute.xlu0 %1449
    %1451 = vrot.lane.b32.xlu0 %v1009, 32
    %v1452 = vpop.permute.xlu0 %1451
    %1455 = vrot.lane.b32.xlu0 %v1008, 48
    %v1456 = vpop.permute.xlu0 %1455
    %1457 = vrot.lane.b32.xlu0 %v1009, 48
    %v1458 = vpop.permute.xlu0 %1457
    %1461 = vrot.lane.b32.xlu0 %v1008, 64
    %v1462 = vpop.permute.xlu0 %1461
    %1463 = vrot.lane.b32.xlu0 %v1009, 64
    %v1464 = vpop.permute.xlu0 %1463
    %v1467 = vsel %vm1053, %v1008, %v1444
    %v1468 = vsel %vm1053, %v1009, %v1446
    %v1469 = vsel %vm1056, %v1467, %v1450
    %v1470 = vsel %vm1056, %v1468, %v1452
    %v1471 = vsel %vm1059, %v1469, %v1456
    %v1472 = vsel %vm1059, %v1470, %v1458
    %v1473 = vsel %vm1062, %v1471, %v1462
    %v1474 = vsel %vm1062, %v1472, %v1464
    %v1475 = vld [vmem:[#allocation8 + $0xf] sm:$0x1]
    %v1476 = vlaneseq
    %v1477 = vshrl.u32 %v1476, 7
    %v1478 = vsub.s32 0, %v1477
    %v1479 = vrot.slane %v1475, %v1478
    %v1480 = vmul.f32 %v1479, %v1473
    %v1481 = vmul.f32 %v1479, %v1474
    %v1482 = vadd.f32 %v1439, %v1480
    %v1483 = vadd.f32 %v1440, %v1481
    %1484 = vrot.lane.b32.xlu0 %v1008, 127
    %v1485 = vpop.permute.xlu0 %1484
    %1486 = vrot.lane.b32.xlu0 %v1009, 127
    %v1487 = vpop.permute.xlu0 %1486
    %1490 = vrot.lane.b32.xlu0 %v1008, 15
    %v1491 = vpop.permute.xlu0 %1490
    %1492 = vrot.lane.b32.xlu0 %v1009, 15
    %v1493 = vpop.permute.xlu0 %1492
    %1496 = vrot.lane.b32.xlu0 %v1008, 31
    %v1497 = vpop.permute.xlu0 %1496
    %1498 = vrot.lane.b32.xlu0 %v1009, 31
    %v1499 = vpop.permute.xlu0 %1498
    %1502 = vrot.lane.b32.xlu0 %v1008, 47
    %v1503 = vpop.permute.xlu0 %1502
    %1504 = vrot.lane.b32.xlu0 %v1009, 47
    %v1505 = vpop.permute.xlu0 %1504
    %1508 = vrot.lane.b32.xlu0 %v1008, 63
    %v1509 = vpop.permute.xlu0 %1508
    %1510 = vrot.lane.b32.xlu0 %v1009, 63
    %v1511 = vpop.permute.xlu0 %1510
    %v1514 = vsel %vm1053, %v1485, %v1491
    %v1515 = vsel %vm1053, %v1487, %v1493
    %v1516 = vsel %vm1056, %v1514, %v1497
    %v1517 = vsel %vm1056, %v1515, %v1499
    %v1518 = vsel %vm1059, %v1516, %v1503
    %v1519 = vsel %vm1059, %v1517, %v1505
    %v1520 = vsel %vm1062, %v1518, %v1509
    %v1521 = vsel %vm1062, %v1519, %v1511
    %v1522 = vld [vmem:[#allocation8 + $0x10] sm:$0x1]
    %v1523 = vlaneseq
    %v1524 = vshrl.u32 %v1523, 7
    %v1525 = vsub.s32 0, %v1524
    %v1526 = vrot.slane %v1522, %v1525
    %v1527 = vmul.f32 %v1526, %v1520
    %v1528 = vmul.f32 %v1526, %v1521
    %v1529 = vadd.f32 %v1482, %v1527
    %v1530 = vadd.f32 %v1483, %v1528
    %1531 = vrot.lane.b32.xlu0 %v1008, 126
    %v1532 = vpop.permute.xlu0 %1531
    %1533 = vrot.lane.b32.xlu0 %v1009, 126
    %v1534 = vpop.permute.xlu0 %1533
    %1537 = vrot.lane.b32.xlu0 %v1008, 14
    %v1538 = vpop.permute.xlu0 %1537
    %1539 = vrot.lane.b32.xlu0 %v1009, 14
    %v1540 = vpop.permute.xlu0 %1539
    %1543 = vrot.lane.b32.xlu0 %v1008, 30
    %v1544 = vpop.permute.xlu0 %1543
    %1545 = vrot.lane.b32.xlu0 %v1009, 30
    %v1546 = vpop.permute.xlu0 %1545
    %1549 = vrot.lane.b32.xlu0 %v1008, 46
    %v1550 = vpop.permute.xlu0 %1549
    %1551 = vrot.lane.b32.xlu0 %v1009, 46
    %v1552 = vpop.permute.xlu0 %1551
    %1555 = vrot.lane.b32.xlu0 %v1008, 62
    %v1556 = vpop.permute.xlu0 %1555
    %1557 = vrot.lane.b32.xlu0 %v1009, 62
    %v1558 = vpop.permute.xlu0 %1557
    %v1561 = vsel %vm1053, %v1532, %v1538
    %v1562 = vsel %vm1053, %v1534, %v1540
    %v1563 = vsel %vm1056, %v1561, %v1544
    %v1564 = vsel %vm1056, %v1562, %v1546
    %v1565 = vsel %vm1059, %v1563, %v1550
    %v1566 = vsel %vm1059, %v1564, %v1552
    %v1567 = vsel %vm1062, %v1565, %v1556
    %v1568 = vsel %vm1062, %v1566, %v1558
    %v1569 = vld [vmem:[#allocation8 + $0x11] sm:$0x1]
    %v1570 = vlaneseq
    %v1571 = vshrl.u32 %v1570, 7
    %v1572 = vsub.s32 0, %v1571
    %v1573 = vrot.slane %v1569, %v1572
    %v1574 = vmul.f32 %v1573, %v1567
    %v1575 = vmul.f32 %v1573, %v1568
    %v1576 = vadd.f32 %v1529, %v1574
    %v1577 = vadd.f32 %v1530, %v1575
    %v1578 = vld [vmem:[#allocation8 + $0x12] sm:$0x1]
    %v1579 = vlaneseq
    %v1580 = vshrl.u32 %v1579, 7
    %v1581 = vsub.s32 0, %v1580
    %v1582 = vrot.slane %v1578, %v1581
    %v1583 = vmul.f32 %v1582, %v1473
    %v1584 = vmul.f32 %v1582, %v1474
    %v1587 = vrot.slane %v1583, 1
    %v1588 = vrot.slane %v1584, 1
    %v1589 = vsel %vm321, %v1587, %v1588
    %v1592 = vadd.f32 %v1576, %v1589
    %v1593 = vadd.f32 %v1577, %v1588
    %v1594 = vld [vmem:[#allocation8 + $0x13] sm:$0x1]
    %v1595 = vlaneseq
    %v1596 = vshrl.u32 %v1595, 7
    %v1597 = vsub.s32 0, %v1596
    %v1598 = vrot.slane %v1594, %v1597
    %v1599 = vmul.f32 %v1598, %v1520
    %v1600 = vmul.f32 %v1598, %v1521
    %v1603 = vrot.slane %v1599, 1
    %v1604 = vrot.slane %v1600, 1
    %v1605 = vsel %vm321, %v1603, %v1604
    %v1608 = vadd.f32 %v1592, %v1605
    %v1609 = vadd.f32 %v1593, %v1604
    %v1610 = vld [vmem:[#allocation8 + $0x14] sm:$0x1]
    %v1611 = vlaneseq
    %v1612 = vshrl.u32 %v1611, 7
    %v1613 = vsub.s32 0, %v1612
    %v1614 = vrot.slane %v1610, %v1613
    %v1615 = vmul.f32 %v1614, %v1567
    %v1616 = vmul.f32 %v1614, %v1568
    %v1619 = vrot.slane %v1615, 1
    %v1620 = vrot.slane %v1616, 1
    %v1621 = vsel %vm321, %v1619, %v1620
    %v1624 = vadd.f32 %v1608, %v1621
    %v1625 = vadd.f32 %v1609, %v1620
    %v1626 = vld [vmem:[#allocation8 + $0x15] sm:$0x1]
    %v1627 = vlaneseq
    %v1628 = vshrl.u32 %v1627, 7
    %v1629 = vsub.s32 0, %v1628
    %v1630 = vrot.slane %v1626, %v1629
    %v1631 = vmul.f32 %v1630, %v1473
    %v1632 = vmul.f32 %v1630, %v1474
    %v1635 = vrot.slane %v1631, 2
    %v1636 = vrot.slane %v1632, 2
    %v1637 = vsel %vm667, %v1635, %v1636
    %v1640 = vadd.f32 %v1624, %v1637
    %v1641 = vadd.f32 %v1625, %v1636
    %v1642 = vld [vmem:[#allocation8 + $0x16] sm:$0x1]
    %v1643 = vlaneseq
    %v1644 = vshrl.u32 %v1643, 7
    %v1645 = vsub.s32 0, %v1644
    %v1646 = vrot.slane %v1642, %v1645
    %v1647 = vmul.f32 %v1646, %v1520
    %v1648 = vmul.f32 %v1646, %v1521
    %v1651 = vrot.slane %v1647, 2
    %v1652 = vrot.slane %v1648, 2
    %v1653 = vsel %vm667, %v1651, %v1652
    %v1656 = vadd.f32 %v1640, %v1653
    %v1657 = vadd.f32 %v1641, %v1652
    %v1658 = vld [vmem:[#allocation8 + $0x17] sm:$0x1]
    %v1659 = vlaneseq
    %v1660 = vshrl.u32 %v1659, 7
    %v1661 = vsub.s32 0, %v1660
    %v1662 = vrot.slane %v1658, %v1661
    %v1663 = vmul.f32 %v1662, %v1567
    %v1664 = vmul.f32 %v1662, %v1568
    %v1667 = vrot.slane %v1663, 2
    %v1668 = vrot.slane %v1664, 2
    %v1669 = vsel %vm667, %v1667, %v1668
    %v1672 = vadd.f32 %v1656, %v1669
    %v1673 = vadd.f32 %v1657, %v1668
    %1675 = vrot.lane.b32.xlu0 %v1010, 16
    %v1676 = vpop.permute.xlu0 %1675
    %1678 = vrot.lane.b32.xlu0 %v1010, 32
    %v1679 = vpop.permute.xlu0 %1678
    %1681 = vrot.lane.b32.xlu0 %v1010, 48
    %v1682 = vpop.permute.xlu0 %1681
    %1684 = vrot.lane.b32.xlu0 %v1010, 64
    %v1685 = vpop.permute.xlu0 %1684
    %v1687 = vsel %vm1053, %v1010, %v1676
    %v1688 = vsel %vm1056, %v1687, %v1679
    %v1689 = vsel %vm1059, %v1688, %v1682
    %v1690 = vsel %vm1062, %v1689, %v1685
    %v1691 = vld [vmem:[#allocation8 + $0x18] sm:$0x1]
    %v1692 = vlaneseq
    %v1693 = vshrl.u32 %v1692, 7
    %v1694 = vsub.s32 0, %v1693
    %v1695 = vrot.slane %v1691, %v1694
    %v1696 = vmul.f32 %v1695, %v1473
    %v1697 = vmul.f32 %v1695, %v1474
    %v1698 = vmul.f32 %v1695, %v1690
    %v1702 = vrot.slane %v1696, 3
    %v1703 = vrot.slane %v1697, 3
    %v1704 = vsel %vm1292, %v1702, %v1703
    %v1705 = vrot.slane %v1698, 3
    %v1706 = vsel %vm1292, %v1703, %v1705
    %v1709 = vadd.f32 %v1672, %v1704
    %v1710 = vadd.f32 %v1673, %v1706
    %1711 = vrot.lane.b32.xlu0 %v1010, 127
    %v1712 = vpop.permute.xlu0 %1711
    %1714 = vrot.lane.b32.xlu0 %v1010, 15
    %v1715 = vpop.permute.xlu0 %1714
    %1717 = vrot.lane.b32.xlu0 %v1010, 31
    %v1718 = vpop.permute.xlu0 %1717
    %1720 = vrot.lane.b32.xlu0 %v1010, 47
    %v1721 = vpop.permute.xlu0 %1720
    %1723 = vrot.lane.b32.xlu0 %v1010, 63
    %v1724 = vpop.permute.xlu0 %1723
    %v1726 = vsel %vm1053, %v1712, %v1715
    %v1727 = vsel %vm1056, %v1726, %v1718
    %v1728 = vsel %vm1059, %v1727, %v1721
    %v1729 = vsel %vm1062, %v1728, %v1724
    %v1730 = vld [vmem:[#allocation8 + $0x19] sm:$0x1]
    %v1731 = vlaneseq
    %v1732 = vshrl.u32 %v1731, 7
    %v1733 = vsub.s32 0, %v1732
    %v1734 = vrot.slane %v1730, %v1733
    %v1735 = vmul.f32 %v1734, %v1520
    %v1736 = vmul.f32 %v1734, %v1521
    %v1737 = vmul.f32 %v1734, %v1729
    %v1741 = vrot.slane %v1735, 3
    %v1742 = vrot.slane %v1736, 3
    %v1743 = vsel %vm1292, %v1741, %v1742
    %v1744 = vrot.slane %v1737, 3
    %v1745 = vsel %vm1292, %v1742, %v1744
    %v1748 = vadd.f32 %v1709, %v1743
    %v1749 = vadd.f32 %v1710, %v1745
    %1750 = vrot.lane.b32.xlu0 %v1010, 126
    %v1751 = vpop.permute.xlu0 %1750
    %1753 = vrot.lane.b32.xlu0 %v1010, 14
    %v1754 = vpop.permute.xlu0 %1753
    %1756 = vrot.lane.b32.xlu0 %v1010, 30
    %v1757 = vpop.permute.xlu0 %1756
    %1759 = vrot.lane.b32.xlu0 %v1010, 46
    %v1760 = vpop.permute.xlu0 %1759
    %1762 = vrot.lane.b32.xlu0 %v1010, 62
    %v1763 = vpop.permute.xlu0 %1762
    %v1765 = vsel %vm1053, %v1751, %v1754
    %v1766 = vsel %vm1056, %v1765, %v1757
    %v1767 = vsel %vm1059, %v1766, %v1760
    %v1768 = vsel %vm1062, %v1767, %v1763
    %v1769 = vld [vmem:[#allocation8 + $0x1a] sm:$0x1]
    %v1770 = vlaneseq
    %v1771 = vshrl.u32 %v1770, 7
    %v1772 = vsub.s32 0, %v1771
    %v1773 = vrot.slane %v1769, %v1772
    %v1774 = vmul.f32 %v1773, %v1567
    %v1775 = vmul.f32 %v1773, %v1568
    %v1776 = vmul.f32 %v1773, %v1768
    %v1780 = vrot.slane %v1774, 3
    %v1781 = vrot.slane %v1775, 3
    %v1782 = vsel %vm1292, %v1780, %v1781
    %v1783 = vrot.slane %v1776, 3
    %v1784 = vsel %vm1292, %v1781, %v1783
    %v1787 = vadd.f32 %v1748, %v1782
    %v1788 = vadd.f32 %v1749, %v1784
    %v1789 = vld [vmem:[#allocation8 + $0x1b] sm:$0x1]
    %v1790 = vlaneseq
    %v1791 = vshrl.u32 %v1790, 7
    %v1792 = vsub.s32 0, %v1791
    %v1793 = vrot.slane %v1789, %v1792
    %v1794 = vmul.f32 %v1793, %v1473
    %v1795 = vmul.f32 %v1793, %v1474
    %v1796 = vmul.f32 %v1793, %v1690
    %v1800 = vrot.slane %v1794, 4
    %v1801 = vrot.slane %v1795, 4
    %v1802 = vsel %vm1391, %v1800, %v1801
    %v1803 = vrot.slane %v1796, 4
    %v1804 = vsel %vm1391, %v1801, %v1803
    %v1807 = vadd.f32 %v1787, %v1802
    %v1808 = vadd.f32 %v1788, %v1804
    %v1809 = vld [vmem:[#allocation8 + $0x1c] sm:$0x1]
    %v1810 = vlaneseq
    %v1811 = vshrl.u32 %v1810, 7
    %v1812 = vsub.s32 0, %v1811
    %v1813 = vrot.slane %v1809, %v1812
    %v1814 = vmul.f32 %v1813, %v1520
    %v1815 = vmul.f32 %v1813, %v1521
    %v1816 = vmul.f32 %v1813, %v1729
    %v1820 = vrot.slane %v1814, 4
    %v1821 = vrot.slane %v1815, 4
    %v1822 = vsel %vm1391, %v1820, %v1821
    %v1823 = vrot.slane %v1816, 4
    %v1824 = vsel %vm1391, %v1821, %v1823
    %v1827 = vadd.f32 %v1807, %v1822
    %v1828 = vadd.f32 %v1808, %v1824
    %v1829 = vld [vmem:[#allocation8 + $0x1d] sm:$0x1]
    %v1830 = vlaneseq
    %v1831 = vshrl.u32 %v1830, 7
    %v1832 = vsub.s32 0, %v1831
    %v1833 = vrot.slane %v1829, %v1832
    %v1834 = vmul.f32 %v1833, %v1567
    %v1835 = vmul.f32 %v1833, %v1568
    %v1836 = vmul.f32 %v1833, %v1768
    %v1840 = vrot.slane %v1834, 4
    %v1841 = vrot.slane %v1835, 4
    %v1842 = vsel %vm1391, %v1840, %v1841
    %v1843 = vrot.slane %v1836, 4
    %v1844 = vsel %vm1391, %v1841, %v1843
    %v1847 = vadd.f32 %v1827, %v1842
    %v1848 = vadd.f32 %v1828, %v1844
    %1851 = vrot.lane.b32.xlu0 %v1011, 16
    %v1852 = vpop.permute.xlu0 %1851
    %1853 = vrot.lane.b32.xlu0 %v1012, 16
    %v1854 = vpop.permute.xlu0 %1853
    %1857 = vrot.lane.b32.xlu0 %v1011, 32
    %v1858 = vpop.permute.xlu0 %1857
    %1859 = vrot.lane.b32.xlu0 %v1012, 32
    %v1860 = vpop.permute.xlu0 %1859
    %1863 = vrot.lane.b32.xlu0 %v1011, 48
    %v1864 = vpop.permute.xlu0 %1863
    %1865 = vrot.lane.b32.xlu0 %v1012, 48
    %v1866 = vpop.permute.xlu0 %1865
    %1869 = vrot.lane.b32.xlu0 %v1011, 64
    %v1870 = vpop.permute.xlu0 %1869
    %1871 = vrot.lane.b32.xlu0 %v1012, 64
    %v1872 = vpop.permute.xlu0 %1871
    %v1875 = vsel %vm1053, %v1011, %v1852
    %v1876 = vsel %vm1053, %v1012, %v1854
    %v1877 = vsel %vm1056, %v1875, %v1858
    %v1878 = vsel %vm1056, %v1876, %v1860
    %v1879 = vsel %vm1059, %v1877, %v1864
    %v1880 = vsel %vm1059, %v1878, %v1866
    %v1881 = vsel %vm1062, %v1879, %v1870
    %v1882 = vsel %vm1062, %v1880, %v1872
    %v1883 = vld [vmem:[#allocation8 + $0x1e] sm:$0x1]
    %v1884 = vlaneseq
    %v1885 = vshrl.u32 %v1884, 7
    %v1886 = vsub.s32 0, %v1885
    %v1887 = vrot.slane %v1883, %v1886
    %v1888 = vmul.f32 %v1887, %v1881
    %v1889 = vmul.f32 %v1887, %v1882
    %v1890 = vadd.f32 %v1847, %v1888
    %v1891 = vadd.f32 %v1848, %v1889
    %1892 = vrot.lane.b32.xlu0 %v1011, 127
    %v1893 = vpop.permute.xlu0 %1892
    %1894 = vrot.lane.b32.xlu0 %v1012, 127
    %v1895 = vpop.permute.xlu0 %1894
    %1898 = vrot.lane.b32.xlu0 %v1011, 15
    %v1899 = vpop.permute.xlu0 %1898
    %1900 = vrot.lane.b32.xlu0 %v1012, 15
    %v1901 = vpop.permute.xlu0 %1900
    %1904 = vrot.lane.b32.xlu0 %v1011, 31
    %v1905 = vpop.permute.xlu0 %1904
    %1906 = vrot.lane.b32.xlu0 %v1012, 31
    %v1907 = vpop.permute.xlu0 %1906
    %1910 = vrot.lane.b32.xlu0 %v1011, 47
    %v1911 = vpop.permute.xlu0 %1910
    %1912 = vrot.lane.b32.xlu0 %v1012, 47
    %v1913 = vpop.permute.xlu0 %1912
    %1916 = vrot.lane.b32.xlu0 %v1011, 63
    %v1917 = vpop.permute.xlu0 %1916
    %1918 = vrot.lane.b32.xlu0 %v1012, 63
    %v1919 = vpop.permute.xlu0 %1918
    %v1922 = vsel %vm1053, %v1893, %v1899
    %v1923 = vsel %vm1053, %v1895, %v1901
    %v1924 = vsel %vm1056, %v1922, %v1905
    %v1925 = vsel %vm1056, %v1923, %v1907
    %v1926 = vsel %vm1059, %v1924, %v1911
    %v1927 = vsel %vm1059, %v1925, %v1913
    %v1928 = vsel %vm1062, %v1926, %v1917
    %v1929 = vsel %vm1062, %v1927, %v1919
    %v1930 = vld [vmem:[#allocation8 + $0x1f] sm:$0x1]
    %v1931 = vlaneseq
    %v1932 = vshrl.u32 %v1931, 7
    %v1933 = vsub.s32 0, %v1932
    %v1934 = vrot.slane %v1930, %v1933
    %v1935 = vmul.f32 %v1934, %v1928
    %v1936 = vmul.f32 %v1934, %v1929
    %v1937 = vadd.f32 %v1890, %v1935
    %v1938 = vadd.f32 %v1891, %v1936
    %1939 = vrot.lane.b32.xlu0 %v1011, 126
    %v1940 = vpop.permute.xlu0 %1939
    %1941 = vrot.lane.b32.xlu0 %v1012, 126
    %v1942 = vpop.permute.xlu0 %1941
    %1945 = vrot.lane.b32.xlu0 %v1011, 14
    %v1946 = vpop.permute.xlu0 %1945
    %1947 = vrot.lane.b32.xlu0 %v1012, 14
    %v1948 = vpop.permute.xlu0 %1947
    %1951 = vrot.lane.b32.xlu0 %v1011, 30
    %v1952 = vpop.permute.xlu0 %1951
    %1953 = vrot.lane.b32.xlu0 %v1012, 30
    %v1954 = vpop.permute.xlu0 %1953
    %1957 = vrot.lane.b32.xlu0 %v1011, 46
    %v1958 = vpop.permute.xlu0 %1957
    %1959 = vrot.lane.b32.xlu0 %v1012, 46
    %v1960 = vpop.permute.xlu0 %1959
    %1963 = vrot.lane.b32.xlu0 %v1011, 62
    %v1964 = vpop.permute.xlu0 %1963
    %1965 = vrot.lane.b32.xlu0 %v1012, 62
    %v1966 = vpop.permute.xlu0 %1965
    %v1969 = vsel %vm1053, %v1940, %v1946
    %v1970 = vsel %vm1053, %v1942, %v1948
    %v1971 = vsel %vm1056, %v1969, %v1952
    %v1972 = vsel %vm1056, %v1970, %v1954
    %v1973 = vsel %vm1059, %v1971, %v1958
    %v1974 = vsel %vm1059, %v1972, %v1960
    %v1975 = vsel %vm1062, %v1973, %v1964
    %v1976 = vsel %vm1062, %v1974, %v1966
    %v1977 = vld [vmem:[#allocation8 + $0x20] sm:$0x1]
    %v1978 = vlaneseq
    %v1979 = vshrl.u32 %v1978, 7
    %v1980 = vsub.s32 0, %v1979
    %v1981 = vrot.slane %v1977, %v1980
    %v1982 = vmul.f32 %v1981, %v1975
    %v1983 = vmul.f32 %v1981, %v1976
    %v1984 = vadd.f32 %v1937, %v1982
    %v1985 = vadd.f32 %v1938, %v1983
    %v1986 = vld [vmem:[#allocation8 + $0x21] sm:$0x1]
    %v1987 = vlaneseq
    %v1988 = vshrl.u32 %v1987, 7
    %v1989 = vsub.s32 0, %v1988
    %v1990 = vrot.slane %v1986, %v1989
    %v1991 = vmul.f32 %v1990, %v1881
    %v1992 = vmul.f32 %v1990, %v1882
    %v1995 = vrot.slane %v1991, 1
    %v1996 = vrot.slane %v1992, 1
    %v1997 = vsel %vm321, %v1995, %v1996
    %v2000 = vadd.f32 %v1984, %v1997
    %v2001 = vadd.f32 %v1985, %v1996
    %v2002 = vld [vmem:[#allocation8 + $0x22] sm:$0x1]
    %v2003 = vlaneseq
    %v2004 = vshrl.u32 %v2003, 7
    %v2005 = vsub.s32 0, %v2004
    %v2006 = vrot.slane %v2002, %v2005
    %v2007 = vmul.f32 %v2006, %v1928
    %v2008 = vmul.f32 %v2006, %v1929
    %v2011 = vrot.slane %v2007, 1
    %v2012 = vrot.slane %v2008, 1
    %v2013 = vsel %vm321, %v2011, %v2012
    %v2016 = vadd.f32 %v2000, %v2013
    %v2017 = vadd.f32 %v2001, %v2012
    %v2018 = vld [vmem:[#allocation8 + $0x23] sm:$0x1]
    %v2019 = vlaneseq
    %v2020 = vshrl.u32 %v2019, 7
    %v2021 = vsub.s32 0, %v2020
    %v2022 = vrot.slane %v2018, %v2021
    %v2023 = vmul.f32 %v2022, %v1975
    %v2024 = vmul.f32 %v2022, %v1976
    %v2027 = vrot.slane %v2023, 1
    %v2028 = vrot.slane %v2024, 1
    %v2029 = vsel %vm321, %v2027, %v2028
    %v2032 = vadd.f32 %v2016, %v2029
    %v2033 = vadd.f32 %v2017, %v2028
    %v2034 = vld [vmem:[#allocation8 + $0x24] sm:$0x1]
    %v2035 = vlaneseq
    %v2036 = vshrl.u32 %v2035, 7
    %v2037 = vsub.s32 0, %v2036
    %v2038 = vrot.slane %v2034, %v2037
    %v2039 = vmul.f32 %v2038, %v1881
    %v2040 = vmul.f32 %v2038, %v1882
    %v2043 = vrot.slane %v2039, 2
    %v2044 = vrot.slane %v2040, 2
    %v2045 = vsel %vm667, %v2043, %v2044
    %v2048 = vadd.f32 %v2032, %v2045
    %v2049 = vadd.f32 %v2033, %v2044
    %v2050 = vld [vmem:[#allocation8 + $0x25] sm:$0x1]
    %v2051 = vlaneseq
    %v2052 = vshrl.u32 %v2051, 7
    %v2053 = vsub.s32 0, %v2052
    %v2054 = vrot.slane %v2050, %v2053
    %v2055 = vmul.f32 %v2054, %v1928
    %v2056 = vmul.f32 %v2054, %v1929
    %v2059 = vrot.slane %v2055, 2
    %v2060 = vrot.slane %v2056, 2
    %v2061 = vsel %vm667, %v2059, %v2060
    %v2064 = vadd.f32 %v2048, %v2061
    %v2065 = vadd.f32 %v2049, %v2060
    %v2066 = vld [vmem:[#allocation8 + $0x26] sm:$0x1]
    %v2067 = vlaneseq
    %v2068 = vshrl.u32 %v2067, 7
    %v2069 = vsub.s32 0, %v2068
    %v2070 = vrot.slane %v2066, %v2069
    %v2071 = vmul.f32 %v2070, %v1975
    %v2072 = vmul.f32 %v2070, %v1976
    %v2075 = vrot.slane %v2071, 2
    %v2076 = vrot.slane %v2072, 2
    %v2077 = vsel %vm667, %v2075, %v2076
    %v2080 = vadd.f32 %v2064, %v2077
    %v2081 = vadd.f32 %v2065, %v2076
    %2083 = vrot.lane.b32.xlu0 %v1013, 16
    %v2084 = vpop.permute.xlu0 %2083
    %2086 = vrot.lane.b32.xlu0 %v1013, 32
    %v2087 = vpop.permute.xlu0 %2086
    %2089 = vrot.lane.b32.xlu0 %v1013, 48
    %v2090 = vpop.permute.xlu0 %2089
    %2092 = vrot.lane.b32.xlu0 %v1013, 64
    %v2093 = vpop.permute.xlu0 %2092
    %v2095 = vsel %vm1053, %v1013, %v2084
    %v2096 = vsel %vm1056, %v2095, %v2087
    %v2097 = vsel %vm1059, %v2096, %v2090
    %v2098 = vsel %vm1062, %v2097, %v2093
    %v2099 = vld [vmem:[#allocation8 + $0x27] sm:$0x1]
    %v2100 = vlaneseq
    %v2101 = vshrl.u32 %v2100, 7
    %v2102 = vsub.s32 0, %v2101
    %v2103 = vrot.slane %v2099, %v2102
    %v2104 = vmul.f32 %v2103, %v1881
    %v2105 = vmul.f32 %v2103, %v1882
    %v2106 = vmul.f32 %v2103, %v2098
    %v2110 = vrot.slane %v2104, 3
    %v2111 = vrot.slane %v2105, 3
    %v2112 = vsel %vm1292, %v2110, %v2111
    %v2113 = vrot.slane %v2106, 3
    %v2114 = vsel %vm1292, %v2111, %v2113
    %v2117 = vadd.f32 %v2080, %v2112
    %v2118 = vadd.f32 %v2081, %v2114
    %2119 = vrot.lane.b32.xlu0 %v1013, 127
    %v2120 = vpop.permute.xlu0 %2119
    %2122 = vrot.lane.b32.xlu0 %v1013, 15
    %v2123 = vpop.permute.xlu0 %2122
    %2125 = vrot.lane.b32.xlu0 %v1013, 31
    %v2126 = vpop.permute.xlu0 %2125
    %2128 = vrot.lane.b32.xlu0 %v1013, 47
    %v2129 = vpop.permute.xlu0 %2128
    %2131 = vrot.lane.b32.xlu0 %v1013, 63
    %v2132 = vpop.permute.xlu0 %2131
    %v2134 = vsel %vm1053, %v2120, %v2123
    %v2135 = vsel %vm1056, %v2134, %v2126
    %v2136 = vsel %vm1059, %v2135, %v2129
    %v2137 = vsel %vm1062, %v2136, %v2132
    %v2138 = vld [vmem:[#allocation8 + $0x28] sm:$0x1]
    %v2139 = vlaneseq
    %v2140 = vshrl.u32 %v2139, 7
    %v2141 = vsub.s32 0, %v2140
    %v2142 = vrot.slane %v2138, %v2141
    %v2143 = vmul.f32 %v2142, %v1928
    %v2144 = vmul.f32 %v2142, %v1929
    %v2145 = vmul.f32 %v2142, %v2137
    %v2149 = vrot.slane %v2143, 3
    %v2150 = vrot.slane %v2144, 3
    %v2151 = vsel %vm1292, %v2149, %v2150
    %v2152 = vrot.slane %v2145, 3
    %v2153 = vsel %vm1292, %v2150, %v2152
    %v2156 = vadd.f32 %v2117, %v2151
    %v2157 = vadd.f32 %v2118, %v2153
    %2158 = vrot.lane.b32.xlu0 %v1013, 126
    %v2159 = vpop.permute.xlu0 %2158
    %2161 = vrot.lane.b32.xlu0 %v1013, 14
    %v2162 = vpop.permute.xlu0 %2161
    %2164 = vrot.lane.b32.xlu0 %v1013, 30
    %v2165 = vpop.permute.xlu0 %2164
    %2167 = vrot.lane.b32.xlu0 %v1013, 46
    %v2168 = vpop.permute.xlu0 %2167
    %2170 = vrot.lane.b32.xlu0 %v1013, 62
    %v2171 = vpop.permute.xlu0 %2170
    %v2173 = vsel %vm1053, %v2159, %v2162
    %v2174 = vsel %vm1056, %v2173, %v2165
    %v2175 = vsel %vm1059, %v2174, %v2168
    %v2176 = vsel %vm1062, %v2175, %v2171
    %v2177 = vld [vmem:[#allocation8 + $0x29] sm:$0x1]
    %v2178 = vlaneseq
    %v2179 = vshrl.u32 %v2178, 7
    %v2180 = vsub.s32 0, %v2179
    %v2181 = vrot.slane %v2177, %v2180
    %v2182 = vmul.f32 %v2181, %v1975
    %v2183 = vmul.f32 %v2181, %v1976
    %v2184 = vmul.f32 %v2181, %v2176
    %v2188 = vrot.slane %v2182, 3
    %v2189 = vrot.slane %v2183, 3
    %v2190 = vsel %vm1292, %v2188, %v2189
    %v2191 = vrot.slane %v2184, 3
    %v2192 = vsel %vm1292, %v2189, %v2191
    %v2195 = vadd.f32 %v2156, %v2190
    %v2196 = vadd.f32 %v2157, %v2192
    %v2197 = vld [vmem:[#allocation8 + $0x2a] sm:$0x1]
    %v2198 = vlaneseq
    %v2199 = vshrl.u32 %v2198, 7
    %v2200 = vsub.s32 0, %v2199
    %v2201 = vrot.slane %v2197, %v2200
    %v2202 = vmul.f32 %v2201, %v1881
    %v2203 = vmul.f32 %v2201, %v1882
    %v2204 = vmul.f32 %v2201, %v2098
    %v2208 = vrot.slane %v2202, 4
    %v2209 = vrot.slane %v2203, 4
    %v2210 = vsel %vm1391, %v2208, %v2209
    %v2211 = vrot.slane %v2204, 4
    %v2212 = vsel %vm1391, %v2209, %v2211
    %v2215 = vadd.f32 %v2195, %v2210
    %v2216 = vadd.f32 %v2196, %v2212
    %v2217 = vld [vmem:[#allocation8 + $0x2b] sm:$0x1]
    %v2218 = vlaneseq
    %v2219 = vshrl.u32 %v2218, 7
    %v2220 = vsub.s32 0, %v2219
    %v2221 = vrot.slane %v2217, %v2220
    %v2222 = vmul.f32 %v2221, %v1928
    %v2223 = vmul.f32 %v2221, %v1929
    %v2224 = vmul.f32 %v2221, %v2137
    %v2228 = vrot.slane %v2222, 4
    %v2229 = vrot.slane %v2223, 4
    %v2230 = vsel %vm1391, %v2228, %v2229
    %v2231 = vrot.slane %v2224, 4
    %v2232 = vsel %vm1391, %v2229, %v2231
    %v2235 = vadd.f32 %v2215, %v2230
    %v2236 = vadd.f32 %v2216, %v2232
    %v2237 = vld [vmem:[#allocation8 + $0x2c] sm:$0x1]
    %v2238 = vlaneseq
    %v2239 = vshrl.u32 %v2238, 7
    %v2240 = vsub.s32 0, %v2239
    %v2241 = vrot.slane %v2237, %v2240
    %v2242 = vmul.f32 %v2241, %v1975
    %v2243 = vmul.f32 %v2241, %v1976
    %v2244 = vmul.f32 %v2241, %v2176
    %v2248 = vrot.slane %v2242, 4
    %v2249 = vrot.slane %v2243, 4
    %v2250 = vsel %vm1391, %v2248, %v2249
    %v2251 = vrot.slane %v2244, 4
    %v2252 = vsel %vm1391, %v2249, %v2251
    %v2255 = vadd.f32 %v2235, %v2250
    %v2256 = vadd.f32 %v2236, %v2252
    %2259 = vrot.lane.b32.xlu0 %v1014, 16
    %v2260 = vpop.permute.xlu0 %2259
    %2261 = vrot.lane.b32.xlu0 %v1015, 16
    %v2262 = vpop.permute.xlu0 %2261
    %2265 = vrot.lane.b32.xlu0 %v1014, 32
    %v2266 = vpop.permute.xlu0 %2265
    %2267 = vrot.lane.b32.xlu0 %v1015, 32
    %v2268 = vpop.permute.xlu0 %2267
    %2271 = vrot.lane.b32.xlu0 %v1014, 48
    %v2272 = vpop.permute.xlu0 %2271
    %2273 = vrot.lane.b32.xlu0 %v1015, 48
    %v2274 = vpop.permute.xlu0 %2273
    %2277 = vrot.lane.b32.xlu0 %v1014, 64
    %v2278 = vpop.permute.xlu0 %2277
    %2279 = vrot.lane.b32.xlu0 %v1015, 64
    %v2280 = vpop.permute.xlu0 %2279
    %v2283 = vsel %vm1053, %v1014, %v2260
    %v2284 = vsel %vm1053, %v1015, %v2262
    %v2285 = vsel %vm1056, %v2283, %v2266
    %v2286 = vsel %vm1056, %v2284, %v2268
    %v2287 = vsel %vm1059, %v2285, %v2272
    %v2288 = vsel %vm1059, %v2286, %v2274
    %v2289 = vsel %vm1062, %v2287, %v2278
    %v2290 = vsel %vm1062, %v2288, %v2280
    %v2291 = vld [vmem:[#allocation8 + $0x2d] sm:$0x1]
    %v2292 = vlaneseq
    %v2293 = vshrl.u32 %v2292, 7
    %v2294 = vsub.s32 0, %v2293
    %v2295 = vrot.slane %v2291, %v2294
    %v2296 = vmul.f32 %v2295, %v2289
    %v2297 = vmul.f32 %v2295, %v2290
    %v2298 = vadd.f32 %v2255, %v2296
    %v2299 = vadd.f32 %v2256, %v2297
    %2300 = vrot.lane.b32.xlu0 %v1014, 127
    %v2301 = vpop.permute.xlu0 %2300
    %2302 = vrot.lane.b32.xlu0 %v1015, 127
    %v2303 = vpop.permute.xlu0 %2302
    %2306 = vrot.lane.b32.xlu0 %v1014, 15
    %v2307 = vpop.permute.xlu0 %2306
    %2308 = vrot.lane.b32.xlu0 %v1015, 15
    %v2309 = vpop.permute.xlu0 %2308
    %2312 = vrot.lane.b32.xlu0 %v1014, 31
    %v2313 = vpop.permute.xlu0 %2312
    %2314 = vrot.lane.b32.xlu0 %v1015, 31
    %v2315 = vpop.permute.xlu0 %2314
    %2318 = vrot.lane.b32.xlu0 %v1014, 47
    %v2319 = vpop.permute.xlu0 %2318
    %2320 = vrot.lane.b32.xlu0 %v1015, 47
    %v2321 = vpop.permute.xlu0 %2320
    %2324 = vrot.lane.b32.xlu0 %v1014, 63
    %v2325 = vpop.permute.xlu0 %2324
    %2326 = vrot.lane.b32.xlu0 %v1015, 63
    %v2327 = vpop.permute.xlu0 %2326
    %v2330 = vsel %vm1053, %v2301, %v2307
    %v2331 = vsel %vm1053, %v2303, %v2309
    %v2332 = vsel %vm1056, %v2330, %v2313
    %v2333 = vsel %vm1056, %v2331, %v2315
    %v2334 = vsel %vm1059, %v2332, %v2319
    %v2335 = vsel %vm1059, %v2333, %v2321
    %v2336 = vsel %vm1062, %v2334, %v2325
    %v2337 = vsel %vm1062, %v2335, %v2327
    %v2338 = vld [vmem:[#allocation8 + $0x2e] sm:$0x1]
    %v2339 = vlaneseq
    %v2340 = vshrl.u32 %v2339, 7
    %v2341 = vsub.s32 0, %v2340
    %v2342 = vrot.slane %v2338, %v2341
    %v2343 = vmul.f32 %v2342, %v2336
    %v2344 = vmul.f32 %v2342, %v2337
    %v2345 = vadd.f32 %v2298, %v2343
    %v2346 = vadd.f32 %v2299, %v2344
    %2347 = vrot.lane.b32.xlu0 %v1014, 126
    %v2348 = vpop.permute.xlu0 %2347
    %2349 = vrot.lane.b32.xlu0 %v1015, 126
    %v2350 = vpop.permute.xlu0 %2349
    %2353 = vrot.lane.b32.xlu0 %v1014, 14
    %v2354 = vpop.permute.xlu0 %2353
    %2355 = vrot.lane.b32.xlu0 %v1015, 14
    %v2356 = vpop.permute.xlu0 %2355
    %2359 = vrot.lane.b32.xlu0 %v1014, 30
    %v2360 = vpop.permute.xlu0 %2359
    %2361 = vrot.lane.b32.xlu0 %v1015, 30
    %v2362 = vpop.permute.xlu0 %2361
    %2365 = vrot.lane.b32.xlu0 %v1014, 46
    %v2366 = vpop.permute.xlu0 %2365
    %2367 = vrot.lane.b32.xlu0 %v1015, 46
    %v2368 = vpop.permute.xlu0 %2367
    %2371 = vrot.lane.b32.xlu0 %v1014, 62
    %v2372 = vpop.permute.xlu0 %2371
    %2373 = vrot.lane.b32.xlu0 %v1015, 62
    %v2374 = vpop.permute.xlu0 %2373
    %v2377 = vsel %vm1053, %v2348, %v2354
    %v2378 = vsel %vm1053, %v2350, %v2356
    %v2379 = vsel %vm1056, %v2377, %v2360
    %v2380 = vsel %vm1056, %v2378, %v2362
    %v2381 = vsel %vm1059, %v2379, %v2366
    %v2382 = vsel %vm1059, %v2380, %v2368
    %v2383 = vsel %vm1062, %v2381, %v2372
    %v2384 = vsel %vm1062, %v2382, %v2374
    %v2385 = vld [vmem:[#allocation8 + $0x2f] sm:$0x1]
    %v2386 = vlaneseq
    %v2387 = vshrl.u32 %v2386, 7
    %v2388 = vsub.s32 0, %v2387
    %v2389 = vrot.slane %v2385, %v2388
    %v2390 = vmul.f32 %v2389, %v2383
    %v2391 = vmul.f32 %v2389, %v2384
    %v2392 = vadd.f32 %v2345, %v2390
    %v2393 = vadd.f32 %v2346, %v2391
    %v2394 = vld [vmem:[#allocation8 + $0x30] sm:$0x1]
    %v2395 = vlaneseq
    %v2396 = vshrl.u32 %v2395, 7
    %v2397 = vsub.s32 0, %v2396
    %v2398 = vrot.slane %v2394, %v2397
    %v2399 = vmul.f32 %v2398, %v2289
    %v2400 = vmul.f32 %v2398, %v2290
    %v2403 = vrot.slane %v2399, 1
    %v2404 = vrot.slane %v2400, 1
    %v2405 = vsel %vm321, %v2403, %v2404
    %v2408 = vadd.f32 %v2392, %v2405
    %v2409 = vadd.f32 %v2393, %v2404
    %v2410 = vld [vmem:[#allocation8 + $0x31] sm:$0x1]
    %v2411 = vlaneseq
    %v2412 = vshrl.u32 %v2411, 7
    %v2413 = vsub.s32 0, %v2412
    %v2414 = vrot.slane %v2410, %v2413
    %v2415 = vmul.f32 %v2414, %v2336
    %v2416 = vmul.f32 %v2414, %v2337
    %v2419 = vrot.slane %v2415, 1
    %v2420 = vrot.slane %v2416, 1
    %v2421 = vsel %vm321, %v2419, %v2420
    %v2424 = vadd.f32 %v2408, %v2421
    %v2425 = vadd.f32 %v2409, %v2420
    %v2426 = vld [vmem:[#allocation8 + $0x32] sm:$0x1]
    %v2427 = vlaneseq
    %v2428 = vshrl.u32 %v2427, 7
    %v2429 = vsub.s32 0, %v2428
    %v2430 = vrot.slane %v2426, %v2429
    %v2431 = vmul.f32 %v2430, %v2383
    %v2432 = vmul.f32 %v2430, %v2384
    %v2435 = vrot.slane %v2431, 1
    %v2436 = vrot.slane %v2432, 1
    %v2437 = vsel %vm321, %v2435, %v2436
    %v2440 = vadd.f32 %v2424, %v2437
    %v2441 = vadd.f32 %v2425, %v2436
    %v2442 = vld [vmem:[#allocation8 + $0x33] sm:$0x1]
    %v2443 = vlaneseq
    %v2444 = vshrl.u32 %v2443, 7
    %v2445 = vsub.s32 0, %v2444
    %v2446 = vrot.slane %v2442, %v2445
    %v2447 = vmul.f32 %v2446, %v2289
    %v2448 = vmul.f32 %v2446, %v2290
    %v2451 = vrot.slane %v2447, 2
    %v2452 = vrot.slane %v2448, 2
    %v2453 = vsel %vm667, %v2451, %v2452
    %v2456 = vadd.f32 %v2440, %v2453
    %v2457 = vadd.f32 %v2441, %v2452
    %v2458 = vld [vmem:[#allocation8 + $0x34] sm:$0x1]
    %v2459 = vlaneseq
    %v2460 = vshrl.u32 %v2459, 7
    %v2461 = vsub.s32 0, %v2460
    %v2462 = vrot.slane %v2458, %v2461
    %v2463 = vmul.f32 %v2462, %v2336
    %v2464 = vmul.f32 %v2462, %v2337
    %v2467 = vrot.slane %v2463, 2
    %v2468 = vrot.slane %v2464, 2
    %v2469 = vsel %vm667, %v2467, %v2468
    %v2472 = vadd.f32 %v2456, %v2469
    %v2473 = vadd.f32 %v2457, %v2468
    %v2474 = vld [vmem:[#allocation8 + $0x35] sm:$0x1]
    %v2475 = vlaneseq
    %v2476 = vshrl.u32 %v2475, 7
    %v2477 = vsub.s32 0, %v2476
    %v2478 = vrot.slane %v2474, %v2477
    %v2479 = vmul.f32 %v2478, %v2383
    %v2480 = vmul.f32 %v2478, %v2384
    %v2483 = vrot.slane %v2479, 2
    %v2484 = vrot.slane %v2480, 2
    %v2485 = vsel %vm667, %v2483, %v2484
    %v2488 = vadd.f32 %v2472, %v2485
    %v2489 = vadd.f32 %v2473, %v2484
    %2491 = vrot.lane.b32.xlu0 %v1016, 16
    %v2492 = vpop.permute.xlu0 %2491
    %2494 = vrot.lane.b32.xlu0 %v1016, 32
    %v2495 = vpop.permute.xlu0 %2494
    %2497 = vrot.lane.b32.xlu0 %v1016, 48
    %v2498 = vpop.permute.xlu0 %2497
    %2500 = vrot.lane.b32.xlu0 %v1016, 64
    %v2501 = vpop.permute.xlu0 %2500
    %v2503 = vsel %vm1053, %v1016, %v2492
    %v2504 = vsel %vm1056, %v2503, %v2495
    %v2505 = vsel %vm1059, %v2504, %v2498
    %v2506 = vsel %vm1062, %v2505, %v2501
    %v2507 = vld [vmem:[#allocation8 + $0x36] sm:$0x1]
    %v2508 = vlaneseq
    %v2509 = vshrl.u32 %v2508, 7
    %v2510 = vsub.s32 0, %v2509
    %v2511 = vrot.slane %v2507, %v2510
    %v2512 = vmul.f32 %v2511, %v2289
    %v2513 = vmul.f32 %v2511, %v2290
    %v2514 = vmul.f32 %v2511, %v2506
    %v2518 = vrot.slane %v2512, 3
    %v2519 = vrot.slane %v2513, 3
    %v2520 = vsel %vm1292, %v2518, %v2519
    %v2521 = vrot.slane %v2514, 3
    %v2522 = vsel %vm1292, %v2519, %v2521
    %v2525 = vadd.f32 %v2488, %v2520
    %v2526 = vadd.f32 %v2489, %v2522
    %2527 = vrot.lane.b32.xlu0 %v1016, 127
    %v2528 = vpop.permute.xlu0 %2527
    %2530 = vrot.lane.b32.xlu0 %v1016, 15
    %v2531 = vpop.permute.xlu0 %2530
    %2533 = vrot.lane.b32.xlu0 %v1016, 31
    %v2534 = vpop.permute.xlu0 %2533
    %2536 = vrot.lane.b32.xlu0 %v1016, 47
    %v2537 = vpop.permute.xlu0 %2536
    %2539 = vrot.lane.b32.xlu0 %v1016, 63
    %v2540 = vpop.permute.xlu0 %2539
    %v2542 = vsel %vm1053, %v2528, %v2531
    %v2543 = vsel %vm1056, %v2542, %v2534
    %v2544 = vsel %vm1059, %v2543, %v2537
    %v2545 = vsel %vm1062, %v2544, %v2540
    %v2546 = vld [vmem:[#allocation8 + $0x37] sm:$0x1]
    %v2547 = vlaneseq
    %v2548 = vshrl.u32 %v2547, 7
    %v2549 = vsub.s32 0, %v2548
    %v2550 = vrot.slane %v2546, %v2549
    %v2551 = vmul.f32 %v2550, %v2336
    %v2552 = vmul.f32 %v2550, %v2337
    %v2553 = vmul.f32 %v2550, %v2545
    %v2557 = vrot.slane %v2551, 3
    %v2558 = vrot.slane %v2552, 3
    %v2559 = vsel %vm1292, %v2557, %v2558
    %v2560 = vrot.slane %v2553, 3
    %v2561 = vsel %vm1292, %v2558, %v2560
    %v2564 = vadd.f32 %v2525, %v2559
    %v2565 = vadd.f32 %v2526, %v2561
    %2566 = vrot.lane.b32.xlu0 %v1016, 126
    %v2567 = vpop.permute.xlu0 %2566
    %2569 = vrot.lane.b32.xlu0 %v1016, 14
    %v2570 = vpop.permute.xlu0 %2569
    %2572 = vrot.lane.b32.xlu0 %v1016, 30
    %v2573 = vpop.permute.xlu0 %2572
    %2575 = vrot.lane.b32.xlu0 %v1016, 46
    %v2576 = vpop.permute.xlu0 %2575
    %2578 = vrot.lane.b32.xlu0 %v1016, 62
    %v2579 = vpop.permute.xlu0 %2578
    %v2581 = vsel %vm1053, %v2567, %v2570
    %v2582 = vsel %vm1056, %v2581, %v2573
    %v2583 = vsel %vm1059, %v2582, %v2576
    %v2584 = vsel %vm1062, %v2583, %v2579
    %v2585 = vld [vmem:[#allocation8 + $0x38] sm:$0x1]
    %v2586 = vlaneseq
    %v2587 = vshrl.u32 %v2586, 7
    %v2588 = vsub.s32 0, %v2587
    %v2589 = vrot.slane %v2585, %v2588
    %v2590 = vmul.f32 %v2589, %v2383
    %v2591 = vmul.f32 %v2589, %v2384
    %v2592 = vmul.f32 %v2589, %v2584
    %v2596 = vrot.slane %v2590, 3
    %v2597 = vrot.slane %v2591, 3
    %v2598 = vsel %vm1292, %v2596, %v2597
    %v2599 = vrot.slane %v2592, 3
    %v2600 = vsel %vm1292, %v2597, %v2599
    %v2603 = vadd.f32 %v2564, %v2598
    %v2604 = vadd.f32 %v2565, %v2600
    %v2605 = vld [vmem:[#allocation8 + $0x39] sm:$0x1]
    %v2606 = vlaneseq
    %v2607 = vshrl.u32 %v2606, 7
    %v2608 = vsub.s32 0, %v2607
    %v2609 = vrot.slane %v2605, %v2608
    %v2610 = vmul.f32 %v2609, %v2289
    %v2611 = vmul.f32 %v2609, %v2290
    %v2612 = vmul.f32 %v2609, %v2506
    %v2616 = vrot.slane %v2610, 4
    %v2617 = vrot.slane %v2611, 4
    %v2618 = vsel %vm1391, %v2616, %v2617
    %v2619 = vrot.slane %v2612, 4
    %v2620 = vsel %vm1391, %v2617, %v2619
    %v2623 = vadd.f32 %v2603, %v2618
    %v2624 = vadd.f32 %v2604, %v2620
    %v2625 = vld [vmem:[#allocation8 + $0x3a] sm:$0x1]
    %v2626 = vlaneseq
    %v2627 = vshrl.u32 %v2626, 7
    %v2628 = vsub.s32 0, %v2627
    %v2629 = vrot.slane %v2625, %v2628
    %v2630 = vmul.f32 %v2629, %v2336
    %v2631 = vmul.f32 %v2629, %v2337
    %v2632 = vmul.f32 %v2629, %v2545
    %v2636 = vrot.slane %v2630, 4
    %v2637 = vrot.slane %v2631, 4
    %v2638 = vsel %vm1391, %v2636, %v2637
    %v2639 = vrot.slane %v2632, 4
    %v2640 = vsel %vm1391, %v2637, %v2639
    %v2643 = vadd.f32 %v2623, %v2638
    %v2644 = vadd.f32 %v2624, %v2640
    %v2645 = vld [vmem:[#allocation8 + $0x3b] sm:$0x1]
    %v2646 = vlaneseq
    %v2647 = vshrl.u32 %v2646, 7
    %v2648 = vsub.s32 0, %v2647
    %v2649 = vrot.slane %v2645, %v2648
    %v2650 = vmul.f32 %v2649, %v2383
    %v2651 = vmul.f32 %v2649, %v2384
    %v2652 = vmul.f32 %v2649, %v2584
    %v2656 = vrot.slane %v2650, 4
    %v2657 = vrot.slane %v2651, 4
    %v2658 = vsel %vm1391, %v2656, %v2657
    %v2659 = vrot.slane %v2652, 4
    %v2660 = vsel %vm1391, %v2657, %v2659
    %v2663 = vadd.f32 %v2643, %v2658
    %v2664 = vadd.f32 %v2644, %v2660
    %2667 = vrot.lane.b32.xlu0 %v1017, 16
    %v2668 = vpop.permute.xlu0 %2667
    %2669 = vrot.lane.b32.xlu0 %v1018, 16
    %v2670 = vpop.permute.xlu0 %2669
    %2673 = vrot.lane.b32.xlu0 %v1017, 32
    %v2674 = vpop.permute.xlu0 %2673
    %2675 = vrot.lane.b32.xlu0 %v1018, 32
    %v2676 = vpop.permute.xlu0 %2675
    %2679 = vrot.lane.b32.xlu0 %v1017, 48
    %v2680 = vpop.permute.xlu0 %2679
    %2681 = vrot.lane.b32.xlu0 %v1018, 48
    %v2682 = vpop.permute.xlu0 %2681
    %2685 = vrot.lane.b32.xlu0 %v1017, 64
    %v2686 = vpop.permute.xlu0 %2685
    %2687 = vrot.lane.b32.xlu0 %v1018, 64
    %v2688 = vpop.permute.xlu0 %2687
    %v2691 = vsel %vm1053, %v1017, %v2668
    %v2692 = vsel %vm1053, %v1018, %v2670
    %v2693 = vsel %vm1056, %v2691, %v2674
    %v2694 = vsel %vm1056, %v2692, %v2676
    %v2695 = vsel %vm1059, %v2693, %v2680
    %v2696 = vsel %vm1059, %v2694, %v2682
    %v2697 = vsel %vm1062, %v2695, %v2686
    %v2698 = vsel %vm1062, %v2696, %v2688
    %v2699 = vld [vmem:[#allocation8 + $0x3c] sm:$0x1]
    %v2700 = vlaneseq
    %v2701 = vshrl.u32 %v2700, 7
    %v2702 = vsub.s32 0, %v2701
    %v2703 = vrot.slane %v2699, %v2702
    %v2704 = vmul.f32 %v2703, %v2697
    %v2705 = vmul.f32 %v2703, %v2698
    %v2706 = vadd.f32 %v2663, %v2704
    %v2707 = vadd.f32 %v2664, %v2705
    %2708 = vrot.lane.b32.xlu0 %v1017, 127
    %v2709 = vpop.permute.xlu0 %2708
    %2710 = vrot.lane.b32.xlu0 %v1018, 127
    %v2711 = vpop.permute.xlu0 %2710
    %2714 = vrot.lane.b32.xlu0 %v1017, 15
    %v2715 = vpop.permute.xlu0 %2714
    %2716 = vrot.lane.b32.xlu0 %v1018, 15
    %v2717 = vpop.permute.xlu0 %2716
    %2720 = vrot.lane.b32.xlu0 %v1017, 31
    %v2721 = vpop.permute.xlu0 %2720
    %2722 = vrot.lane.b32.xlu0 %v1018, 31
    %v2723 = vpop.permute.xlu0 %2722
    %2726 = vrot.lane.b32.xlu0 %v1017, 47
    %v2727 = vpop.permute.xlu0 %2726
    %2728 = vrot.lane.b32.xlu0 %v1018, 47
    %v2729 = vpop.permute.xlu0 %2728
    %2732 = vrot.lane.b32.xlu0 %v1017, 63
    %v2733 = vpop.permute.xlu0 %2732
    %2734 = vrot.lane.b32.xlu0 %v1018, 63
    %v2735 = vpop.permute.xlu0 %2734
    %v2738 = vsel %vm1053, %v2709, %v2715
    %v2739 = vsel %vm1053, %v2711, %v2717
    %v2740 = vsel %vm1056, %v2738, %v2721
    %v2741 = vsel %vm1056, %v2739, %v2723
    %v2742 = vsel %vm1059, %v2740, %v2727
    %v2743 = vsel %vm1059, %v2741, %v2729
    %v2744 = vsel %vm1062, %v2742, %v2733
    %v2745 = vsel %vm1062, %v2743, %v2735
    %v2746 = vld [vmem:[#allocation8 + $0x3d] sm:$0x1]
    %v2747 = vlaneseq
    %v2748 = vshrl.u32 %v2747, 7
    %v2749 = vsub.s32 0, %v2748
    %v2750 = vrot.slane %v2746, %v2749
    %v2751 = vmul.f32 %v2750, %v2744
    %v2752 = vmul.f32 %v2750, %v2745
    %v2753 = vadd.f32 %v2706, %v2751
    %v2754 = vadd.f32 %v2707, %v2752
    %2755 = vrot.lane.b32.xlu0 %v1017, 126
    %v2756 = vpop.permute.xlu0 %2755
    %2757 = vrot.lane.b32.xlu0 %v1018, 126
    %v2758 = vpop.permute.xlu0 %2757
    %2761 = vrot.lane.b32.xlu0 %v1017, 14
    %v2762 = vpop.permute.xlu0 %2761
    %2763 = vrot.lane.b32.xlu0 %v1018, 14
    %v2764 = vpop.permute.xlu0 %2763
    %2767 = vrot.lane.b32.xlu0 %v1017, 30
    %v2768 = vpop.permute.xlu0 %2767
    %2769 = vrot.lane.b32.xlu0 %v1018, 30
    %v2770 = vpop.permute.xlu0 %2769
    %2773 = vrot.lane.b32.xlu0 %v1017, 46
    %v2774 = vpop.permute.xlu0 %2773
    %2775 = vrot.lane.b32.xlu0 %v1018, 46
    %v2776 = vpop.permute.xlu0 %2775
    %2779 = vrot.lane.b32.xlu0 %v1017, 62
    %v2780 = vpop.permute.xlu0 %2779
    %2781 = vrot.lane.b32.xlu0 %v1018, 62
    %v2782 = vpop.permute.xlu0 %2781
    %v2785 = vsel %vm1053, %v2756, %v2762
    %v2786 = vsel %vm1053, %v2758, %v2764
    %v2787 = vsel %vm1056, %v2785, %v2768
    %v2788 = vsel %vm1056, %v2786, %v2770
    %v2789 = vsel %vm1059, %v2787, %v2774
    %v2790 = vsel %vm1059, %v2788, %v2776
    %v2791 = vsel %vm1062, %v2789, %v2780
    %v2792 = vsel %vm1062, %v2790, %v2782
    %v2793 = vld [vmem:[#allocation8 + $0x3e] sm:$0x1]
    %v2794 = vlaneseq
    %v2795 = vshrl.u32 %v2794, 7
    %v2796 = vsub.s32 0, %v2795
    %v2797 = vrot.slane %v2793, %v2796
    %v2798 = vmul.f32 %v2797, %v2791
    %v2799 = vmul.f32 %v2797, %v2792
    %v2800 = vadd.f32 %v2753, %v2798
    %v2801 = vadd.f32 %v2754, %v2799
    %v2802 = vld [vmem:[#allocation8 + $0x3f] sm:$0x1]
    %v2803 = vlaneseq
    %v2804 = vshrl.u32 %v2803, 7
    %v2805 = vsub.s32 0, %v2804
    %v2806 = vrot.slane %v2802, %v2805
    %v2807 = vmul.f32 %v2806, %v2697
    %v2808 = vmul.f32 %v2806, %v2698
    %v2811 = vrot.slane %v2807, 1
    %v2812 = vrot.slane %v2808, 1
    %v2813 = vsel %vm321, %v2811, %v2812
    %v2816 = vadd.f32 %v2800, %v2813
    %v2817 = vadd.f32 %v2801, %v2812
    %v2818 = vld [vmem:[#allocation8 + $0x40] sm:$0x1]
    %v2819 = vlaneseq
    %v2820 = vshrl.u32 %v2819, 7
    %v2821 = vsub.s32 0, %v2820
    %v2822 = vrot.slane %v2818, %v2821
    %v2823 = vmul.f32 %v2822, %v2744
    %v2824 = vmul.f32 %v2822, %v2745
    %v2827 = vrot.slane %v2823, 1
    %v2828 = vrot.slane %v2824, 1
    %v2829 = vsel %vm321, %v2827, %v2828
    %v2832 = vadd.f32 %v2816, %v2829
    %v2833 = vadd.f32 %v2817, %v2828
    %v2834 = vld [vmem:[#allocation8 + $0x41] sm:$0x1]
    %v2835 = vlaneseq
    %v2836 = vshrl.u32 %v2835, 7
    %v2837 = vsub.s32 0, %v2836
    %v2838 = vrot.slane %v2834, %v2837
    %v2839 = vmul.f32 %v2838, %v2791
    %v2840 = vmul.f32 %v2838, %v2792
    %v2843 = vrot.slane %v2839, 1
    %v2844 = vrot.slane %v2840, 1
    %v2845 = vsel %vm321, %v2843, %v2844
    %v2848 = vadd.f32 %v2832, %v2845
    %v2849 = vadd.f32 %v2833, %v2844
    %v2850 = vld [vmem:[#allocation8 + $0x42] sm:$0x1]
    %v2851 = vlaneseq
    %v2852 = vshrl.u32 %v2851, 7
    %v2853 = vsub.s32 0, %v2852
    %v2854 = vrot.slane %v2850, %v2853
    %v2855 = vmul.f32 %v2854, %v2697
    %v2856 = vmul.f32 %v2854, %v2698
    %v2859 = vrot.slane %v2855, 2
    %v2860 = vrot.slane %v2856, 2
    %v2861 = vsel %vm667, %v2859, %v2860
    %v2864 = vadd.f32 %v2848, %v2861
    %v2865 = vadd.f32 %v2849, %v2860
    %v2866 = vld [vmem:[#allocation8 + $0x43] sm:$0x1]
    %v2867 = vlaneseq
    %v2868 = vshrl.u32 %v2867, 7
    %v2869 = vsub.s32 0, %v2868
    %v2870 = vrot.slane %v2866, %v2869
    %v2871 = vmul.f32 %v2870, %v2744
    %v2872 = vmul.f32 %v2870, %v2745
    %v2875 = vrot.slane %v2871, 2
    %v2876 = vrot.slane %v2872, 2
    %v2877 = vsel %vm667, %v2875, %v2876
    %v2880 = vadd.f32 %v2864, %v2877
    %v2881 = vadd.f32 %v2865, %v2876
    %v2882 = vld [vmem:[#allocation8 + $0x44] sm:$0x1]
    %v2883 = vlaneseq
    %v2884 = vshrl.u32 %v2883, 7
    %v2885 = vsub.s32 0, %v2884
    %v2886 = vrot.slane %v2882, %v2885
    %v2887 = vmul.f32 %v2886, %v2791
    %v2888 = vmul.f32 %v2886, %v2792
    %v2891 = vrot.slane %v2887, 2
    %v2892 = vrot.slane %v2888, 2
    %v2893 = vsel %vm667, %v2891, %v2892
    %v2896 = vadd.f32 %v2880, %v2893
    %v2897 = vadd.f32 %v2881, %v2892
    %2899 = vrot.lane.b32.xlu0 %v1019, 16
    %v2900 = vpop.permute.xlu0 %2899
    %2902 = vrot.lane.b32.xlu0 %v1019, 32
    %v2903 = vpop.permute.xlu0 %2902
    %2905 = vrot.lane.b32.xlu0 %v1019, 48
    %v2906 = vpop.permute.xlu0 %2905
    %2908 = vrot.lane.b32.xlu0 %v1019, 64
    %v2909 = vpop.permute.xlu0 %2908
    %v2911 = vsel %vm1053, %v1019, %v2900
    %v2912 = vsel %vm1056, %v2911, %v2903
    %v2913 = vsel %vm1059, %v2912, %v2906
    %v2914 = vsel %vm1062, %v2913, %v2909
    %v2915 = vld [vmem:[#allocation8 + $0x45] sm:$0x1]
    %v2916 = vlaneseq
    %v2917 = vshrl.u32 %v2916, 7
    %v2918 = vsub.s32 0, %v2917
    %v2919 = vrot.slane %v2915, %v2918
    %v2920 = vmul.f32 %v2919, %v2697
    %v2921 = vmul.f32 %v2919, %v2698
    %v2922 = vmul.f32 %v2919, %v2914
    %v2926 = vrot.slane %v2920, 3
    %v2927 = vrot.slane %v2921, 3
    %v2928 = vsel %vm1292, %v2926, %v2927
    %v2929 = vrot.slane %v2922, 3
    %v2930 = vsel %vm1292, %v2927, %v2929
    %v2933 = vadd.f32 %v2896, %v2928
    %v2934 = vadd.f32 %v2897, %v2930
    %2935 = vrot.lane.b32.xlu0 %v1019, 127
    %v2936 = vpop.permute.xlu0 %2935
    %2938 = vrot.lane.b32.xlu0 %v1019, 15
    %v2939 = vpop.permute.xlu0 %2938
    %2941 = vrot.lane.b32.xlu0 %v1019, 31
    %v2942 = vpop.permute.xlu0 %2941
    %2944 = vrot.lane.b32.xlu0 %v1019, 47
    %v2945 = vpop.permute.xlu0 %2944
    %2947 = vrot.lane.b32.xlu0 %v1019, 63
    %v2948 = vpop.permute.xlu0 %2947
    %v2950 = vsel %vm1053, %v2936, %v2939
    %v2951 = vsel %vm1056, %v2950, %v2942
    %v2952 = vsel %vm1059, %v2951, %v2945
    %v2953 = vsel %vm1062, %v2952, %v2948
    %v2954 = vld [vmem:[#allocation8 + $0x46] sm:$0x1]
    %v2955 = vlaneseq
    %v2956 = vshrl.u32 %v2955, 7
    %v2957 = vsub.s32 0, %v2956
    %v2958 = vrot.slane %v2954, %v2957
    %v2959 = vmul.f32 %v2958, %v2744
    %v2960 = vmul.f32 %v2958, %v2745
    %v2961 = vmul.f32 %v2958, %v2953
    %v2965 = vrot.slane %v2959, 3
    %v2966 = vrot.slane %v2960, 3
    %v2967 = vsel %vm1292, %v2965, %v2966
    %v2968 = vrot.slane %v2961, 3
    %v2969 = vsel %vm1292, %v2966, %v2968
    %v2972 = vadd.f32 %v2933, %v2967
    %v2973 = vadd.f32 %v2934, %v2969
    %2974 = vrot.lane.b32.xlu0 %v1019, 126
    %v2975 = vpop.permute.xlu0 %2974
    %2977 = vrot.lane.b32.xlu0 %v1019, 14
    %v2978 = vpop.permute.xlu0 %2977
    %2980 = vrot.lane.b32.xlu0 %v1019, 30
    %v2981 = vpop.permute.xlu0 %2980
    %2983 = vrot.lane.b32.xlu0 %v1019, 46
    %v2984 = vpop.permute.xlu0 %2983
    %2986 = vrot.lane.b32.xlu0 %v1019, 62
    %v2987 = vpop.permute.xlu0 %2986
    %v2989 = vsel %vm1053, %v2975, %v2978
    %v2990 = vsel %vm1056, %v2989, %v2981
    %v2991 = vsel %vm1059, %v2990, %v2984
    %v2992 = vsel %vm1062, %v2991, %v2987
    %v2993 = vld [vmem:[#allocation8 + $0x47] sm:$0x1]
    %v2994 = vlaneseq
    %v2995 = vshrl.u32 %v2994, 7
    %v2996 = vsub.s32 0, %v2995
    %v2997 = vrot.slane %v2993, %v2996
    %v2998 = vmul.f32 %v2997, %v2791
    %v2999 = vmul.f32 %v2997, %v2792
    %v3000 = vmul.f32 %v2997, %v2992
    %v3004 = vrot.slane %v2998, 3
    %v3005 = vrot.slane %v2999, 3
    %v3006 = vsel %vm1292, %v3004, %v3005
    %v3007 = vrot.slane %v3000, 3
    %v3008 = vsel %vm1292, %v3005, %v3007
    %v3011 = vadd.f32 %v2972, %v3006
    %v3012 = vadd.f32 %v2973, %v3008
    %v3013 = vld [vmem:[#allocation8 + $0x48] sm:$0x1]
    %v3014 = vlaneseq
    %v3015 = vshrl.u32 %v3014, 7
    %v3016 = vsub.s32 0, %v3015
    %v3017 = vrot.slane %v3013, %v3016
    %v3018 = vmul.f32 %v3017, %v2697
    %v3019 = vmul.f32 %v3017, %v2698
    %v3020 = vmul.f32 %v3017, %v2914
    %v3024 = vrot.slane %v3018, 4
    %v3025 = vrot.slane %v3019, 4
    %v3026 = vsel %vm1391, %v3024, %v3025
    %v3027 = vrot.slane %v3020, 4
    %v3028 = vsel %vm1391, %v3025, %v3027
    %v3031 = vadd.f32 %v3011, %v3026
    %v3032 = vadd.f32 %v3012, %v3028
    %v3033 = vld [vmem:[#allocation8 + $0x49] sm:$0x1]
    %v3034 = vlaneseq
    %v3035 = vshrl.u32 %v3034, 7
    %v3036 = vsub.s32 0, %v3035
    %v3037 = vrot.slane %v3033, %v3036
    %v3038 = vmul.f32 %v3037, %v2744
    %v3039 = vmul.f32 %v3037, %v2745
    %v3040 = vmul.f32 %v3037, %v2953
    %v3044 = vrot.slane %v3038, 4
    %v3045 = vrot.slane %v3039, 4
    %v3046 = vsel %vm1391, %v3044, %v3045
    %v3047 = vrot.slane %v3040, 4
    %v3048 = vsel %vm1391, %v3045, %v3047
    %v3051 = vadd.f32 %v3031, %v3046
    %v3052 = vadd.f32 %v3032, %v3048
    %v3053 = vld [vmem:[#allocation8 + $0x4a] sm:$0x1]
    %v3054 = vlaneseq
    %v3055 = vshrl.u32 %v3054, 7
    %v3056 = vsub.s32 0, %v3055
    %v3057 = vrot.slane %v3053, %v3056
    %v3058 = vmul.f32 %v3057, %v2791
    %v3059 = vmul.f32 %v3057, %v2792
    %v3060 = vmul.f32 %v3057, %v2992
    %v3064 = vrot.slane %v3058, 4
    %v3065 = vrot.slane %v3059, 4
    %v3066 = vsel %vm1391, %v3064, %v3065
    %v3067 = vrot.slane %v3060, 4
    %v3068 = vsel %vm1391, %v3065, %v3067
    %v3071 = vadd.f32 %v3051, %v3066
    %v3072 = vadd.f32 %v3052, %v3068
    %vm3073 = vcmask 654336
    %3074 = vst.msk [vmem:[#allocation9] sm:$0xff] %vm3073, %v3071
    %vm3075 = vcmask 652288
    %3076 = vst.msk [vmem:[#allocation9 + $0x8] sm:$0x3f] %vm3075, %v3072
    // Predicated region
    $region34: #{tpu_custom_call.1} parent=1 // pred_check
      _
    $region35: #{tpu_custom_call.1} parent=1 // pred_check_branch
      %3078 = sbr.rel (0) target = $region37
    $region36: #{tpu_custom_call.1} parent=1 // pred_region
      %s3080 = ssub.s32 256, 256
      %3081 = vsyncadd [#allocation4], %s3080
      %s3082 = sshll.u32 [#allocation9], 4
      %s3083 = int_to_ptr.vmem [resolvable:$true] %s3082
      %3088 = dma.vmem_to_hbm [thread:$0]  %s3083, 256, %s5, [#allocation4], 128, 128, 8
    $region37: #{tpu_custom_call.1} parent=1 // pred_fallthru
      _
    // Predicated region
    $region38: #{tpu_custom_call.1} parent=1 // pred_check
      _
    $region39: #{tpu_custom_call.1} parent=1 // pred_check_branch
      %3090 = sbr.rel (0) target = $region41
    $region40: #{tpu_custom_call.1} parent=1 // pred_region
      %3091 = dma.done [#allocation4], 256
    $region41: #{tpu_custom_call.1} parent=1 // pred_fallthru
      _
    %3092 = vsyncpa [#allocation3], 1
    %3093 = vsyncpa [#allocation4], 1
    %3094 = vsyncpa [#allocation5], 1
    %3095 = vsyncpa [#allocation7], 1

</llo_original>
